<compile_context>
chip_gen: v6e
topology: v6e:2x2x1
jax: 0.10.0
libtpu: 0.0.40
codegen_flags: <defaults>
</compile_context>

<pallas_src>
import functools

import jax
import jax.numpy as jnp
from jax.experimental import pallas as pl
from jax.experimental.pallas import tpu as pltpu


# --------------------------- fused FFN kernel --------------------------------
def _fused_ffn_kernel(c_ref, w1_ref, b1_ref, dww_ref, dwb_ref, w2_ref, b2_ref,
                      o_ref, scr_ref, *, levels, halo):
    """One batch *block* per grid step.

    c_ref  : (Bt, N, Cin)  input tokens
    w1_ref : (Cin, Hd)     fc1 weight     b1_ref : (1, Hd)   fc1 bias
    dww_ref: (9, Hd)       depthwise 3x3 weight, tap-major, channels last
                           (dww[kh*3+kw, c] == torch_weight[c, 0, kh, kw])
    dwb_ref: (1, Hd)       depthwise bias
    w2_ref : (Hd, Cout)    fc2 weight     b2_ref : (1, Cout) fc2 bias
    o_ref  : (Bt, N, Cout) output tokens
    scr_ref: VMEM (2*halo + max_tokens, Hd) f32 -- per-level activation slab
             stored once at offset `halo`; the 9 conv taps are read as
             statically-offset windows of it (invalid rows masked).
    levels : static tuple of (H, W, token_start) for the 3 pyramid levels
    halo   : static int, = max(W)+1  (guarantees every window start >= 0)
    """
    hid = scr_ref.shape[-1]

    # Resident weights, loaded once (hoisted out of the slab loop).
    w1 = w1_ref[...].astype(jnp.float32)          # (Cin, Hd)
    b1 = b1_ref[...].astype(jnp.float32)          # (1, Hd)
    wv = dww_ref[...].astype(jnp.float32)         # (9, Hd)
    bv = dwb_ref[...].astype(jnp.float32)         # (1, Hd)
    w2 = w2_ref[...].astype(jnp.float32)          # (Hd, Cout)
    b2 = b2_ref[...].astype(jnp.float32)          # (1, Cout)

    # One-time clear (once per grid step, ~10 KB): makes the halo rows
    # deterministic.  Correctness does not depend on it (every out-of-level
    # read is masked before any arithmetic), it just avoids touching
    # uninitialized VMEM.
    scr_ref[...] = jnp.zeros_like(scr_ref)

    bt = c_ref.shape[0]
    inv_sqrt2 = 0.7071067811865476

    for b in range(bt):                                   # static (small Bt)
        for (H, W, start) in levels:                       # static 3 levels
            n_tok = H * W

            # ---- fc1 (MXU) + bias, result kept on-chip ----
            x = c_ref[b, pl.ds(start, n_tok), :].astype(jnp.float32)
            h = jnp.dot(x, w1, preferred_element_type=jnp.float32) + b1

            # single slab store into the halo'd scratch
            scr_ref[pl.ds(halo, n_tok), :] = h

            # token-index masks (no integer division needed)
            idx = jax.lax.broadcasted_iota(jnp.int32, (n_tok, 1), 0)
            if W & (W - 1) == 0:
                wp = jnp.bitwise_and(idx, W - 1)           # idx % W, W = 2^k
            else:
                wp = idx - (idx // W) * W                  # generic fallback

            # ---- depthwise 3x3 (stride 1, pad 1): 9 masked window reads ----
            acc = jnp.zeros((n_tok, hid), jnp.float32) + bv
            for dh in (-1, 0, 1):
                for dw in (-1, 0, 1):
                    win = scr_ref[pl.ds(halo + dh * W + dw, n_tok), :]
                    conds = []
                    if dh == -1:
                        conds.append(idx >= W)             # h-1 >= 0
                    elif dh == 1:
                        conds.append(idx < (H - 1) * W)    # h+1 <= H-1
                    if dw == -1:
                        conds.append(wp >= 1)              # w-1 >= 0
                    elif dw == 1:
                        conds.append(wp <= W - 2)          # w+1 <= W-1
                    if conds:
                        m = conds[0]
                        for extra in conds[1:]:
                            m = jnp.logical_and(m, extra)
                        win = jnp.where(m, win, 0.0)
                    acc = acc + win * wv[(dh + 1) * 3 + (dw + 1)]

            # exact GELU (matches torch.nn.GELU default, erf-based)
            g = 0.5 * acc * (1.0 + jax.lax.erf(acc * inv_sqrt2))

            # ---- dropout(p=0) is identity; fc2 (MXU) + bias; one store ----
            out = jnp.dot(g, w2, preferred_element_type=jnp.float32) + b2
            o_ref[b, pl.ds(start, n_tok), :] = out.astype(o_ref.dtype)


# ------------------------------ wrapper ---------------------------------------
def spatial_feat_pyramid_conv_ffn(c, c_spatial_shapes, params, *, batch_block=None):
    """c: (B, N2+N3+N4, C_in); c_spatial_shapes: 4 (H, W) pairs (first ignored)."""
    B, N, Cin = c.shape
    _, (H2, W2), (H3, W3), (H4, W4) = c_spatial_shapes
    hidden = params["fc1_w"].shape[1]
    out_f = params["fc2_w"].shape[1]
    assert N == H2 * W2 + H3 * W3 + H4 * W4

    i1 = H2 * W2
    i2 = i1 + H3 * W3
    levels = ((H2, W2, 0), (H3, W3, i1), (H4, W4, i2))

    bt = batch_block or B                       # whole batch per step by default
    assert B % bt == 0, "batch_block must divide B"

    Wmax = max(W2, W3, W4)
    max_tok = max(H2 * W2, H3 * W3, H4 * W4)
    halo = Wmax + 1
    scr_rows = max_tok + 2 * halo

    b1 = params["fc1_b"].reshape(1, hidden)
    dwb = params["dw_b"].reshape(1, hidden)
    b2 = params["fc2_b"].reshape(1, out_f)

    kernel = functools.partial(_fused_ffn_kernel, levels=levels, halo=halo)

    # ---- VMEM budget derived from actual footprint (v7x-safe) ----
    itemsize = c.dtype.itemsize
    block_in = bt * N * Cin * itemsize
    block_out = bt * N * out_f * itemsize
    weight_bytes = (Cin * hidden + hidden + 9 * hidden + hidden
                    + hidden * out_f + out_f) * 4
    scratch_bytes = scr_rows * hidden * 4
    vmem_need = 2 * (block_in + block_out + weight_bytes) + scratch_bytes
    try:
        vmem_cap = int(pltpu.get_tpu_info().vmem_capacity_bytes)
    except Exception:
        vmem_cap = 64 * 1024 * 1024             # conservative (v7x physical)
    vmem_limit = min(vmem_cap - (4 << 20),
                     max(16 << 20, 2 * vmem_need + (4 << 20)))

    grid_spec = pltpu.PrefetchScalarGridSpec(
        num_scalar_prefetch=0,
        grid=(B // bt,),
        in_specs=[
            pl.BlockSpec((bt, N, Cin), lambda b: (b, 0, 0)),     # tokens
            pl.BlockSpec((Cin, hidden), lambda b: (0, 0)),       # fc1_w (resident)
            pl.BlockSpec((1, hidden), lambda b: (0, 0)),         # fc1_b
            pl.BlockSpec((9, hidden), lambda b: (0, 0)),         # dw_w
            pl.BlockSpec((1, hidden), lambda b: (0, 0)),         # dw_b
            pl.BlockSpec((hidden, out_f), lambda b: (0, 0)),     # fc2_w
            pl.BlockSpec((1, out_f), lambda b: (0, 0)),          # fc2_b
        ],
        out_specs=pl.BlockSpec((bt, N, out_f), lambda b: (b, 0, 0)),
        scratch_shapes=[
            pltpu.VMEM((scr_rows, hidden), jnp.float32),          # halo'd slab
        ],
    )

    return pl.pallas_call(
        kernel,
        out_shape=jax.ShapeDtypeStruct((B, N, out_f), c.dtype),
        grid_spec=grid_spec,
        compiler_params=pltpu.CompilerParams(
            dimension_semantics=("parallel",),   # batch blocks -> megacore if >1
            vmem_limit_bytes=int(vmem_limit),
        ),
    )(c, params["fc1_w"], b1, params["dw_w"], dwb, params["fc2_w"], b2)


# --------------------------- pure-JAX reference -------------------------------
def _reference(c, c_spatial_shapes, params):
    B, N, _ = c.shape
    _, (H2, W2), (H3, W3), (H4, W4) = c_spatial_shapes
    hp = jax.lax.Precision.HIGHEST
    x = jnp.dot(c, params["fc1_w"], precision=hp) + params["fc1_b"]
    i1, i2 = H2 * W2, H2 * W2 + H3 * W3

    def dwconv_gelu(xm, H, W):
        xm = xm.reshape(B, H, W, -1)
        xp = jnp.pad(xm, ((0, 0), (1, 1), (1, 1), (0, 0)))
        acc = jnp.zeros_like(xm) + params["dw_b"]
        for dh in range(3):
            for dw in range(3):
                acc = acc + xp[:, dh:dh + H, dw:dw + W, :] * params["dw_w"][dh * 3 + dw]
        g = 0.5 * acc * (1.0 + jax.lax.erf(acc * 0.7071067811865476))
        return g.reshape(B, H * W, -1)

    y = jnp.concatenate(
        [dwconv_gelu(x[:, :i1], H2, W2),
         dwconv_gelu(x[:, i1:i2], H3, W3),
         dwconv_gelu(x[:, i2:], H4, W4)], axis=1)
    return jnp.dot(y, params["fc2_w"], precision=hp) + params["fc2_b"]


# ----------------------------------- main --------------------------------------
if __name__ == "__main__":
    in_features = 16
    hidden_features = 32
    out_features = 16
    B = 2
    # (c1 shape is unused by the module, only the last three are processed)
    c_spatial_shapes = ((16, 16), (8, 8), (4, 4), (2, 2))
    N = 8 * 8 + 4 * 4 + 2 * 2  # 84

    key = jax.random.PRNGKey(0)
    k = jax.random.split(key, 7)
    params = {
        "fc1_w": 0.02 * jax.random.normal(k[1], (in_features, hidden_features), jnp.float32),
        "fc1_b": 0.01 * jax.random.normal(k[2], (hidden_features,), jnp.float32),
        # depthwise weight: PyTorch (C,1,3,3) stored here as (3*3, C):
        # dw_w[kh*3+kw, c] == torch_weight[c, 0, kh, kw]
        "dw_w": 0.10 * jax.random.normal(k[3], (9, hidden_features), jnp.float32),
        "dw_b": 0.01 * jax.random.normal(k[4], (hidden_features,), jnp.float32),
        "fc2_w": 0.02 * jax.random.normal(k[5], (hidden_features, out_features), jnp.float32),
        "fc2_b": 0.01 * jax.random.normal(k[6], (out_features,), jnp.float32),
    }

    c = jax.random.normal(k[0], (B, N, in_features), jnp.float32)

    out = spatial_feat_pyramid_conv_ffn(c, c_spatial_shapes, params)
    jax.block_until_ready(out)
    assert out.shape == (B, N, out_features), out.shape

    ref = _reference(c, c_spatial_shapes, params)
    assert jnp.allclose(out, ref, atol=1e-3, rtol=1e-3), float(jnp.max(jnp.abs(out - ref)))

    print("KERNEL_OK")
</pallas_src>

<mosaic_0001>
module attributes {stable_mosaic.version = 11 : i64} {
  func.func @_fused_ffn_kernel(%arg0: i32, %arg1: memref<2x84x16xf32, #tpu.memory_space<vmem>>, %arg2: memref<16x32xf32, #tpu.memory_space<vmem>>, %arg3: memref<1x32xf32, #tpu.memory_space<vmem>>, %arg4: memref<9x32xf32, #tpu.memory_space<vmem>>, %arg5: memref<1x32xf32, #tpu.memory_space<vmem>>, %arg6: memref<32x16xf32, #tpu.memory_space<vmem>>, %arg7: memref<1x16xf32, #tpu.memory_space<vmem>>, %arg8: memref<2x84x16xf32, #tpu.memory_space<vmem>>, %arg9: memref<82x32xf32, #tpu.memory_space<vmem>>) attributes {dimension_semantics = [#tpu.dimension_semantics<parallel>], iteration_bounds = array<i64: 1>, scalar_prefetch = 0 : i64, scratch_operands = 1 : i64, tpu.core_type = #tpu.core_type<tc>, window_params = [{transform_indices = @transform_0, window_bounds = array<i64: 2, 84, 16>}, {pipeline_mode = #tpu.pipeline_mode<synchronous>, transform_indices = @transform_1, window_bounds = array<i64: 16, 32>}, {pipeline_mode = #tpu.pipeline_mode<synchronous>, transform_indices = @transform_2, window_bounds = array<i64: 1, 32>}, {pipeline_mode = #tpu.pipeline_mode<synchronous>, transform_indices = @transform_3, window_bounds = array<i64: 9, 32>}, {pipeline_mode = #tpu.pipeline_mode<synchronous>, transform_indices = @transform_4, window_bounds = array<i64: 1, 32>}, {pipeline_mode = #tpu.pipeline_mode<synchronous>, transform_indices = @transform_5, window_bounds = array<i64: 32, 16>}, {pipeline_mode = #tpu.pipeline_mode<synchronous>, transform_indices = @transform_6, window_bounds = array<i64: 1, 16>}, {transform_indices = @transform_7, window_bounds = array<i64: 2, 84, 16>}]} {
    %c0 = arith.constant 0 : index
    %c0_0 = arith.constant 0 : index
    %0 = vector.load %arg2[%c0, %c0_0] : memref<16x32xf32, #tpu.memory_space<vmem>>, vector<16x32xf32>
    %c0_1 = arith.constant 0 : index
    %c0_2 = arith.constant 0 : index
    %1 = vector.load %arg3[%c0_1, %c0_2] : memref<1x32xf32, #tpu.memory_space<vmem>>, vector<1x32xf32>
    %c0_3 = arith.constant 0 : index
    %c0_4 = arith.constant 0 : index
    %2 = vector.load %arg4[%c0_3, %c0_4] : memref<9x32xf32, #tpu.memory_space<vmem>>, vector<9x32xf32>
    %c0_5 = arith.constant 0 : index
    %c0_6 = arith.constant 0 : index
    %3 = vector.load %arg5[%c0_5, %c0_6] : memref<1x32xf32, #tpu.memory_space<vmem>>, vector<1x32xf32>
    %c0_7 = arith.constant 0 : index
    %c0_8 = arith.constant 0 : index
    %4 = vector.load %arg6[%c0_7, %c0_8] : memref<32x16xf32, #tpu.memory_space<vmem>>, vector<32x16xf32>
    %c0_9 = arith.constant 0 : index
    %c0_10 = arith.constant 0 : index
    %5 = vector.load %arg7[%c0_9, %c0_10] : memref<1x16xf32, #tpu.memory_space<vmem>>, vector<1x16xf32>
    %cst = arith.constant 0.000000e+00 : f32
    %6 = vector.broadcast %cst : f32 to vector<82x32xf32>
    %c0_11 = arith.constant 0 : index
    %c0_12 = arith.constant 0 : index
    %7 = vector.load %arg9[%c0_11, %c0_12] : memref<82x32xf32, #tpu.memory_space<vmem>>, vector<82x32xf32>
    tpu.vector_store %arg9[%c0_11, %c0_12], %6 {strides = array<i32>} : memref<82x32xf32, #tpu.memory_space<vmem>>, vector<82x32xf32>,
    %c0_13 = arith.constant 0 : index
    %c0_14 = arith.constant 0 : index
    %c0_15 = arith.constant 0 : index
    %8 = vector.load %arg1[%c0_13, %c0_14, %c0_15] : memref<2x84x16xf32, #tpu.memory_space<vmem>>, vector<1x64x16xf32>
    %9 = vector.shape_cast %8 : vector<1x64x16xf32> to vector<64x16xf32>
    %cst_16 = arith.constant dense<0.000000e+00> : vector<64x32xf32>
    %10 = tpu.matmul %9, %0, %cst_16 {dimension_numbers = #tpu.dot_dimension_numbers<[1], [0], [0], [1], [0, 0, 1, 1], [], []>} : vector<64x16xf32>, vector<16x32xf32>, vector<64x32xf32> -> vector<64x32xf32>
    %11 = vector.broadcast %1 : vector<1x32xf32> to vector<64x32xf32>
    %12 = arith.addf %10, %11 : vector<64x32xf32>
    %c9 = arith.constant 9 : index
    %c0_17 = arith.constant 0 : index
    %13 = vector.load %arg9[%c9, %c0_17] : memref<82x32xf32, #tpu.memory_space<vmem>>, vector<64x32xf32>
    tpu.vector_store %arg9[%c9, %c0_17], %12 {strides = array<i32>} : memref<82x32xf32, #tpu.memory_space<vmem>>, vector<64x32xf32>,
    %14 = tpu.iota {dimensions = array<i32: 0>} : vector<64x1xi32>
    %c7_i32 = arith.constant 7 : i32
    %15 = vector.broadcast %c7_i32 : i32 to vector<64x1xi32>
    %16 = arith.andi %14, %15 : vector<64x1xi32>
    %cst_18 = arith.constant 0.000000e+00 : f32
    %17 = vector.broadcast %cst_18 : f32 to vector<64x32xf32>
    %18 = vector.broadcast %3 : vector<1x32xf32> to vector<64x32xf32>
    %19 = arith.addf %17, %18 : vector<64x32xf32>
    %c0_19 = arith.constant 0 : index
    %c0_20 = arith.constant 0 : index
    %20 = vector.load %arg9[%c0_19, %c0_20] : memref<82x32xf32, #tpu.memory_space<vmem>>, vector<64x32xf32>
    %c8_i32 = arith.constant 8 : i32
    %21 = vector.broadcast %c8_i32 : i32 to vector<64x1xi32>
    %22 = arith.cmpi sge, %14, %21 : vector<64x1xi32>
    %c1_i32 = arith.constant 1 : i32
    %23 = vector.broadcast %c1_i32 : i32 to vector<64x1xi32>
    %24 = arith.cmpi sge, %16, %23 : vector<64x1xi32>
    %25 = arith.andi %22, %24 : vector<64x1xi1>
    %cst_21 = arith.constant 0.000000e+00 : f32
    %26 = vector.shape_cast %25 : vector<64x1xi1> to vector<64x1xi1>
    %27 = vector.broadcast %26 : vector<64x1xi1> to vector<64x32xi1>
    %28 = vector.broadcast %cst_21 : f32 to vector<64x32xf32>
    %29 = arith.select %27, %20, %28 : vector<64x32xi1>, vector<64x32xf32>
    %30 = vector.extract_strided_slice %2 {offsets = [0, 0], sizes = [1, 32], strides = [1, 1]} : vector<9x32xf32> to vector<1x32xf32>
    %31 = vector.shape_cast %30 : vector<1x32xf32> to vector<32xf32>
    %32 = vector.shape_cast %31 : vector<32xf32> to vector<1x32xf32>
    %33 = vector.broadcast %32 : vector<1x32xf32> to vector<64x32xf32>
    %34 = arith.mulf %29, %33 : vector<64x32xf32>
    %35 = arith.addf %19, %34 : vector<64x32xf32>
    %c1 = arith.constant 1 : index
    %c0_22 = arith.constant 0 : index
    %36 = vector.load %arg9[%c1, %c0_22] : memref<82x32xf32, #tpu.memory_space<vmem>>, vector<64x32xf32>
    %c8_i32_23 = arith.constant 8 : i32
    %37 = vector.broadcast %c8_i32_23 : i32 to vector<64x1xi32>
    %38 = arith.cmpi sge, %14, %37 : vector<64x1xi32>
    %cst_24 = arith.constant 0.000000e+00 : f32
    %39 = vector.shape_cast %38 : vector<64x1xi1> to vector<64x1xi1>
    %40 = vector.broadcast %39 : vector<64x1xi1> to vector<64x32xi1>
    %41 = vector.broadcast %cst_24 : f32 to vector<64x32xf32>
    %42 = arith.select %40, %36, %41 : vector<64x32xi1>, vector<64x32xf32>
    %43 = vector.extract_strided_slice %2 {offsets = [1, 0], sizes = [1, 32], strides = [1, 1]} : vector<9x32xf32> to vector<1x32xf32>
    %44 = vector.shape_cast %43 : vector<1x32xf32> to vector<32xf32>
    %45 = vector.shape_cast %44 : vector<32xf32> to vector<1x32xf32>
    %46 = vector.broadcast %45 : vector<1x32xf32> to vector<64x32xf32>
    %47 = arith.mulf %42, %46 : vector<64x32xf32>
    %48 = arith.addf %35, %47 : vector<64x32xf32>
    %c2 = arith.constant 2 : index
    %c0_25 = arith.constant 0 : index
    %49 = vector.load %arg9[%c2, %c0_25] : memref<82x32xf32, #tpu.memory_space<vmem>>, vector<64x32xf32>
    %c8_i32_26 = arith.constant 8 : i32
    %50 = vector.broadcast %c8_i32_26 : i32 to vector<64x1xi32>
    %51 = arith.cmpi sge, %14, %50 : vector<64x1xi32>
    %c6_i32 = arith.constant 6 : i32
    %52 = vector.broadcast %c6_i32 : i32 to vector<64x1xi32>
    %53 = arith.cmpi sle, %16, %52 : vector<64x1xi32>
    %54 = arith.andi %51, %53 : vector<64x1xi1>
    %cst_27 = arith.constant 0.000000e+00 : f32
    %55 = vector.shape_cast %54 : vector<64x1xi1> to vector<64x1xi1>
    %56 = vector.broadcast %55 : vector<64x1xi1> to vector<64x32xi1>
    %57 = vector.broadcast %cst_27 : f32 to vector<64x32xf32>
    %58 = arith.select %56, %49, %57 : vector<64x32xi1>, vector<64x32xf32>
    %59 = vector.extract_strided_slice %2 {offsets = [2, 0], sizes = [1, 32], strides = [1, 1]} : vector<9x32xf32> to vector<1x32xf32>
    %60 = vector.shape_cast %59 : vector<1x32xf32> to vector<32xf32>
    %61 = vector.shape_cast %60 : vector<32xf32> to vector<1x32xf32>
    %62 = vector.broadcast %61 : vector<1x32xf32> to vector<64x32xf32>
    %63 = arith.mulf %58, %62 : vector<64x32xf32>
    %64 = arith.addf %48, %63 : vector<64x32xf32>
    %c8 = arith.constant 8 : index
    %c0_28 = arith.constant 0 : index
    %65 = vector.load %arg9[%c8, %c0_28] : memref<82x32xf32, #tpu.memory_space<vmem>>, vector<64x32xf32>
    %c1_i32_29 = arith.constant 1 : i32
    %66 = vector.broadcast %c1_i32_29 : i32 to vector<64x1xi32>
    %67 = arith.cmpi sge, %16, %66 : vector<64x1xi32>
    %cst_30 = arith.constant 0.000000e+00 : f32
    %68 = vector.shape_cast %67 : vector<64x1xi1> to vector<64x1xi1>
    %69 = vector.broadcast %68 : vector<64x1xi1> to vector<64x32xi1>
    %70 = vector.broadcast %cst_30 : f32 to vector<64x32xf32>
    %71 = arith.select %69, %65, %70 : vector<64x32xi1>, vector<64x32xf32>
    %72 = vector.extract_strided_slice %2 {offsets = [3, 0], sizes = [1, 32], strides = [1, 1]} : vector<9x32xf32> to vector<1x32xf32>
    %73 = vector.shape_cast %72 : vector<1x32xf32> to vector<32xf32>
    %74 = vector.shape_cast %73 : vector<32xf32> to vector<1x32xf32>
    %75 = vector.broadcast %74 : vector<1x32xf32> to vector<64x32xf32>
    %76 = arith.mulf %71, %75 : vector<64x32xf32>
    %77 = arith.addf %64, %76 : vector<64x32xf32>
    %c9_31 = arith.constant 9 : index
    %c0_32 = arith.constant 0 : index
    %78 = vector.load %arg9[%c9_31, %c0_32] : memref<82x32xf32, #tpu.memory_space<vmem>>, vector<64x32xf32>
    %79 = vector.extract_strided_slice %2 {offsets = [4, 0], sizes = [1, 32], strides = [1, 1]} : vector<9x32xf32> to vector<1x32xf32>
    %80 = vector.shape_cast %79 : vector<1x32xf32> to vector<32xf32>
    %81 = vector.shape_cast %80 : vector<32xf32> to vector<1x32xf32>
    %82 = vector.broadcast %81 : vector<1x32xf32> to vector<64x32xf32>
    %83 = arith.mulf %78, %82 : vector<64x32xf32>
    %84 = arith.addf %77, %83 : vector<64x32xf32>
    %c10 = arith.constant 10 : index
    %c0_33 = arith.constant 0 : index
    %85 = vector.load %arg9[%c10, %c0_33] : memref<82x32xf32, #tpu.memory_space<vmem>>, vector<64x32xf32>
    %c6_i32_34 = arith.constant 6 : i32
    %86 = vector.broadcast %c6_i32_34 : i32 to vector<64x1xi32>
    %87 = arith.cmpi sle, %16, %86 : vector<64x1xi32>
    %cst_35 = arith.constant 0.000000e+00 : f32
    %88 = vector.shape_cast %87 : vector<64x1xi1> to vector<64x1xi1>
    %89 = vector.broadcast %88 : vector<64x1xi1> to vector<64x32xi1>
    %90 = vector.broadcast %cst_35 : f32 to vector<64x32xf32>
    %91 = arith.select %89, %85, %90 : vector<64x32xi1>, vector<64x32xf32>
    %92 = vector.extract_strided_slice %2 {offsets = [5, 0], sizes = [1, 32], strides = [1, 1]} : vector<9x32xf32> to vector<1x32xf32>
    %93 = vector.shape_cast %92 : vector<1x32xf32> to vector<32xf32>
    %94 = vector.shape_cast %93 : vector<32xf32> to vector<1x32xf32>
    %95 = vector.broadcast %94 : vector<1x32xf32> to vector<64x32xf32>
    %96 = arith.mulf %91, %95 : vector<64x32xf32>
    %97 = arith.addf %84, %96 : vector<64x32xf32>
    %c16 = arith.constant 16 : index
    %c0_36 = arith.constant 0 : index
    %98 = vector.load %arg9[%c16, %c0_36] : memref<82x32xf32, #tpu.memory_space<vmem>>, vector<64x32xf32>
    %c56_i32 = arith.constant 56 : i32
    %99 = vector.broadcast %c56_i32 : i32 to vector<64x1xi32>
    %100 = arith.cmpi slt, %14, %99 : vector<64x1xi32>
    %c1_i32_37 = arith.constant 1 : i32
    %101 = vector.broadcast %c1_i32_37 : i32 to vector<64x1xi32>
    %102 = arith.cmpi sge, %16, %101 : vector<64x1xi32>
    %103 = arith.andi %100, %102 : vector<64x1xi1>
    %cst_38 = arith.constant 0.000000e+00 : f32
    %104 = vector.shape_cast %103 : vector<64x1xi1> to vector<64x1xi1>
    %105 = vector.broadcast %104 : vector<64x1xi1> to vector<64x32xi1>
    %106 = vector.broadcast %cst_38 : f32 to vector<64x32xf32>
    %107 = arith.select %105, %98, %106 : vector<64x32xi1>, vector<64x32xf32>
    %108 = vector.extract_strided_slice %2 {offsets = [6, 0], sizes = [1, 32], strides = [1, 1]} : vector<9x32xf32> to vector<1x32xf32>
    %109 = vector.shape_cast %108 : vector<1x32xf32> to vector<32xf32>
    %110 = vector.shape_cast %109 : vector<32xf32> to vector<1x32xf32>
    %111 = vector.broadcast %110 : vector<1x32xf32> to vector<64x32xf32>
    %112 = arith.mulf %107, %111 : vector<64x32xf32>
    %113 = arith.addf %97, %112 : vector<64x32xf32>
    %c17 = arith.constant 17 : index
    %c0_39 = arith.constant 0 : index
    %114 = vector.load %arg9[%c17, %c0_39] : memref<82x32xf32, #tpu.memory_space<vmem>>, vector<64x32xf32>
    %c56_i32_40 = arith.constant 56 : i32
    %115 = vector.broadcast %c56_i32_40 : i32 to vector<64x1xi32>
    %116 = arith.cmpi slt, %14, %115 : vector<64x1xi32>
    %cst_41 = arith.constant 0.000000e+00 : f32
    %117 = vector.shape_cast %116 : vector<64x1xi1> to vector<64x1xi1>
    %118 = vector.broadcast %117 : vector<64x1xi1> to vector<64x32xi1>
    %119 = vector.broadcast %cst_41 : f32 to vector<64x32xf32>
    %120 = arith.select %118, %114, %119 : vector<64x32xi1>, vector<64x32xf32>
    %121 = vector.extract_strided_slice %2 {offsets = [7, 0], sizes = [1, 32], strides = [1, 1]} : vector<9x32xf32> to vector<1x32xf32>
    %122 = vector.shape_cast %121 : vector<1x32xf32> to vector<32xf32>
    %123 = vector.shape_cast %122 : vector<32xf32> to vector<1x32xf32>
    %124 = vector.broadcast %123 : vector<1x32xf32> to vector<64x32xf32>
    %125 = arith.mulf %120, %124 : vector<64x32xf32>
    %126 = arith.addf %113, %125 : vector<64x32xf32>
    %c18 = arith.constant 18 : index
    %c0_42 = arith.constant 0 : index
    %127 = vector.load %arg9[%c18, %c0_42] : memref<82x32xf32, #tpu.memory_space<vmem>>, vector<64x32xf32>
    %c56_i32_43 = arith.constant 56 : i32
    %128 = vector.broadcast %c56_i32_43 : i32 to vector<64x1xi32>
    %129 = arith.cmpi slt, %14, %128 : vector<64x1xi32>
    %c6_i32_44 = arith.constant 6 : i32
    %130 = vector.broadcast %c6_i32_44 : i32 to vector<64x1xi32>
    %131 = arith.cmpi sle, %16, %130 : vector<64x1xi32>
    %132 = arith.andi %129, %131 : vector<64x1xi1>
    %cst_45 = arith.constant 0.000000e+00 : f32
    %133 = vector.shape_cast %132 : vector<64x1xi1> to vector<64x1xi1>
    %134 = vector.broadcast %133 : vector<64x1xi1> to vector<64x32xi1>
    %135 = vector.broadcast %cst_45 : f32 to vector<64x32xf32>
    %136 = arith.select %134, %127, %135 : vector<64x32xi1>, vector<64x32xf32>
    %137 = vector.extract_strided_slice %2 {offsets = [8, 0], sizes = [1, 32], strides = [1, 1]} : vector<9x32xf32> to vector<1x32xf32>
    %138 = vector.shape_cast %137 : vector<1x32xf32> to vector<32xf32>
    %139 = vector.shape_cast %138 : vector<32xf32> to vector<1x32xf32>
    %140 = vector.broadcast %139 : vector<1x32xf32> to vector<64x32xf32>
    %141 = arith.mulf %136, %140 : vector<64x32xf32>
    %142 = arith.addf %126, %141 : vector<64x32xf32>
    %cst_46 = arith.constant 5.000000e-01 : f32
    %143 = vector.broadcast %cst_46 : f32 to vector<64x32xf32>
    %144 = arith.mulf %143, %142 : vector<64x32xf32>
    %cst_47 = arith.constant 0.707106769 : f32
    %145 = vector.broadcast %cst_47 : f32 to vector<64x32xf32>
    %146 = arith.mulf %142, %145 : vector<64x32xf32>
    %147 = math.erf %146 : vector<64x32xf32>
    %cst_48 = arith.constant 1.000000e+00 : f32
    %148 = vector.broadcast %cst_48 : f32 to vector<64x32xf32>
    %149 = arith.addf %148, %147 : vector<64x32xf32>
    %150 = arith.mulf %144, %149 : vector<64x32xf32>
    %cst_49 = arith.constant dense<0.000000e+00> : vector<64x16xf32>
    %151 = tpu.matmul %150, %4, %cst_49 {dimension_numbers = #tpu.dot_dimension_numbers<[1], [0], [0], [1], [0, 0, 1, 1], [], []>} : vector<64x32xf32>, vector<32x16xf32>, vector<64x16xf32> -> vector<64x16xf32>
    %152 = vector.broadcast %5 : vector<1x16xf32> to vector<64x16xf32>
    %153 = arith.addf %151, %152 : vector<64x16xf32>
    %c0_50 = arith.constant 0 : index
    %c0_51 = arith.constant 0 : index
    %c0_52 = arith.constant 0 : index
    %154 = vector.load %arg8[%c0_50, %c0_51, %c0_52] : memref<2x84x16xf32, #tpu.memory_space<vmem>>, vector<1x64x16xf32>
    %155 = vector.shape_cast %154 : vector<1x64x16xf32> to vector<64x16xf32>
    %156 = vector.shape_cast %153 : vector<64x16xf32> to vector<1x64x16xf32>
    tpu.vector_store %arg8[%c0_50, %c0_51, %c0_52], %156 {strides = array<i32>} : memref<2x84x16xf32, #tpu.memory_space<vmem>>, vector<1x64x16xf32>,
    %c0_53 = arith.constant 0 : index
    %c64 = arith.constant 64 : index
    %c0_54 = arith.constant 0 : index
    %157 = vector.load %arg1[%c0_53, %c64, %c0_54] : memref<2x84x16xf32, #tpu.memory_space<vmem>>, vector<1x16x16xf32>
    %158 = vector.shape_cast %157 : vector<1x16x16xf32> to vector<16x16xf32>
    %cst_55 = arith.constant dense<0.000000e+00> : vector<16x32xf32>
    %159 = tpu.matmul %158, %0, %cst_55 {dimension_numbers = #tpu.dot_dimension_numbers<[1], [0], [0], [1], [0, 0, 1, 1], [], []>} : vector<16x16xf32>, vector<16x32xf32>, vector<16x32xf32> -> vector<16x32xf32>
    %160 = vector.broadcast %1 : vector<1x32xf32> to vector<16x32xf32>
    %161 = arith.addf %159, %160 : vector<16x32xf32>
    %c9_56 = arith.constant 9 : index
    %c0_57 = arith.constant 0 : index
    %162 = vector.load %arg9[%c9_56, %c0_57] : memref<82x32xf32, #tpu.memory_space<vmem>>, vector<16x32xf32>
    tpu.vector_store %arg9[%c9_56, %c0_57], %161 {strides = array<i32>} : memref<82x32xf32, #tpu.memory_space<vmem>>, vector<16x32xf32>,
    %163 = tpu.iota {dimensions = array<i32: 0>} : vector<16x1xi32>
    %c3_i32 = arith.constant 3 : i32
    %164 = vector.broadcast %c3_i32 : i32 to vector<16x1xi32>
    %165 = arith.andi %163, %164 : vector<16x1xi32>
    %cst_58 = arith.constant 0.000000e+00 : f32
    %166 = vector.broadcast %cst_58 : f32 to vector<16x32xf32>
    %167 = vector.broadcast %3 : vector<1x32xf32> to vector<16x32xf32>
    %168 = arith.addf %166, %167 : vector<16x32xf32>
    %c4 = arith.constant 4 : index
    %c0_59 = arith.constant 0 : index
    %169 = vector.load %arg9[%c4, %c0_59] : memref<82x32xf32, #tpu.memory_space<vmem>>, vector<16x32xf32>
    %c4_i32 = arith.constant 4 : i32
    %170 = vector.broadcast %c4_i32 : i32 to vector<16x1xi32>
    %171 = arith.cmpi sge, %163, %170 : vector<16x1xi32>
    %c1_i32_60 = arith.constant 1 : i32
    %172 = vector.broadcast %c1_i32_60 : i32 to vector<16x1xi32>
    %173 = arith.cmpi sge, %165, %172 : vector<16x1xi32>
    %174 = arith.andi %171, %173 : vector<16x1xi1>
    %cst_61 = arith.constant 0.000000e+00 : f32
    %175 = vector.shape_cast %174 : vector<16x1xi1> to vector<16x1xi1>
    %176 = vector.broadcast %175 : vector<16x1xi1> to vector<16x32xi1>
    %177 = vector.broadcast %cst_61 : f32 to vector<16x32xf32>
    %178 = arith.select %176, %169, %177 : vector<16x32xi1>, vector<16x32xf32>
    %179 = vector.extract_strided_slice %2 {offsets = [0, 0], sizes = [1, 32], strides = [1, 1]} : vector<9x32xf32> to vector<1x32xf32>
    %180 = vector.shape_cast %179 : vector<1x32xf32> to vector<32xf32>
    %181 = vector.shape_cast %180 : vector<32xf32> to vector<1x32xf32>
    %182 = vector.broadcast %181 : vector<1x32xf32> to vector<16x32xf32>
    %183 = arith.mulf %178, %182 : vector<16x32xf32>
    %184 = arith.addf %168, %183 : vector<16x32xf32>
    %c5 = arith.constant 5 : index
    %c0_62 = arith.constant 0 : index
    %185 = vector.load %arg9[%c5, %c0_62] : memref<82x32xf32, #tpu.memory_space<vmem>>, vector<16x32xf32>
    %c4_i32_63 = arith.constant 4 : i32
    %186 = vector.broadcast %c4_i32_63 : i32 to vector<16x1xi32>
    %187 = arith.cmpi sge, %163, %186 : vector<16x1xi32>
    %cst_64 = arith.constant 0.000000e+00 : f32
    %188 = vector.shape_cast %187 : vector<16x1xi1> to vector<16x1xi1>
    %189 = vector.broadcast %188 : vector<16x1xi1> to vector<16x32xi1>
    %190 = vector.broadcast %cst_64 : f32 to vector<16x32xf32>
    %191 = arith.select %189, %185, %190 : vector<16x32xi1>, vector<16x32xf32>
    %192 = vector.extract_strided_slice %2 {offsets = [1, 0], sizes = [1, 32], strides = [1, 1]} : vector<9x32xf32> to vector<1x32xf32>
    %193 = vector.shape_cast %192 : vector<1x32xf32> to vector<32xf32>
    %194 = vector.shape_cast %193 : vector<32xf32> to vector<1x32xf32>
    %195 = vector.broadcast %194 : vector<1x32xf32> to vector<16x32xf32>
    %196 = arith.mulf %191, %195 : vector<16x32xf32>
    %197 = arith.addf %184, %196 : vector<16x32xf32>
    %c6 = arith.constant 6 : index
    %c0_65 = arith.constant 0 : index
    %198 = vector.load %arg9[%c6, %c0_65] : memref<82x32xf32, #tpu.memory_space<vmem>>, vector<16x32xf32>
    %c4_i32_66 = arith.constant 4 : i32
    %199 = vector.broadcast %c4_i32_66 : i32 to vector<16x1xi32>
    %200 = arith.cmpi sge, %163, %199 : vector<16x1xi32>
    %c2_i32 = arith.constant 2 : i32
    %201 = vector.broadcast %c2_i32 : i32 to vector<16x1xi32>
    %202 = arith.cmpi sle, %165, %201 : vector<16x1xi32>
    %203 = arith.andi %200, %202 : vector<16x1xi1>
    %cst_67 = arith.constant 0.000000e+00 : f32
    %204 = vector.shape_cast %203 : vector<16x1xi1> to vector<16x1xi1>
    %205 = vector.broadcast %204 : vector<16x1xi1> to vector<16x32xi1>
    %206 = vector.broadcast %cst_67 : f32 to vector<16x32xf32>
    %207 = arith.select %205, %198, %206 : vector<16x32xi1>, vector<16x32xf32>
    %208 = vector.extract_strided_slice %2 {offsets = [2, 0], sizes = [1, 32], strides = [1, 1]} : vector<9x32xf32> to vector<1x32xf32>
    %209 = vector.shape_cast %208 : vector<1x32xf32> to vector<32xf32>
    %210 = vector.shape_cast %209 : vector<32xf32> to vector<1x32xf32>
    %211 = vector.broadcast %210 : vector<1x32xf32> to vector<16x32xf32>
    %212 = arith.mulf %207, %211 : vector<16x32xf32>
    %213 = arith.addf %197, %212 : vector<16x32xf32>
    %c8_68 = arith.constant 8 : index
    %c0_69 = arith.constant 0 : index
    %214 = vector.load %arg9[%c8_68, %c0_69] : memref<82x32xf32, #tpu.memory_space<vmem>>, vector<16x32xf32>
    %c1_i32_70 = arith.constant 1 : i32
    %215 = vector.broadcast %c1_i32_70 : i32 to vector<16x1xi32>
    %216 = arith.cmpi sge, %165, %215 : vector<16x1xi32>
    %cst_71 = arith.constant 0.000000e+00 : f32
    %217 = vector.shape_cast %216 : vector<16x1xi1> to vector<16x1xi1>
    %218 = vector.broadcast %217 : vector<16x1xi1> to vector<16x32xi1>
    %219 = vector.broadcast %cst_71 : f32 to vector<16x32xf32>
    %220 = arith.select %218, %214, %219 : vector<16x32xi1>, vector<16x32xf32>
    %221 = vector.extract_strided_slice %2 {offsets = [3, 0], sizes = [1, 32], strides = [1, 1]} : vector<9x32xf32> to vector<1x32xf32>
    %222 = vector.shape_cast %221 : vector<1x32xf32> to vector<32xf32>
    %223 = vector.shape_cast %222 : vector<32xf32> to vector<1x32xf32>
    %224 = vector.broadcast %223 : vector<1x32xf32> to vector<16x32xf32>
    %225 = arith.mulf %220, %224 : vector<16x32xf32>
    %226 = arith.addf %213, %225 : vector<16x32xf32>
    %c9_72 = arith.constant 9 : index
    %c0_73 = arith.constant 0 : index
    %227 = vector.load %arg9[%c9_72, %c0_73] : memref<82x32xf32, #tpu.memory_space<vmem>>, vector<16x32xf32>
    %228 = vector.extract_strided_slice %2 {offsets = [4, 0], sizes = [1, 32], strides = [1, 1]} : vector<9x32xf32> to vector<1x32xf32>
    %229 = vector.shape_cast %228 : vector<1x32xf32> to vector<32xf32>
    %230 = vector.shape_cast %229 : vector<32xf32> to vector<1x32xf32>
    %231 = vector.broadcast %230 : vector<1x32xf32> to vector<16x32xf32>
    %232 = arith.mulf %227, %231 : vector<16x32xf32>
    %233 = arith.addf %226, %232 : vector<16x32xf32>
    %c10_74 = arith.constant 10 : index
    %c0_75 = arith.constant 0 : index
    %234 = vector.load %arg9[%c10_74, %c0_75] : memref<82x32xf32, #tpu.memory_space<vmem>>, vector<16x32xf32>
    %c2_i32_76 = arith.constant 2 : i32
    %235 = vector.broadcast %c2_i32_76 : i32 to vector<16x1xi32>
    %236 = arith.cmpi sle, %165, %235 : vector<16x1xi32>
    %cst_77 = arith.constant 0.000000e+00 : f32
    %237 = vector.shape_cast %236 : vector<16x1xi1> to vector<16x1xi1>
    %238 = vector.broadcast %237 : vector<16x1xi1> to vector<16x32xi1>
    %239 = vector.broadcast %cst_77 : f32 to vector<16x32xf32>
    %240 = arith.select %238, %234, %239 : vector<16x32xi1>, vector<16x32xf32>
    %241 = vector.extract_strided_slice %2 {offsets = [5, 0], sizes = [1, 32], strides = [1, 1]} : vector<9x32xf32> to vector<1x32xf32>
    %242 = vector.shape_cast %241 : vector<1x32xf32> to vector<32xf32>
    %243 = vector.shape_cast %242 : vector<32xf32> to vector<1x32xf32>
    %244 = vector.broadcast %243 : vector<1x32xf32> to vector<16x32xf32>
    %245 = arith.mulf %240, %244 : vector<16x32xf32>
    %246 = arith.addf %233, %245 : vector<16x32xf32>
    %c12 = arith.constant 12 : index
    %c0_78 = arith.constant 0 : index
    %247 = vector.load %arg9[%c12, %c0_78] : memref<82x32xf32, #tpu.memory_space<vmem>>, vector<16x32xf32>
    %c12_i32 = arith.constant 12 : i32
    %248 = vector.broadcast %c12_i32 : i32 to vector<16x1xi32>
    %249 = arith.cmpi slt, %163, %248 : vector<16x1xi32>
    %c1_i32_79 = arith.constant 1 : i32
    %250 = vector.broadcast %c1_i32_79 : i32 to vector<16x1xi32>
    %251 = arith.cmpi sge, %165, %250 : vector<16x1xi32>
    %252 = arith.andi %249, %251 : vector<16x1xi1>
    %cst_80 = arith.constant 0.000000e+00 : f32
    %253 = vector.shape_cast %252 : vector<16x1xi1> to vector<16x1xi1>
    %254 = vector.broadcast %253 : vector<16x1xi1> to vector<16x32xi1>
    %255 = vector.broadcast %cst_80 : f32 to vector<16x32xf32>
    %256 = arith.select %254, %247, %255 : vector<16x32xi1>, vector<16x32xf32>
    %257 = vector.extract_strided_slice %2 {offsets = [6, 0], sizes = [1, 32], strides = [1, 1]} : vector<9x32xf32> to vector<1x32xf32>
    %258 = vector.shape_cast %257 : vector<1x32xf32> to vector<32xf32>
    %259 = vector.shape_cast %258 : vector<32xf32> to vector<1x32xf32>
    %260 = vector.broadcast %259 : vector<1x32xf32> to vector<16x32xf32>
    %261 = arith.mulf %256, %260 : vector<16x32xf32>
    %262 = arith.addf %246, %261 : vector<16x32xf32>
    %c13 = arith.constant 13 : index
    %c0_81 = arith.constant 0 : index
    %263 = vector.load %arg9[%c13, %c0_81] : memref<82x32xf32, #tpu.memory_space<vmem>>, vector<16x32xf32>
    %c12_i32_82 = arith.constant 12 : i32
    %264 = vector.broadcast %c12_i32_82 : i32 to vector<16x1xi32>
    %265 = arith.cmpi slt, %163, %264 : vector<16x1xi32>
    %cst_83 = arith.constant 0.000000e+00 : f32
    %266 = vector.shape_cast %265 : vector<16x1xi1> to vector<16x1xi1>
    %267 = vector.broadcast %266 : vector<16x1xi1> to vector<16x32xi1>
    %268 = vector.broadcast %cst_83 : f32 to vector<16x32xf32>
    %269 = arith.select %267, %263, %268 : vector<16x32xi1>, vector<16x32xf32>
    %270 = vector.extract_strided_slice %2 {offsets = [7, 0], sizes = [1, 32], strides = [1, 1]} : vector<9x32xf32> to vector<1x32xf32>
    %271 = vector.shape_cast %270 : vector<1x32xf32> to vector<32xf32>
    %272 = vector.shape_cast %271 : vector<32xf32> to vector<1x32xf32>
    %273 = vector.broadcast %272 : vector<1x32xf32> to vector<16x32xf32>
    %274 = arith.mulf %269, %273 : vector<16x32xf32>
    %275 = arith.addf %262, %274 : vector<16x32xf32>
    %c14 = arith.constant 14 : index
    %c0_84 = arith.constant 0 : index
    %276 = vector.load %arg9[%c14, %c0_84] : memref<82x32xf32, #tpu.memory_space<vmem>>, vector<16x32xf32>
    %c12_i32_85 = arith.constant 12 : i32
    %277 = vector.broadcast %c12_i32_85 : i32 to vector<16x1xi32>
    %278 = arith.cmpi slt, %163, %277 : vector<16x1xi32>
    %c2_i32_86 = arith.constant 2 : i32
    %279 = vector.broadcast %c2_i32_86 : i32 to vector<16x1xi32>
    %280 = arith.cmpi sle, %165, %279 : vector<16x1xi32>
    %281 = arith.andi %278, %280 : vector<16x1xi1>
    %cst_87 = arith.constant 0.000000e+00 : f32
    %282 = vector.shape_cast %281 : vector<16x1xi1> to vector<16x1xi1>
    %283 = vector.broadcast %282 : vector<16x1xi1> to vector<16x32xi1>
    %284 = vector.broadcast %cst_87 : f32 to vector<16x32xf32>
    %285 = arith.select %283, %276, %284 : vector<16x32xi1>, vector<16x32xf32>
    %286 = vector.extract_strided_slice %2 {offsets = [8, 0], sizes = [1, 32], strides = [1, 1]} : vector<9x32xf32> to vector<1x32xf32>
    %287 = vector.shape_cast %286 : vector<1x32xf32> to vector<32xf32>
    %288 = vector.shape_cast %287 : vector<32xf32> to vector<1x32xf32>
    %289 = vector.broadcast %288 : vector<1x32xf32> to vector<16x32xf32>
    %290 = arith.mulf %285, %289 : vector<16x32xf32>
    %291 = arith.addf %275, %290 : vector<16x32xf32>
    %cst_88 = arith.constant 5.000000e-01 : f32
    %292 = vector.broadcast %cst_88 : f32 to vector<16x32xf32>
    %293 = arith.mulf %292, %291 : vector<16x32xf32>
    %cst_89 = arith.constant 0.707106769 : f32
    %294 = vector.broadcast %cst_89 : f32 to vector<16x32xf32>
    %295 = arith.mulf %291, %294 : vector<16x32xf32>
    %296 = math.erf %295 : vector<16x32xf32>
    %cst_90 = arith.constant 1.000000e+00 : f32
    %297 = vector.broadcast %cst_90 : f32 to vector<16x32xf32>
    %298 = arith.addf %297, %296 : vector<16x32xf32>
    %299 = arith.mulf %293, %298 : vector<16x32xf32>
    %cst_91 = arith.constant dense<0.000000e+00> : vector<16x16xf32>
    %300 = tpu.matmul %299, %4, %cst_91 {dimension_numbers = #tpu.dot_dimension_numbers<[1], [0], [0], [1], [0, 0, 1, 1], [], []>} : vector<16x32xf32>, vector<32x16xf32>, vector<16x16xf32> -> vector<16x16xf32>
    %301 = vector.broadcast %5 : vector<1x16xf32> to vector<16x16xf32>
    %302 = arith.addf %300, %301 : vector<16x16xf32>
    %c0_92 = arith.constant 0 : index
    %c64_93 = arith.constant 64 : index
    %c0_94 = arith.constant 0 : index
    %303 = vector.load %arg8[%c0_92, %c64_93, %c0_94] : memref<2x84x16xf32, #tpu.memory_space<vmem>>, vector<1x16x16xf32>
    %304 = vector.shape_cast %303 : vector<1x16x16xf32> to vector<16x16xf32>
    %305 = vector.shape_cast %302 : vector<16x16xf32> to vector<1x16x16xf32>
    tpu.vector_store %arg8[%c0_92, %c64_93, %c0_94], %305 {strides = array<i32>} : memref<2x84x16xf32, #tpu.memory_space<vmem>>, vector<1x16x16xf32>,
    %c0_95 = arith.constant 0 : index
    %c80 = arith.constant 80 : index
    %c0_96 = arith.constant 0 : index
    %306 = vector.load %arg1[%c0_95, %c80, %c0_96] : memref<2x84x16xf32, #tpu.memory_space<vmem>>, vector<1x4x16xf32>
    %307 = vector.shape_cast %306 : vector<1x4x16xf32> to vector<4x16xf32>
    %cst_97 = arith.constant dense<0.000000e+00> : vector<4x32xf32>
    %308 = tpu.matmul %307, %0, %cst_97 {dimension_numbers = #tpu.dot_dimension_numbers<[1], [0], [0], [1], [0, 0, 1, 1], [], []>} : vector<4x16xf32>, vector<16x32xf32>, vector<4x32xf32> -> vector<4x32xf32>
    %309 = vector.broadcast %1 : vector<1x32xf32> to vector<4x32xf32>
    %310 = arith.addf %308, %309 : vector<4x32xf32>
    %c9_98 = arith.constant 9 : index
    %c0_99 = arith.constant 0 : index
    %311 = vector.load %arg9[%c9_98, %c0_99] : memref<82x32xf32, #tpu.memory_space<vmem>>, vector<4x32xf32>
    tpu.vector_store %arg9[%c9_98, %c0_99], %310 {strides = array<i32>} : memref<82x32xf32, #tpu.memory_space<vmem>>, vector<4x32xf32>,
    %312 = tpu.iota {dimensions = array<i32: 0>} : vector<4x1xi32>
    %c1_i32_100 = arith.constant 1 : i32
    %313 = vector.broadcast %c1_i32_100 : i32 to vector<4x1xi32>
    %314 = arith.andi %312, %313 : vector<4x1xi32>
    %cst_101 = arith.constant 0.000000e+00 : f32
    %315 = vector.broadcast %cst_101 : f32 to vector<4x32xf32>
    %316 = vector.broadcast %3 : vector<1x32xf32> to vector<4x32xf32>
    %317 = arith.addf %315, %316 : vector<4x32xf32>
    %c6_102 = arith.constant 6 : index
    %c0_103 = arith.constant 0 : index
    %318 = vector.load %arg9[%c6_102, %c0_103] : memref<82x32xf32, #tpu.memory_space<vmem>>, vector<4x32xf32>
    %c2_i32_104 = arith.constant 2 : i32
    %319 = vector.broadcast %c2_i32_104 : i32 to vector<4x1xi32>
    %320 = arith.cmpi sge, %312, %319 : vector<4x1xi32>
    %c1_i32_105 = arith.constant 1 : i32
    %321 = vector.broadcast %c1_i32_105 : i32 to vector<4x1xi32>
    %322 = arith.cmpi sge, %314, %321 : vector<4x1xi32>
    %323 = arith.andi %320, %322 : vector<4x1xi1>
    %cst_106 = arith.constant 0.000000e+00 : f32
    %324 = vector.shape_cast %323 : vector<4x1xi1> to vector<4x1xi1>
    %325 = vector.broadcast %324 : vector<4x1xi1> to vector<4x32xi1>
    %326 = vector.broadcast %cst_106 : f32 to vector<4x32xf32>
    %327 = arith.select %325, %318, %326 : vector<4x32xi1>, vector<4x32xf32>
    %328 = vector.extract_strided_slice %2 {offsets = [0, 0], sizes = [1, 32], strides = [1, 1]} : vector<9x32xf32> to vector<1x32xf32>
    %329 = vector.shape_cast %328 : vector<1x32xf32> to vector<32xf32>
    %330 = vector.shape_cast %329 : vector<32xf32> to vector<1x32xf32>
    %331 = vector.broadcast %330 : vector<1x32xf32> to vector<4x32xf32>
    %332 = arith.mulf %327, %331 : vector<4x32xf32>
    %333 = arith.addf %317, %332 : vector<4x32xf32>
    %c7 = arith.constant 7 : index
    %c0_107 = arith.constant 0 : index
    %334 = vector.load %arg9[%c7, %c0_107] : memref<82x32xf32, #tpu.memory_space<vmem>>, vector<4x32xf32>
    %c2_i32_108 = arith.constant 2 : i32
    %335 = vector.broadcast %c2_i32_108 : i32 to vector<4x1xi32>
    %336 = arith.cmpi sge, %312, %335 : vector<4x1xi32>
    %cst_109 = arith.constant 0.000000e+00 : f32
    %337 = vector.shape_cast %336 : vector<4x1xi1> to vector<4x1xi1>
    %338 = vector.broadcast %337 : vector<4x1xi1> to vector<4x32xi1>
    %339 = vector.broadcast %cst_109 : f32 to vector<4x32xf32>
    %340 = arith.select %338, %334, %339 : vector<4x32xi1>, vector<4x32xf32>
    %341 = vector.extract_strided_slice %2 {offsets = [1, 0], sizes = [1, 32], strides = [1, 1]} : vector<9x32xf32> to vector<1x32xf32>
    %342 = vector.shape_cast %341 : vector<1x32xf32> to vector<32xf32>
    %343 = vector.shape_cast %342 : vector<32xf32> to vector<1x32xf32>
    %344 = vector.broadcast %343 : vector<1x32xf32> to vector<4x32xf32>
    %345 = arith.mulf %340, %344 : vector<4x32xf32>
    %346 = arith.addf %333, %345 : vector<4x32xf32>
    %c8_110 = arith.constant 8 : index
    %c0_111 = arith.constant 0 : index
    %347 = vector.load %arg9[%c8_110, %c0_111] : memref<82x32xf32, #tpu.memory_space<vmem>>, vector<4x32xf32>
    %c2_i32_112 = arith.constant 2 : i32
    %348 = vector.broadcast %c2_i32_112 : i32 to vector<4x1xi32>
    %349 = arith.cmpi sge, %312, %348 : vector<4x1xi32>
    %c0_i32 = arith.constant 0 : i32
    %350 = vector.broadcast %c0_i32 : i32 to vector<4x1xi32>
    %351 = arith.cmpi sle, %314, %350 : vector<4x1xi32>
    %352 = arith.andi %349, %351 : vector<4x1xi1>
    %cst_113 = arith.constant 0.000000e+00 : f32
    %353 = vector.shape_cast %352 : vector<4x1xi1> to vector<4x1xi1>
    %354 = vector.broadcast %353 : vector<4x1xi1> to vector<4x32xi1>
    %355 = vector.broadcast %cst_113 : f32 to vector<4x32xf32>
    %356 = arith.select %354, %347, %355 : vector<4x32xi1>, vector<4x32xf32>
    %357 = vector.extract_strided_slice %2 {offsets = [2, 0], sizes = [1, 32], strides = [1, 1]} : vector<9x32xf32> to vector<1x32xf32>
    %358 = vector.shape_cast %357 : vector<1x32xf32> to vector<32xf32>
    %359 = vector.shape_cast %358 : vector<32xf32> to vector<1x32xf32>
    %360 = vector.broadcast %359 : vector<1x32xf32> to vector<4x32xf32>
    %361 = arith.mulf %356, %360 : vector<4x32xf32>
    %362 = arith.addf %346, %361 : vector<4x32xf32>
    %c8_114 = arith.constant 8 : index
    %c0_115 = arith.constant 0 : index
    %363 = vector.load %arg9[%c8_114, %c0_115] : memref<82x32xf32, #tpu.memory_space<vmem>>, vector<4x32xf32>
    %c1_i32_116 = arith.constant 1 : i32
    %364 = vector.broadcast %c1_i32_116 : i32 to vector<4x1xi32>
    %365 = arith.cmpi sge, %314, %364 : vector<4x1xi32>
    %cst_117 = arith.constant 0.000000e+00 : f32
    %366 = vector.shape_cast %365 : vector<4x1xi1> to vector<4x1xi1>
    %367 = vector.broadcast %366 : vector<4x1xi1> to vector<4x32xi1>
    %368 = vector.broadcast %cst_117 : f32 to vector<4x32xf32>
    %369 = arith.select %367, %363, %368 : vector<4x32xi1>, vector<4x32xf32>
    %370 = vector.extract_strided_slice %2 {offsets = [3, 0], sizes = [1, 32], strides = [1, 1]} : vector<9x32xf32> to vector<1x32xf32>
    %371 = vector.shape_cast %370 : vector<1x32xf32> to vector<32xf32>
    %372 = vector.shape_cast %371 : vector<32xf32> to vector<1x32xf32>
    %373 = vector.broadcast %372 : vector<1x32xf32> to vector<4x32xf32>
    %374 = arith.mulf %369, %373 : vector<4x32xf32>
    %375 = arith.addf %362, %374 : vector<4x32xf32>
    %c9_118 = arith.constant 9 : index
    %c0_119 = arith.constant 0 : index
    %376 = vector.load %arg9[%c9_118, %c0_119] : memref<82x32xf32, #tpu.memory_space<vmem>>, vector<4x32xf32>
    %377 = vector.extract_strided_slice %2 {offsets = [4, 0], sizes = [1, 32], strides = [1, 1]} : vector<9x32xf32> to vector<1x32xf32>
    %378 = vector.shape_cast %377 : vector<1x32xf32> to vector<32xf32>
    %379 = vector.shape_cast %378 : vector<32xf32> to vector<1x32xf32>
    %380 = vector.broadcast %379 : vector<1x32xf32> to vector<4x32xf32>
    %381 = arith.mulf %376, %380 : vector<4x32xf32>
    %382 = arith.addf %375, %381 : vector<4x32xf32>
    %c10_120 = arith.constant 10 : index
    %c0_121 = arith.constant 0 : index
    %383 = vector.load %arg9[%c10_120, %c0_121] : memref<82x32xf32, #tpu.memory_space<vmem>>, vector<4x32xf32>
    %c0_i32_122 = arith.constant 0 : i32
    %384 = vector.broadcast %c0_i32_122 : i32 to vector<4x1xi32>
    %385 = arith.cmpi sle, %314, %384 : vector<4x1xi32>
    %cst_123 = arith.constant 0.000000e+00 : f32
    %386 = vector.shape_cast %385 : vector<4x1xi1> to vector<4x1xi1>
    %387 = vector.broadcast %386 : vector<4x1xi1> to vector<4x32xi1>
    %388 = vector.broadcast %cst_123 : f32 to vector<4x32xf32>
    %389 = arith.select %387, %383, %388 : vector<4x32xi1>, vector<4x32xf32>
    %390 = vector.extract_strided_slice %2 {offsets = [5, 0], sizes = [1, 32], strides = [1, 1]} : vector<9x32xf32> to vector<1x32xf32>
    %391 = vector.shape_cast %390 : vector<1x32xf32> to vector<32xf32>
    %392 = vector.shape_cast %391 : vector<32xf32> to vector<1x32xf32>
    %393 = vector.broadcast %392 : vector<1x32xf32> to vector<4x32xf32>
    %394 = arith.mulf %389, %393 : vector<4x32xf32>
    %395 = arith.addf %382, %394 : vector<4x32xf32>
    %c10_124 = arith.constant 10 : index
    %c0_125 = arith.constant 0 : index
    %396 = vector.load %arg9[%c10_124, %c0_125] : memref<82x32xf32, #tpu.memory_space<vmem>>, vector<4x32xf32>
    %c2_i32_126 = arith.constant 2 : i32
    %397 = vector.broadcast %c2_i32_126 : i32 to vector<4x1xi32>
    %398 = arith.cmpi slt, %312, %397 : vector<4x1xi32>
    %c1_i32_127 = arith.constant 1 : i32
    %399 = vector.broadcast %c1_i32_127 : i32 to vector<4x1xi32>
    %400 = arith.cmpi sge, %314, %399 : vector<4x1xi32>
    %401 = arith.andi %398, %400 : vector<4x1xi1>
    %cst_128 = arith.constant 0.000000e+00 : f32
    %402 = vector.shape_cast %401 : vector<4x1xi1> to vector<4x1xi1>
    %403 = vector.broadcast %402 : vector<4x1xi1> to vector<4x32xi1>
    %404 = vector.broadcast %cst_128 : f32 to vector<4x32xf32>
    %405 = arith.select %403, %396, %404 : vector<4x32xi1>, vector<4x32xf32>
    %406 = vector.extract_strided_slice %2 {offsets = [6, 0], sizes = [1, 32], strides = [1, 1]} : vector<9x32xf32> to vector<1x32xf32>
    %407 = vector.shape_cast %406 : vector<1x32xf32> to vector<32xf32>
    %408 = vector.shape_cast %407 : vector<32xf32> to vector<1x32xf32>
    %409 = vector.broadcast %408 : vector<1x32xf32> to vector<4x32xf32>
    %410 = arith.mulf %405, %409 : vector<4x32xf32>
    %411 = arith.addf %395, %410 : vector<4x32xf32>
    %c11 = arith.constant 11 : index
    %c0_129 = arith.constant 0 : index
    %412 = vector.load %arg9[%c11, %c0_129] : memref<82x32xf32, #tpu.memory_space<vmem>>, vector<4x32xf32>
    %c2_i32_130 = arith.constant 2 : i32
    %413 = vector.broadcast %c2_i32_130 : i32 to vector<4x1xi32>
    %414 = arith.cmpi slt, %312, %413 : vector<4x1xi32>
    %cst_131 = arith.constant 0.000000e+00 : f32
    %415 = vector.shape_cast %414 : vector<4x1xi1> to vector<4x1xi1>
    %416 = vector.broadcast %415 : vector<4x1xi1> to vector<4x32xi1>
    %417 = vector.broadcast %cst_131 : f32 to vector<4x32xf32>
    %418 = arith.select %416, %412, %417 : vector<4x32xi1>, vector<4x32xf32>
    %419 = vector.extract_strided_slice %2 {offsets = [7, 0], sizes = [1, 32], strides = [1, 1]} : vector<9x32xf32> to vector<1x32xf32>
    %420 = vector.shape_cast %419 : vector<1x32xf32> to vector<32xf32>
    %421 = vector.shape_cast %420 : vector<32xf32> to vector<1x32xf32>
    %422 = vector.broadcast %421 : vector<1x32xf32> to vector<4x32xf32>
    %423 = arith.mulf %418, %422 : vector<4x32xf32>
    %424 = arith.addf %411, %423 : vector<4x32xf32>
    %c12_132 = arith.constant 12 : index
    %c0_133 = arith.constant 0 : index
    %425 = vector.load %arg9[%c12_132, %c0_133] : memref<82x32xf32, #tpu.memory_space<vmem>>, vector<4x32xf32>
    %c2_i32_134 = arith.constant 2 : i32
    %426 = vector.broadcast %c2_i32_134 : i32 to vector<4x1xi32>
    %427 = arith.cmpi slt, %312, %426 : vector<4x1xi32>
    %c0_i32_135 = arith.constant 0 : i32
    %428 = vector.broadcast %c0_i32_135 : i32 to vector<4x1xi32>
    %429 = arith.cmpi sle, %314, %428 : vector<4x1xi32>
    %430 = arith.andi %427, %429 : vector<4x1xi1>
    %cst_136 = arith.constant 0.000000e+00 : f32
    %431 = vector.shape_cast %430 : vector<4x1xi1> to vector<4x1xi1>
    %432 = vector.broadcast %431 : vector<4x1xi1> to vector<4x32xi1>
    %433 = vector.broadcast %cst_136 : f32 to vector<4x32xf32>
    %434 = arith.select %432, %425, %433 : vector<4x32xi1>, vector<4x32xf32>
    %435 = vector.extract_strided_slice %2 {offsets = [8, 0], sizes = [1, 32], strides = [1, 1]} : vector<9x32xf32> to vector<1x32xf32>
    %436 = vector.shape_cast %435 : vector<1x32xf32> to vector<32xf32>
    %437 = vector.shape_cast %436 : vector<32xf32> to vector<1x32xf32>
    %438 = vector.broadcast %437 : vector<1x32xf32> to vector<4x32xf32>
    %439 = arith.mulf %434, %438 : vector<4x32xf32>
    %440 = arith.addf %424, %439 : vector<4x32xf32>
    %cst_137 = arith.constant 5.000000e-01 : f32
    %441 = vector.broadcast %cst_137 : f32 to vector<4x32xf32>
    %442 = arith.mulf %441, %440 : vector<4x32xf32>
    %cst_138 = arith.constant 0.707106769 : f32
    %443 = vector.broadcast %cst_138 : f32 to vector<4x32xf32>
    %444 = arith.mulf %440, %443 : vector<4x32xf32>
    %445 = math.erf %444 : vector<4x32xf32>
    %cst_139 = arith.constant 1.000000e+00 : f32
    %446 = vector.broadcast %cst_139 : f32 to vector<4x32xf32>
    %447 = arith.addf %446, %445 : vector<4x32xf32>
    %448 = arith.mulf %442, %447 : vector<4x32xf32>
    %cst_140 = arith.constant dense<0.000000e+00> : vector<4x16xf32>
    %449 = tpu.matmul %448, %4, %cst_140 {dimension_numbers = #tpu.dot_dimension_numbers<[1], [0], [0], [1], [0, 0, 1, 1], [], []>} : vector<4x32xf32>, vector<32x16xf32>, vector<4x16xf32> -> vector<4x16xf32>
    %450 = vector.broadcast %5 : vector<1x16xf32> to vector<4x16xf32>
    %451 = arith.addf %449, %450 : vector<4x16xf32>
    %c0_141 = arith.constant 0 : index
    %c80_142 = arith.constant 80 : index
    %c0_143 = arith.constant 0 : index
    %452 = vector.load %arg8[%c0_141, %c80_142, %c0_143] : memref<2x84x16xf32, #tpu.memory_space<vmem>>, vector<1x4x16xf32>
    %453 = vector.shape_cast %452 : vector<1x4x16xf32> to vector<4x16xf32>
    %454 = vector.shape_cast %451 : vector<4x16xf32> to vector<1x4x16xf32>
    tpu.vector_store %arg8[%c0_141, %c80_142, %c0_143], %454 {strides = array<i32>} : memref<2x84x16xf32, #tpu.memory_space<vmem>>, vector<1x4x16xf32>,
    %c1_144 = arith.constant 1 : index
    %c0_145 = arith.constant 0 : index
    %c0_146 = arith.constant 0 : index
    %455 = vector.load %arg1[%c1_144, %c0_145, %c0_146] : memref<2x84x16xf32, #tpu.memory_space<vmem>>, vector<1x64x16xf32>
    %456 = vector.shape_cast %455 : vector<1x64x16xf32> to vector<64x16xf32>
    %cst_147 = arith.constant dense<0.000000e+00> : vector<64x32xf32>
    %457 = tpu.matmul %456, %0, %cst_147 {dimension_numbers = #tpu.dot_dimension_numbers<[1], [0], [0], [1], [0, 0, 1, 1], [], []>} : vector<64x16xf32>, vector<16x32xf32>, vector<64x32xf32> -> vector<64x32xf32>
    %458 = vector.broadcast %1 : vector<1x32xf32> to vector<64x32xf32>
    %459 = arith.addf %457, %458 : vector<64x32xf32>
    %c9_148 = arith.constant 9 : index
    %c0_149 = arith.constant 0 : index
    %460 = vector.load %arg9[%c9_148, %c0_149] : memref<82x32xf32, #tpu.memory_space<vmem>>, vector<64x32xf32>
    tpu.vector_store %arg9[%c9_148, %c0_149], %459 {strides = array<i32>} : memref<82x32xf32, #tpu.memory_space<vmem>>, vector<64x32xf32>,
    %461 = tpu.iota {dimensions = array<i32: 0>} : vector<64x1xi32>
    %c7_i32_150 = arith.constant 7 : i32
    %462 = vector.broadcast %c7_i32_150 : i32 to vector<64x1xi32>
    %463 = arith.andi %461, %462 : vector<64x1xi32>
    %cst_151 = arith.constant 0.000000e+00 : f32
    %464 = vector.broadcast %cst_151 : f32 to vector<64x32xf32>
    %465 = vector.broadcast %3 : vector<1x32xf32> to vector<64x32xf32>
    %466 = arith.addf %464, %465 : vector<64x32xf32>
    %c0_152 = arith.constant 0 : index
    %c0_153 = arith.constant 0 : index
    %467 = vector.load %arg9[%c0_152, %c0_153] : memref<82x32xf32, #tpu.memory_space<vmem>>, vector<64x32xf32>
    %c8_i32_154 = arith.constant 8 : i32
    %468 = vector.broadcast %c8_i32_154 : i32 to vector<64x1xi32>
    %469 = arith.cmpi sge, %461, %468 : vector<64x1xi32>
    %c1_i32_155 = arith.constant 1 : i32
    %470 = vector.broadcast %c1_i32_155 : i32 to vector<64x1xi32>
    %471 = arith.cmpi sge, %463, %470 : vector<64x1xi32>
    %472 = arith.andi %469, %471 : vector<64x1xi1>
    %cst_156 = arith.constant 0.000000e+00 : f32
    %473 = vector.shape_cast %472 : vector<64x1xi1> to vector<64x1xi1>
    %474 = vector.broadcast %473 : vector<64x1xi1> to vector<64x32xi1>
    %475 = vector.broadcast %cst_156 : f32 to vector<64x32xf32>
    %476 = arith.select %474, %467, %475 : vector<64x32xi1>, vector<64x32xf32>
    %477 = vector.extract_strided_slice %2 {offsets = [0, 0], sizes = [1, 32], strides = [1, 1]} : vector<9x32xf32> to vector<1x32xf32>
    %478 = vector.shape_cast %477 : vector<1x32xf32> to vector<32xf32>
    %479 = vector.shape_cast %478 : vector<32xf32> to vector<1x32xf32>
    %480 = vector.broadcast %479 : vector<1x32xf32> to vector<64x32xf32>
    %481 = arith.mulf %476, %480 : vector<64x32xf32>
    %482 = arith.addf %466, %481 : vector<64x32xf32>
    %c1_157 = arith.constant 1 : index
    %c0_158 = arith.constant 0 : index
    %483 = vector.load %arg9[%c1_157, %c0_158] : memref<82x32xf32, #tpu.memory_space<vmem>>, vector<64x32xf32>
    %c8_i32_159 = arith.constant 8 : i32
    %484 = vector.broadcast %c8_i32_159 : i32 to vector<64x1xi32>
    %485 = arith.cmpi sge, %461, %484 : vector<64x1xi32>
    %cst_160 = arith.constant 0.000000e+00 : f32
    %486 = vector.shape_cast %485 : vector<64x1xi1> to vector<64x1xi1>
    %487 = vector.broadcast %486 : vector<64x1xi1> to vector<64x32xi1>
    %488 = vector.broadcast %cst_160 : f32 to vector<64x32xf32>
    %489 = arith.select %487, %483, %488 : vector<64x32xi1>, vector<64x32xf32>
    %490 = vector.extract_strided_slice %2 {offsets = [1, 0], sizes = [1, 32], strides = [1, 1]} : vector<9x32xf32> to vector<1x32xf32>
    %491 = vector.shape_cast %490 : vector<1x32xf32> to vector<32xf32>
    %492 = vector.shape_cast %491 : vector<32xf32> to vector<1x32xf32>
    %493 = vector.broadcast %492 : vector<1x32xf32> to vector<64x32xf32>
    %494 = arith.mulf %489, %493 : vector<64x32xf32>
    %495 = arith.addf %482, %494 : vector<64x32xf32>
    %c2_161 = arith.constant 2 : index
    %c0_162 = arith.constant 0 : index
    %496 = vector.load %arg9[%c2_161, %c0_162] : memref<82x32xf32, #tpu.memory_space<vmem>>, vector<64x32xf32>
    %c8_i32_163 = arith.constant 8 : i32
    %497 = vector.broadcast %c8_i32_163 : i32 to vector<64x1xi32>
    %498 = arith.cmpi sge, %461, %497 : vector<64x1xi32>
    %c6_i32_164 = arith.constant 6 : i32
    %499 = vector.broadcast %c6_i32_164 : i32 to vector<64x1xi32>
    %500 = arith.cmpi sle, %463, %499 : vector<64x1xi32>
    %501 = arith.andi %498, %500 : vector<64x1xi1>
    %cst_165 = arith.constant 0.000000e+00 : f32
    %502 = vector.shape_cast %501 : vector<64x1xi1> to vector<64x1xi1>
    %503 = vector.broadcast %502 : vector<64x1xi1> to vector<64x32xi1>
    %504 = vector.broadcast %cst_165 : f32 to vector<64x32xf32>
    %505 = arith.select %503, %496, %504 : vector<64x32xi1>, vector<64x32xf32>
    %506 = vector.extract_strided_slice %2 {offsets = [2, 0], sizes = [1, 32], strides = [1, 1]} : vector<9x32xf32> to vector<1x32xf32>
    %507 = vector.shape_cast %506 : vector<1x32xf32> to vector<32xf32>
    %508 = vector.shape_cast %507 : vector<32xf32> to vector<1x32xf32>
    %509 = vector.broadcast %508 : vector<1x32xf32> to vector<64x32xf32>
    %510 = arith.mulf %505, %509 : vector<64x32xf32>
    %511 = arith.addf %495, %510 : vector<64x32xf32>
    %c8_166 = arith.constant 8 : index
    %c0_167 = arith.constant 0 : index
    %512 = vector.load %arg9[%c8_166, %c0_167] : memref<82x32xf32, #tpu.memory_space<vmem>>, vector<64x32xf32>
    %c1_i32_168 = arith.constant 1 : i32
    %513 = vector.broadcast %c1_i32_168 : i32 to vector<64x1xi32>
    %514 = arith.cmpi sge, %463, %513 : vector<64x1xi32>
    %cst_169 = arith.constant 0.000000e+00 : f32
    %515 = vector.shape_cast %514 : vector<64x1xi1> to vector<64x1xi1>
    %516 = vector.broadcast %515 : vector<64x1xi1> to vector<64x32xi1>
    %517 = vector.broadcast %cst_169 : f32 to vector<64x32xf32>
    %518 = arith.select %516, %512, %517 : vector<64x32xi1>, vector<64x32xf32>
    %519 = vector.extract_strided_slice %2 {offsets = [3, 0], sizes = [1, 32], strides = [1, 1]} : vector<9x32xf32> to vector<1x32xf32>
    %520 = vector.shape_cast %519 : vector<1x32xf32> to vector<32xf32>
    %521 = vector.shape_cast %520 : vector<32xf32> to vector<1x32xf32>
    %522 = vector.broadcast %521 : vector<1x32xf32> to vector<64x32xf32>
    %523 = arith.mulf %518, %522 : vector<64x32xf32>
    %524 = arith.addf %511, %523 : vector<64x32xf32>
    %c9_170 = arith.constant 9 : index
    %c0_171 = arith.constant 0 : index
    %525 = vector.load %arg9[%c9_170, %c0_171] : memref<82x32xf32, #tpu.memory_space<vmem>>, vector<64x32xf32>
    %526 = vector.extract_strided_slice %2 {offsets = [4, 0], sizes = [1, 32], strides = [1, 1]} : vector<9x32xf32> to vector<1x32xf32>
    %527 = vector.shape_cast %526 : vector<1x32xf32> to vector<32xf32>
    %528 = vector.shape_cast %527 : vector<32xf32> to vector<1x32xf32>
    %529 = vector.broadcast %528 : vector<1x32xf32> to vector<64x32xf32>
    %530 = arith.mulf %525, %529 : vector<64x32xf32>
    %531 = arith.addf %524, %530 : vector<64x32xf32>
    %c10_172 = arith.constant 10 : index
    %c0_173 = arith.constant 0 : index
    %532 = vector.load %arg9[%c10_172, %c0_173] : memref<82x32xf32, #tpu.memory_space<vmem>>, vector<64x32xf32>
    %c6_i32_174 = arith.constant 6 : i32
    %533 = vector.broadcast %c6_i32_174 : i32 to vector<64x1xi32>
    %534 = arith.cmpi sle, %463, %533 : vector<64x1xi32>
    %cst_175 = arith.constant 0.000000e+00 : f32
    %535 = vector.shape_cast %534 : vector<64x1xi1> to vector<64x1xi1>
    %536 = vector.broadcast %535 : vector<64x1xi1> to vector<64x32xi1>
    %537 = vector.broadcast %cst_175 : f32 to vector<64x32xf32>
    %538 = arith.select %536, %532, %537 : vector<64x32xi1>, vector<64x32xf32>
    %539 = vector.extract_strided_slice %2 {offsets = [5, 0], sizes = [1, 32], strides = [1, 1]} : vector<9x32xf32> to vector<1x32xf32>
    %540 = vector.shape_cast %539 : vector<1x32xf32> to vector<32xf32>
    %541 = vector.shape_cast %540 : vector<32xf32> to vector<1x32xf32>
    %542 = vector.broadcast %541 : vector<1x32xf32> to vector<64x32xf32>
    %543 = arith.mulf %538, %542 : vector<64x32xf32>
    %544 = arith.addf %531, %543 : vector<64x32xf32>
    %c16_176 = arith.constant 16 : index
    %c0_177 = arith.constant 0 : index
    %545 = vector.load %arg9[%c16_176, %c0_177] : memref<82x32xf32, #tpu.memory_space<vmem>>, vector<64x32xf32>
    %c56_i32_178 = arith.constant 56 : i32
    %546 = vector.broadcast %c56_i32_178 : i32 to vector<64x1xi32>
    %547 = arith.cmpi slt, %461, %546 : vector<64x1xi32>
    %c1_i32_179 = arith.constant 1 : i32
    %548 = vector.broadcast %c1_i32_179 : i32 to vector<64x1xi32>
    %549 = arith.cmpi sge, %463, %548 : vector<64x1xi32>
    %550 = arith.andi %547, %549 : vector<64x1xi1>
    %cst_180 = arith.constant 0.000000e+00 : f32
    %551 = vector.shape_cast %550 : vector<64x1xi1> to vector<64x1xi1>
    %552 = vector.broadcast %551 : vector<64x1xi1> to vector<64x32xi1>
    %553 = vector.broadcast %cst_180 : f32 to vector<64x32xf32>
    %554 = arith.select %552, %545, %553 : vector<64x32xi1>, vector<64x32xf32>
    %555 = vector.extract_strided_slice %2 {offsets = [6, 0], sizes = [1, 32], strides = [1, 1]} : vector<9x32xf32> to vector<1x32xf32>
    %556 = vector.shape_cast %555 : vector<1x32xf32> to vector<32xf32>
    %557 = vector.shape_cast %556 : vector<32xf32> to vector<1x32xf32>
    %558 = vector.broadcast %557 : vector<1x32xf32> to vector<64x32xf32>
    %559 = arith.mulf %554, %558 : vector<64x32xf32>
    %560 = arith.addf %544, %559 : vector<64x32xf32>
    %c17_181 = arith.constant 17 : index
    %c0_182 = arith.constant 0 : index
    %561 = vector.load %arg9[%c17_181, %c0_182] : memref<82x32xf32, #tpu.memory_space<vmem>>, vector<64x32xf32>
    %c56_i32_183 = arith.constant 56 : i32
    %562 = vector.broadcast %c56_i32_183 : i32 to vector<64x1xi32>
    %563 = arith.cmpi slt, %461, %562 : vector<64x1xi32>
    %cst_184 = arith.constant 0.000000e+00 : f32
    %564 = vector.shape_cast %563 : vector<64x1xi1> to vector<64x1xi1>
    %565 = vector.broadcast %564 : vector<64x1xi1> to vector<64x32xi1>
    %566 = vector.broadcast %cst_184 : f32 to vector<64x32xf32>
    %567 = arith.select %565, %561, %566 : vector<64x32xi1>, vector<64x32xf32>
    %568 = vector.extract_strided_slice %2 {offsets = [7, 0], sizes = [1, 32], strides = [1, 1]} : vector<9x32xf32> to vector<1x32xf32>
    %569 = vector.shape_cast %568 : vector<1x32xf32> to vector<32xf32>
    %570 = vector.shape_cast %569 : vector<32xf32> to vector<1x32xf32>
    %571 = vector.broadcast %570 : vector<1x32xf32> to vector<64x32xf32>
    %572 = arith.mulf %567, %571 : vector<64x32xf32>
    %573 = arith.addf %560, %572 : vector<64x32xf32>
    %c18_185 = arith.constant 18 : index
    %c0_186 = arith.constant 0 : index
    %574 = vector.load %arg9[%c18_185, %c0_186] : memref<82x32xf32, #tpu.memory_space<vmem>>, vector<64x32xf32>
    %c56_i32_187 = arith.constant 56 : i32
    %575 = vector.broadcast %c56_i32_187 : i32 to vector<64x1xi32>
    %576 = arith.cmpi slt, %461, %575 : vector<64x1xi32>
    %c6_i32_188 = arith.constant 6 : i32
    %577 = vector.broadcast %c6_i32_188 : i32 to vector<64x1xi32>
    %578 = arith.cmpi sle, %463, %577 : vector<64x1xi32>
    %579 = arith.andi %576, %578 : vector<64x1xi1>
    %cst_189 = arith.constant 0.000000e+00 : f32
    %580 = vector.shape_cast %579 : vector<64x1xi1> to vector<64x1xi1>
    %581 = vector.broadcast %580 : vector<64x1xi1> to vector<64x32xi1>
    %582 = vector.broadcast %cst_189 : f32 to vector<64x32xf32>
    %583 = arith.select %581, %574, %582 : vector<64x32xi1>, vector<64x32xf32>
    %584 = vector.extract_strided_slice %2 {offsets = [8, 0], sizes = [1, 32], strides = [1, 1]} : vector<9x32xf32> to vector<1x32xf32>
    %585 = vector.shape_cast %584 : vector<1x32xf32> to vector<32xf32>
    %586 = vector.shape_cast %585 : vector<32xf32> to vector<1x32xf32>
    %587 = vector.broadcast %586 : vector<1x32xf32> to vector<64x32xf32>
    %588 = arith.mulf %583, %587 : vector<64x32xf32>
    %589 = arith.addf %573, %588 : vector<64x32xf32>
    %cst_190 = arith.constant 5.000000e-01 : f32
    %590 = vector.broadcast %cst_190 : f32 to vector<64x32xf32>
    %591 = arith.mulf %590, %589 : vector<64x32xf32>
    %cst_191 = arith.constant 0.707106769 : f32
    %592 = vector.broadcast %cst_191 : f32 to vector<64x32xf32>
    %593 = arith.mulf %589, %592 : vector<64x32xf32>
    %594 = math.erf %593 : vector<64x32xf32>
    %cst_192 = arith.constant 1.000000e+00 : f32
    %595 = vector.broadcast %cst_192 : f32 to vector<64x32xf32>
    %596 = arith.addf %595, %594 : vector<64x32xf32>
    %597 = arith.mulf %591, %596 : vector<64x32xf32>
    %cst_193 = arith.constant dense<0.000000e+00> : vector<64x16xf32>
    %598 = tpu.matmul %597, %4, %cst_193 {dimension_numbers = #tpu.dot_dimension_numbers<[1], [0], [0], [1], [0, 0, 1, 1], [], []>} : vector<64x32xf32>, vector<32x16xf32>, vector<64x16xf32> -> vector<64x16xf32>
    %599 = vector.broadcast %5 : vector<1x16xf32> to vector<64x16xf32>
    %600 = arith.addf %598, %599 : vector<64x16xf32>
    %c1_194 = arith.constant 1 : index
    %c0_195 = arith.constant 0 : index
    %c0_196 = arith.constant 0 : index
    %601 = vector.load %arg8[%c1_194, %c0_195, %c0_196] : memref<2x84x16xf32, #tpu.memory_space<vmem>>, vector<1x64x16xf32>
    %602 = vector.shape_cast %601 : vector<1x64x16xf32> to vector<64x16xf32>
    %603 = vector.shape_cast %600 : vector<64x16xf32> to vector<1x64x16xf32>
    tpu.vector_store %arg8[%c1_194, %c0_195, %c0_196], %603 {strides = array<i32>} : memref<2x84x16xf32, #tpu.memory_space<vmem>>, vector<1x64x16xf32>,
    %c1_197 = arith.constant 1 : index
    %c64_198 = arith.constant 64 : index
    %c0_199 = arith.constant 0 : index
    %604 = vector.load %arg1[%c1_197, %c64_198, %c0_199] : memref<2x84x16xf32, #tpu.memory_space<vmem>>, vector<1x16x16xf32>
    %605 = vector.shape_cast %604 : vector<1x16x16xf32> to vector<16x16xf32>
    %cst_200 = arith.constant dense<0.000000e+00> : vector<16x32xf32>
    %606 = tpu.matmul %605, %0, %cst_200 {dimension_numbers = #tpu.dot_dimension_numbers<[1], [0], [0], [1], [0, 0, 1, 1], [], []>} : vector<16x16xf32>, vector<16x32xf32>, vector<16x32xf32> -> vector<16x32xf32>
    %607 = vector.broadcast %1 : vector<1x32xf32> to vector<16x32xf32>
    %608 = arith.addf %606, %607 : vector<16x32xf32>
    %c9_201 = arith.constant 9 : index
    %c0_202 = arith.constant 0 : index
    %609 = vector.load %arg9[%c9_201, %c0_202] : memref<82x32xf32, #tpu.memory_space<vmem>>, vector<16x32xf32>
    tpu.vector_store %arg9[%c9_201, %c0_202], %608 {strides = array<i32>} : memref<82x32xf32, #tpu.memory_space<vmem>>, vector<16x32xf32>,
    %610 = tpu.iota {dimensions = array<i32: 0>} : vector<16x1xi32>
    %c3_i32_203 = arith.constant 3 : i32
    %611 = vector.broadcast %c3_i32_203 : i32 to vector<16x1xi32>
    %612 = arith.andi %610, %611 : vector<16x1xi32>
    %cst_204 = arith.constant 0.000000e+00 : f32
    %613 = vector.broadcast %cst_204 : f32 to vector<16x32xf32>
    %614 = vector.broadcast %3 : vector<1x32xf32> to vector<16x32xf32>
    %615 = arith.addf %613, %614 : vector<16x32xf32>
    %c4_205 = arith.constant 4 : index
    %c0_206 = arith.constant 0 : index
    %616 = vector.load %arg9[%c4_205, %c0_206] : memref<82x32xf32, #tpu.memory_space<vmem>>, vector<16x32xf32>
    %c4_i32_207 = arith.constant 4 : i32
    %617 = vector.broadcast %c4_i32_207 : i32 to vector<16x1xi32>
    %618 = arith.cmpi sge, %610, %617 : vector<16x1xi32>
    %c1_i32_208 = arith.constant 1 : i32
    %619 = vector.broadcast %c1_i32_208 : i32 to vector<16x1xi32>
    %620 = arith.cmpi sge, %612, %619 : vector<16x1xi32>
    %621 = arith.andi %618, %620 : vector<16x1xi1>
    %cst_209 = arith.constant 0.000000e+00 : f32
    %622 = vector.shape_cast %621 : vector<16x1xi1> to vector<16x1xi1>
    %623 = vector.broadcast %622 : vector<16x1xi1> to vector<16x32xi1>
    %624 = vector.broadcast %cst_209 : f32 to vector<16x32xf32>
    %625 = arith.select %623, %616, %624 : vector<16x32xi1>, vector<16x32xf32>
    %626 = vector.extract_strided_slice %2 {offsets = [0, 0], sizes = [1, 32], strides = [1, 1]} : vector<9x32xf32> to vector<1x32xf32>
    %627 = vector.shape_cast %626 : vector<1x32xf32> to vector<32xf32>
    %628 = vector.shape_cast %627 : vector<32xf32> to vector<1x32xf32>
    %629 = vector.broadcast %628 : vector<1x32xf32> to vector<16x32xf32>
    %630 = arith.mulf %625, %629 : vector<16x32xf32>
    %631 = arith.addf %615, %630 : vector<16x32xf32>
    %c5_210 = arith.constant 5 : index
    %c0_211 = arith.constant 0 : index
    %632 = vector.load %arg9[%c5_210, %c0_211] : memref<82x32xf32, #tpu.memory_space<vmem>>, vector<16x32xf32>
    %c4_i32_212 = arith.constant 4 : i32
    %633 = vector.broadcast %c4_i32_212 : i32 to vector<16x1xi32>
    %634 = arith.cmpi sge, %610, %633 : vector<16x1xi32>
    %cst_213 = arith.constant 0.000000e+00 : f32
    %635 = vector.shape_cast %634 : vector<16x1xi1> to vector<16x1xi1>
    %636 = vector.broadcast %635 : vector<16x1xi1> to vector<16x32xi1>
    %637 = vector.broadcast %cst_213 : f32 to vector<16x32xf32>
    %638 = arith.select %636, %632, %637 : vector<16x32xi1>, vector<16x32xf32>
    %639 = vector.extract_strided_slice %2 {offsets = [1, 0], sizes = [1, 32], strides = [1, 1]} : vector<9x32xf32> to vector<1x32xf32>
    %640 = vector.shape_cast %639 : vector<1x32xf32> to vector<32xf32>
    %641 = vector.shape_cast %640 : vector<32xf32> to vector<1x32xf32>
    %642 = vector.broadcast %641 : vector<1x32xf32> to vector<16x32xf32>
    %643 = arith.mulf %638, %642 : vector<16x32xf32>
    %644 = arith.addf %631, %643 : vector<16x32xf32>
    %c6_214 = arith.constant 6 : index
    %c0_215 = arith.constant 0 : index
    %645 = vector.load %arg9[%c6_214, %c0_215] : memref<82x32xf32, #tpu.memory_space<vmem>>, vector<16x32xf32>
    %c4_i32_216 = arith.constant 4 : i32
    %646 = vector.broadcast %c4_i32_216 : i32 to vector<16x1xi32>
    %647 = arith.cmpi sge, %610, %646 : vector<16x1xi32>
    %c2_i32_217 = arith.constant 2 : i32
    %648 = vector.broadcast %c2_i32_217 : i32 to vector<16x1xi32>
    %649 = arith.cmpi sle, %612, %648 : vector<16x1xi32>
    %650 = arith.andi %647, %649 : vector<16x1xi1>
    %cst_218 = arith.constant 0.000000e+00 : f32
    %651 = vector.shape_cast %650 : vector<16x1xi1> to vector<16x1xi1>
    %652 = vector.broadcast %651 : vector<16x1xi1> to vector<16x32xi1>
    %653 = vector.broadcast %cst_218 : f32 to vector<16x32xf32>
    %654 = arith.select %652, %645, %653 : vector<16x32xi1>, vector<16x32xf32>
    %655 = vector.extract_strided_slice %2 {offsets = [2, 0], sizes = [1, 32], strides = [1, 1]} : vector<9x32xf32> to vector<1x32xf32>
    %656 = vector.shape_cast %655 : vector<1x32xf32> to vector<32xf32>
    %657 = vector.shape_cast %656 : vector<32xf32> to vector<1x32xf32>
    %658 = vector.broadcast %657 : vector<1x32xf32> to vector<16x32xf32>
    %659 = arith.mulf %654, %658 : vector<16x32xf32>
    %660 = arith.addf %644, %659 : vector<16x32xf32>
    %c8_219 = arith.constant 8 : index
    %c0_220 = arith.constant 0 : index
    %661 = vector.load %arg9[%c8_219, %c0_220] : memref<82x32xf32, #tpu.memory_space<vmem>>, vector<16x32xf32>
    %c1_i32_221 = arith.constant 1 : i32
    %662 = vector.broadcast %c1_i32_221 : i32 to vector<16x1xi32>
    %663 = arith.cmpi sge, %612, %662 : vector<16x1xi32>
    %cst_222 = arith.constant 0.000000e+00 : f32
    %664 = vector.shape_cast %663 : vector<16x1xi1> to vector<16x1xi1>
    %665 = vector.broadcast %664 : vector<16x1xi1> to vector<16x32xi1>
    %666 = vector.broadcast %cst_222 : f32 to vector<16x32xf32>
    %667 = arith.select %665, %661, %666 : vector<16x32xi1>, vector<16x32xf32>
    %668 = vector.extract_strided_slice %2 {offsets = [3, 0], sizes = [1, 32], strides = [1, 1]} : vector<9x32xf32> to vector<1x32xf32>
    %669 = vector.shape_cast %668 : vector<1x32xf32> to vector<32xf32>
    %670 = vector.shape_cast %669 : vector<32xf32> to vector<1x32xf32>
    %671 = vector.broadcast %670 : vector<1x32xf32> to vector<16x32xf32>
    %672 = arith.mulf %667, %671 : vector<16x32xf32>
    %673 = arith.addf %660, %672 : vector<16x32xf32>
    %c9_223 = arith.constant 9 : index
    %c0_224 = arith.constant 0 : index
    %674 = vector.load %arg9[%c9_223, %c0_224] : memref<82x32xf32, #tpu.memory_space<vmem>>, vector<16x32xf32>
    %675 = vector.extract_strided_slice %2 {offsets = [4, 0], sizes = [1, 32], strides = [1, 1]} : vector<9x32xf32> to vector<1x32xf32>
    %676 = vector.shape_cast %675 : vector<1x32xf32> to vector<32xf32>
    %677 = vector.shape_cast %676 : vector<32xf32> to vector<1x32xf32>
    %678 = vector.broadcast %677 : vector<1x32xf32> to vector<16x32xf32>
    %679 = arith.mulf %674, %678 : vector<16x32xf32>
    %680 = arith.addf %673, %679 : vector<16x32xf32>
    %c10_225 = arith.constant 10 : index
    %c0_226 = arith.constant 0 : index
    %681 = vector.load %arg9[%c10_225, %c0_226] : memref<82x32xf32, #tpu.memory_space<vmem>>, vector<16x32xf32>
    %c2_i32_227 = arith.constant 2 : i32
    %682 = vector.broadcast %c2_i32_227 : i32 to vector<16x1xi32>
    %683 = arith.cmpi sle, %612, %682 : vector<16x1xi32>
    %cst_228 = arith.constant 0.000000e+00 : f32
    %684 = vector.shape_cast %683 : vector<16x1xi1> to vector<16x1xi1>
    %685 = vector.broadcast %684 : vector<16x1xi1> to vector<16x32xi1>
    %686 = vector.broadcast %cst_228 : f32 to vector<16x32xf32>
    %687 = arith.select %685, %681, %686 : vector<16x32xi1>, vector<16x32xf32>
    %688 = vector.extract_strided_slice %2 {offsets = [5, 0], sizes = [1, 32], strides = [1, 1]} : vector<9x32xf32> to vector<1x32xf32>
    %689 = vector.shape_cast %688 : vector<1x32xf32> to vector<32xf32>
    %690 = vector.shape_cast %689 : vector<32xf32> to vector<1x32xf32>
    %691 = vector.broadcast %690 : vector<1x32xf32> to vector<16x32xf32>
    %692 = arith.mulf %687, %691 : vector<16x32xf32>
    %693 = arith.addf %680, %692 : vector<16x32xf32>
    %c12_229 = arith.constant 12 : index
    %c0_230 = arith.constant 0 : index
    %694 = vector.load %arg9[%c12_229, %c0_230] : memref<82x32xf32, #tpu.memory_space<vmem>>, vector<16x32xf32>
    %c12_i32_231 = arith.constant 12 : i32
    %695 = vector.broadcast %c12_i32_231 : i32 to vector<16x1xi32>
    %696 = arith.cmpi slt, %610, %695 : vector<16x1xi32>
    %c1_i32_232 = arith.constant 1 : i32
    %697 = vector.broadcast %c1_i32_232 : i32 to vector<16x1xi32>
    %698 = arith.cmpi sge, %612, %697 : vector<16x1xi32>
    %699 = arith.andi %696, %698 : vector<16x1xi1>
    %cst_233 = arith.constant 0.000000e+00 : f32
    %700 = vector.shape_cast %699 : vector<16x1xi1> to vector<16x1xi1>
    %701 = vector.broadcast %700 : vector<16x1xi1> to vector<16x32xi1>
    %702 = vector.broadcast %cst_233 : f32 to vector<16x32xf32>
    %703 = arith.select %701, %694, %702 : vector<16x32xi1>, vector<16x32xf32>
    %704 = vector.extract_strided_slice %2 {offsets = [6, 0], sizes = [1, 32], strides = [1, 1]} : vector<9x32xf32> to vector<1x32xf32>
    %705 = vector.shape_cast %704 : vector<1x32xf32> to vector<32xf32>
    %706 = vector.shape_cast %705 : vector<32xf32> to vector<1x32xf32>
    %707 = vector.broadcast %706 : vector<1x32xf32> to vector<16x32xf32>
    %708 = arith.mulf %703, %707 : vector<16x32xf32>
    %709 = arith.addf %693, %708 : vector<16x32xf32>
    %c13_234 = arith.constant 13 : index
    %c0_235 = arith.constant 0 : index
    %710 = vector.load %arg9[%c13_234, %c0_235] : memref<82x32xf32, #tpu.memory_space<vmem>>, vector<16x32xf32>
    %c12_i32_236 = arith.constant 12 : i32
    %711 = vector.broadcast %c12_i32_236 : i32 to vector<16x1xi32>
    %712 = arith.cmpi slt, %610, %711 : vector<16x1xi32>
    %cst_237 = arith.constant 0.000000e+00 : f32
    %713 = vector.shape_cast %712 : vector<16x1xi1> to vector<16x1xi1>
    %714 = vector.broadcast %713 : vector<16x1xi1> to vector<16x32xi1>
    %715 = vector.broadcast %cst_237 : f32 to vector<16x32xf32>
    %716 = arith.select %714, %710, %715 : vector<16x32xi1>, vector<16x32xf32>
    %717 = vector.extract_strided_slice %2 {offsets = [7, 0], sizes = [1, 32], strides = [1, 1]} : vector<9x32xf32> to vector<1x32xf32>
    %718 = vector.shape_cast %717 : vector<1x32xf32> to vector<32xf32>
    %719 = vector.shape_cast %718 : vector<32xf32> to vector<1x32xf32>
    %720 = vector.broadcast %719 : vector<1x32xf32> to vector<16x32xf32>
    %721 = arith.mulf %716, %720 : vector<16x32xf32>
    %722 = arith.addf %709, %721 : vector<16x32xf32>
    %c14_238 = arith.constant 14 : index
    %c0_239 = arith.constant 0 : index
    %723 = vector.load %arg9[%c14_238, %c0_239] : memref<82x32xf32, #tpu.memory_space<vmem>>, vector<16x32xf32>
    %c12_i32_240 = arith.constant 12 : i32
    %724 = vector.broadcast %c12_i32_240 : i32 to vector<16x1xi32>
    %725 = arith.cmpi slt, %610, %724 : vector<16x1xi32>
    %c2_i32_241 = arith.constant 2 : i32
    %726 = vector.broadcast %c2_i32_241 : i32 to vector<16x1xi32>
    %727 = arith.cmpi sle, %612, %726 : vector<16x1xi32>
    %728 = arith.andi %725, %727 : vector<16x1xi1>
    %cst_242 = arith.constant 0.000000e+00 : f32
    %729 = vector.shape_cast %728 : vector<16x1xi1> to vector<16x1xi1>
    %730 = vector.broadcast %729 : vector<16x1xi1> to vector<16x32xi1>
    %731 = vector.broadcast %cst_242 : f32 to vector<16x32xf32>
    %732 = arith.select %730, %723, %731 : vector<16x32xi1>, vector<16x32xf32>
    %733 = vector.extract_strided_slice %2 {offsets = [8, 0], sizes = [1, 32], strides = [1, 1]} : vector<9x32xf32> to vector<1x32xf32>
    %734 = vector.shape_cast %733 : vector<1x32xf32> to vector<32xf32>
    %735 = vector.shape_cast %734 : vector<32xf32> to vector<1x32xf32>
    %736 = vector.broadcast %735 : vector<1x32xf32> to vector<16x32xf32>
    %737 = arith.mulf %732, %736 : vector<16x32xf32>
    %738 = arith.addf %722, %737 : vector<16x32xf32>
    %cst_243 = arith.constant 5.000000e-01 : f32
    %739 = vector.broadcast %cst_243 : f32 to vector<16x32xf32>
    %740 = arith.mulf %739, %738 : vector<16x32xf32>
    %cst_244 = arith.constant 0.707106769 : f32
    %741 = vector.broadcast %cst_244 : f32 to vector<16x32xf32>
    %742 = arith.mulf %738, %741 : vector<16x32xf32>
    %743 = math.erf %742 : vector<16x32xf32>
    %cst_245 = arith.constant 1.000000e+00 : f32
    %744 = vector.broadcast %cst_245 : f32 to vector<16x32xf32>
    %745 = arith.addf %744, %743 : vector<16x32xf32>
    %746 = arith.mulf %740, %745 : vector<16x32xf32>
    %cst_246 = arith.constant dense<0.000000e+00> : vector<16x16xf32>
    %747 = tpu.matmul %746, %4, %cst_246 {dimension_numbers = #tpu.dot_dimension_numbers<[1], [0], [0], [1], [0, 0, 1, 1], [], []>} : vector<16x32xf32>, vector<32x16xf32>, vector<16x16xf32> -> vector<16x16xf32>
    %748 = vector.broadcast %5 : vector<1x16xf32> to vector<16x16xf32>
    %749 = arith.addf %747, %748 : vector<16x16xf32>
    %c1_247 = arith.constant 1 : index
    %c64_248 = arith.constant 64 : index
    %c0_249 = arith.constant 0 : index
    %750 = vector.load %arg8[%c1_247, %c64_248, %c0_249] : memref<2x84x16xf32, #tpu.memory_space<vmem>>, vector<1x16x16xf32>
    %751 = vector.shape_cast %750 : vector<1x16x16xf32> to vector<16x16xf32>
    %752 = vector.shape_cast %749 : vector<16x16xf32> to vector<1x16x16xf32>
    tpu.vector_store %arg8[%c1_247, %c64_248, %c0_249], %752 {strides = array<i32>} : memref<2x84x16xf32, #tpu.memory_space<vmem>>, vector<1x16x16xf32>,
    %c1_250 = arith.constant 1 : index
    %c80_251 = arith.constant 80 : index
    %c0_252 = arith.constant 0 : index
    %753 = vector.load %arg1[%c1_250, %c80_251, %c0_252] : memref<2x84x16xf32, #tpu.memory_space<vmem>>, vector<1x4x16xf32>
    %754 = vector.shape_cast %753 : vector<1x4x16xf32> to vector<4x16xf32>
    %cst_253 = arith.constant dense<0.000000e+00> : vector<4x32xf32>
    %755 = tpu.matmul %754, %0, %cst_253 {dimension_numbers = #tpu.dot_dimension_numbers<[1], [0], [0], [1], [0, 0, 1, 1], [], []>} : vector<4x16xf32>, vector<16x32xf32>, vector<4x32xf32> -> vector<4x32xf32>
    %756 = vector.broadcast %1 : vector<1x32xf32> to vector<4x32xf32>
    %757 = arith.addf %755, %756 : vector<4x32xf32>
    %c9_254 = arith.constant 9 : index
    %c0_255 = arith.constant 0 : index
    %758 = vector.load %arg9[%c9_254, %c0_255] : memref<82x32xf32, #tpu.memory_space<vmem>>, vector<4x32xf32>
    tpu.vector_store %arg9[%c9_254, %c0_255], %757 {strides = array<i32>} : memref<82x32xf32, #tpu.memory_space<vmem>>, vector<4x32xf32>,
    %759 = tpu.iota {dimensions = array<i32: 0>} : vector<4x1xi32>
    %c1_i32_256 = arith.constant 1 : i32
    %760 = vector.broadcast %c1_i32_256 : i32 to vector<4x1xi32>
    %761 = arith.andi %759, %760 : vector<4x1xi32>
    %cst_257 = arith.constant 0.000000e+00 : f32
    %762 = vector.broadcast %cst_257 : f32 to vector<4x32xf32>
    %763 = vector.broadcast %3 : vector<1x32xf32> to vector<4x32xf32>
    %764 = arith.addf %762, %763 : vector<4x32xf32>
    %c6_258 = arith.constant 6 : index
    %c0_259 = arith.constant 0 : index
    %765 = vector.load %arg9[%c6_258, %c0_259] : memref<82x32xf32, #tpu.memory_space<vmem>>, vector<4x32xf32>
    %c2_i32_260 = arith.constant 2 : i32
    %766 = vector.broadcast %c2_i32_260 : i32 to vector<4x1xi32>
    %767 = arith.cmpi sge, %759, %766 : vector<4x1xi32>
    %c1_i32_261 = arith.constant 1 : i32
    %768 = vector.broadcast %c1_i32_261 : i32 to vector<4x1xi32>
    %769 = arith.cmpi sge, %761, %768 : vector<4x1xi32>
    %770 = arith.andi %767, %769 : vector<4x1xi1>
    %cst_262 = arith.constant 0.000000e+00 : f32
    %771 = vector.shape_cast %770 : vector<4x1xi1> to vector<4x1xi1>
    %772 = vector.broadcast %771 : vector<4x1xi1> to vector<4x32xi1>
    %773 = vector.broadcast %cst_262 : f32 to vector<4x32xf32>
    %774 = arith.select %772, %765, %773 : vector<4x32xi1>, vector<4x32xf32>
    %775 = vector.extract_strided_slice %2 {offsets = [0, 0], sizes = [1, 32], strides = [1, 1]} : vector<9x32xf32> to vector<1x32xf32>
    %776 = vector.shape_cast %775 : vector<1x32xf32> to vector<32xf32>
    %777 = vector.shape_cast %776 : vector<32xf32> to vector<1x32xf32>
    %778 = vector.broadcast %777 : vector<1x32xf32> to vector<4x32xf32>
    %779 = arith.mulf %774, %778 : vector<4x32xf32>
    %780 = arith.addf %764, %779 : vector<4x32xf32>
    %c7_263 = arith.constant 7 : index
    %c0_264 = arith.constant 0 : index
    %781 = vector.load %arg9[%c7_263, %c0_264] : memref<82x32xf32, #tpu.memory_space<vmem>>, vector<4x32xf32>
    %c2_i32_265 = arith.constant 2 : i32
    %782 = vector.broadcast %c2_i32_265 : i32 to vector<4x1xi32>
    %783 = arith.cmpi sge, %759, %782 : vector<4x1xi32>
    %cst_266 = arith.constant 0.000000e+00 : f32
    %784 = vector.shape_cast %783 : vector<4x1xi1> to vector<4x1xi1>
    %785 = vector.broadcast %784 : vector<4x1xi1> to vector<4x32xi1>
    %786 = vector.broadcast %cst_266 : f32 to vector<4x32xf32>
    %787 = arith.select %785, %781, %786 : vector<4x32xi1>, vector<4x32xf32>
    %788 = vector.extract_strided_slice %2 {offsets = [1, 0], sizes = [1, 32], strides = [1, 1]} : vector<9x32xf32> to vector<1x32xf32>
    %789 = vector.shape_cast %788 : vector<1x32xf32> to vector<32xf32>
    %790 = vector.shape_cast %789 : vector<32xf32> to vector<1x32xf32>
    %791 = vector.broadcast %790 : vector<1x32xf32> to vector<4x32xf32>
    %792 = arith.mulf %787, %791 : vector<4x32xf32>
    %793 = arith.addf %780, %792 : vector<4x32xf32>
    %c8_267 = arith.constant 8 : index
    %c0_268 = arith.constant 0 : index
    %794 = vector.load %arg9[%c8_267, %c0_268] : memref<82x32xf32, #tpu.memory_space<vmem>>, vector<4x32xf32>
    %c2_i32_269 = arith.constant 2 : i32
    %795 = vector.broadcast %c2_i32_269 : i32 to vector<4x1xi32>
    %796 = arith.cmpi sge, %759, %795 : vector<4x1xi32>
    %c0_i32_270 = arith.constant 0 : i32
    %797 = vector.broadcast %c0_i32_270 : i32 to vector<4x1xi32>
    %798 = arith.cmpi sle, %761, %797 : vector<4x1xi32>
    %799 = arith.andi %796, %798 : vector<4x1xi1>
    %cst_271 = arith.constant 0.000000e+00 : f32
    %800 = vector.shape_cast %799 : vector<4x1xi1> to vector<4x1xi1>
    %801 = vector.broadcast %800 : vector<4x1xi1> to vector<4x32xi1>
    %802 = vector.broadcast %cst_271 : f32 to vector<4x32xf32>
    %803 = arith.select %801, %794, %802 : vector<4x32xi1>, vector<4x32xf32>
    %804 = vector.extract_strided_slice %2 {offsets = [2, 0], sizes = [1, 32], strides = [1, 1]} : vector<9x32xf32> to vector<1x32xf32>
    %805 = vector.shape_cast %804 : vector<1x32xf32> to vector<32xf32>
    %806 = vector.shape_cast %805 : vector<32xf32> to vector<1x32xf32>
    %807 = vector.broadcast %806 : vector<1x32xf32> to vector<4x32xf32>
    %808 = arith.mulf %803, %807 : vector<4x32xf32>
    %809 = arith.addf %793, %808 : vector<4x32xf32>
    %c8_272 = arith.constant 8 : index
    %c0_273 = arith.constant 0 : index
    %810 = vector.load %arg9[%c8_272, %c0_273] : memref<82x32xf32, #tpu.memory_space<vmem>>, vector<4x32xf32>
    %c1_i32_274 = arith.constant 1 : i32
    %811 = vector.broadcast %c1_i32_274 : i32 to vector<4x1xi32>
    %812 = arith.cmpi sge, %761, %811 : vector<4x1xi32>
    %cst_275 = arith.constant 0.000000e+00 : f32
    %813 = vector.shape_cast %812 : vector<4x1xi1> to vector<4x1xi1>
    %814 = vector.broadcast %813 : vector<4x1xi1> to vector<4x32xi1>
    %815 = vector.broadcast %cst_275 : f32 to vector<4x32xf32>
    %816 = arith.select %814, %810, %815 : vector<4x32xi1>, vector<4x32xf32>
    %817 = vector.extract_strided_slice %2 {offsets = [3, 0], sizes = [1, 32], strides = [1, 1]} : vector<9x32xf32> to vector<1x32xf32>
    %818 = vector.shape_cast %817 : vector<1x32xf32> to vector<32xf32>
    %819 = vector.shape_cast %818 : vector<32xf32> to vector<1x32xf32>
    %820 = vector.broadcast %819 : vector<1x32xf32> to vector<4x32xf32>
    %821 = arith.mulf %816, %820 : vector<4x32xf32>
    %822 = arith.addf %809, %821 : vector<4x32xf32>
    %c9_276 = arith.constant 9 : index
    %c0_277 = arith.constant 0 : index
    %823 = vector.load %arg9[%c9_276, %c0_277] : memref<82x32xf32, #tpu.memory_space<vmem>>, vector<4x32xf32>
    %824 = vector.extract_strided_slice %2 {offsets = [4, 0], sizes = [1, 32], strides = [1, 1]} : vector<9x32xf32> to vector<1x32xf32>
    %825 = vector.shape_cast %824 : vector<1x32xf32> to vector<32xf32>
    %826 = vector.shape_cast %825 : vector<32xf32> to vector<1x32xf32>
    %827 = vector.broadcast %826 : vector<1x32xf32> to vector<4x32xf32>
    %828 = arith.mulf %823, %827 : vector<4x32xf32>
    %829 = arith.addf %822, %828 : vector<4x32xf32>
    %c10_278 = arith.constant 10 : index
    %c0_279 = arith.constant 0 : index
    %830 = vector.load %arg9[%c10_278, %c0_279] : memref<82x32xf32, #tpu.memory_space<vmem>>, vector<4x32xf32>
    %c0_i32_280 = arith.constant 0 : i32
    %831 = vector.broadcast %c0_i32_280 : i32 to vector<4x1xi32>
    %832 = arith.cmpi sle, %761, %831 : vector<4x1xi32>
    %cst_281 = arith.constant 0.000000e+00 : f32
    %833 = vector.shape_cast %832 : vector<4x1xi1> to vector<4x1xi1>
    %834 = vector.broadcast %833 : vector<4x1xi1> to vector<4x32xi1>
    %835 = vector.broadcast %cst_281 : f32 to vector<4x32xf32>
    %836 = arith.select %834, %830, %835 : vector<4x32xi1>, vector<4x32xf32>
    %837 = vector.extract_strided_slice %2 {offsets = [5, 0], sizes = [1, 32], strides = [1, 1]} : vector<9x32xf32> to vector<1x32xf32>
    %838 = vector.shape_cast %837 : vector<1x32xf32> to vector<32xf32>
    %839 = vector.shape_cast %838 : vector<32xf32> to vector<1x32xf32>
    %840 = vector.broadcast %839 : vector<1x32xf32> to vector<4x32xf32>
    %841 = arith.mulf %836, %840 : vector<4x32xf32>
    %842 = arith.addf %829, %841 : vector<4x32xf32>
    %c10_282 = arith.constant 10 : index
    %c0_283 = arith.constant 0 : index
    %843 = vector.load %arg9[%c10_282, %c0_283] : memref<82x32xf32, #tpu.memory_space<vmem>>, vector<4x32xf32>
    %c2_i32_284 = arith.constant 2 : i32
    %844 = vector.broadcast %c2_i32_284 : i32 to vector<4x1xi32>
    %845 = arith.cmpi slt, %759, %844 : vector<4x1xi32>
    %c1_i32_285 = arith.constant 1 : i32
    %846 = vector.broadcast %c1_i32_285 : i32 to vector<4x1xi32>
    %847 = arith.cmpi sge, %761, %846 : vector<4x1xi32>
    %848 = arith.andi %845, %847 : vector<4x1xi1>
    %cst_286 = arith.constant 0.000000e+00 : f32
    %849 = vector.shape_cast %848 : vector<4x1xi1> to vector<4x1xi1>
    %850 = vector.broadcast %849 : vector<4x1xi1> to vector<4x32xi1>
    %851 = vector.broadcast %cst_286 : f32 to vector<4x32xf32>
    %852 = arith.select %850, %843, %851 : vector<4x32xi1>, vector<4x32xf32>
    %853 = vector.extract_strided_slice %2 {offsets = [6, 0], sizes = [1, 32], strides = [1, 1]} : vector<9x32xf32> to vector<1x32xf32>
    %854 = vector.shape_cast %853 : vector<1x32xf32> to vector<32xf32>
    %855 = vector.shape_cast %854 : vector<32xf32> to vector<1x32xf32>
    %856 = vector.broadcast %855 : vector<1x32xf32> to vector<4x32xf32>
    %857 = arith.mulf %852, %856 : vector<4x32xf32>
    %858 = arith.addf %842, %857 : vector<4x32xf32>
    %c11_287 = arith.constant 11 : index
    %c0_288 = arith.constant 0 : index
    %859 = vector.load %arg9[%c11_287, %c0_288] : memref<82x32xf32, #tpu.memory_space<vmem>>, vector<4x32xf32>
    %c2_i32_289 = arith.constant 2 : i32
    %860 = vector.broadcast %c2_i32_289 : i32 to vector<4x1xi32>
    %861 = arith.cmpi slt, %759, %860 : vector<4x1xi32>
    %cst_290 = arith.constant 0.000000e+00 : f32
    %862 = vector.shape_cast %861 : vector<4x1xi1> to vector<4x1xi1>
    %863 = vector.broadcast %862 : vector<4x1xi1> to vector<4x32xi1>
    %864 = vector.broadcast %cst_290 : f32 to vector<4x32xf32>
    %865 = arith.select %863, %859, %864 : vector<4x32xi1>, vector<4x32xf32>
    %866 = vector.extract_strided_slice %2 {offsets = [7, 0], sizes = [1, 32], strides = [1, 1]} : vector<9x32xf32> to vector<1x32xf32>
    %867 = vector.shape_cast %866 : vector<1x32xf32> to vector<32xf32>
    %868 = vector.shape_cast %867 : vector<32xf32> to vector<1x32xf32>
    %869 = vector.broadcast %868 : vector<1x32xf32> to vector<4x32xf32>
    %870 = arith.mulf %865, %869 : vector<4x32xf32>
    %871 = arith.addf %858, %870 : vector<4x32xf32>
    %c12_291 = arith.constant 12 : index
    %c0_292 = arith.constant 0 : index
    %872 = vector.load %arg9[%c12_291, %c0_292] : memref<82x32xf32, #tpu.memory_space<vmem>>, vector<4x32xf32>
    %c2_i32_293 = arith.constant 2 : i32
    %873 = vector.broadcast %c2_i32_293 : i32 to vector<4x1xi32>
    %874 = arith.cmpi slt, %759, %873 : vector<4x1xi32>
    %c0_i32_294 = arith.constant 0 : i32
    %875 = vector.broadcast %c0_i32_294 : i32 to vector<4x1xi32>
    %876 = arith.cmpi sle, %761, %875 : vector<4x1xi32>
    %877 = arith.andi %874, %876 : vector<4x1xi1>
    %cst_295 = arith.constant 0.000000e+00 : f32
    %878 = vector.shape_cast %877 : vector<4x1xi1> to vector<4x1xi1>
    %879 = vector.broadcast %878 : vector<4x1xi1> to vector<4x32xi1>
    %880 = vector.broadcast %cst_295 : f32 to vector<4x32xf32>
    %881 = arith.select %879, %872, %880 : vector<4x32xi1>, vector<4x32xf32>
    %882 = vector.extract_strided_slice %2 {offsets = [8, 0], sizes = [1, 32], strides = [1, 1]} : vector<9x32xf32> to vector<1x32xf32>
    %883 = vector.shape_cast %882 : vector<1x32xf32> to vector<32xf32>
    %884 = vector.shape_cast %883 : vector<32xf32> to vector<1x32xf32>
    %885 = vector.broadcast %884 : vector<1x32xf32> to vector<4x32xf32>
    %886 = arith.mulf %881, %885 : vector<4x32xf32>
    %887 = arith.addf %871, %886 : vector<4x32xf32>
    %cst_296 = arith.constant 5.000000e-01 : f32
    %888 = vector.broadcast %cst_296 : f32 to vector<4x32xf32>
    %889 = arith.mulf %888, %887 : vector<4x32xf32>
    %cst_297 = arith.constant 0.707106769 : f32
    %890 = vector.broadcast %cst_297 : f32 to vector<4x32xf32>
    %891 = arith.mulf %887, %890 : vector<4x32xf32>
    %892 = math.erf %891 : vector<4x32xf32>
    %cst_298 = arith.constant 1.000000e+00 : f32
    %893 = vector.broadcast %cst_298 : f32 to vector<4x32xf32>
    %894 = arith.addf %893, %892 : vector<4x32xf32>
    %895 = arith.mulf %889, %894 : vector<4x32xf32>
    %cst_299 = arith.constant dense<0.000000e+00> : vector<4x16xf32>
    %896 = tpu.matmul %895, %4, %cst_299 {dimension_numbers = #tpu.dot_dimension_numbers<[1], [0], [0], [1], [0, 0, 1, 1], [], []>} : vector<4x32xf32>, vector<32x16xf32>, vector<4x16xf32> -> vector<4x16xf32>
    %897 = vector.broadcast %5 : vector<1x16xf32> to vector<4x16xf32>
    %898 = arith.addf %896, %897 : vector<4x16xf32>
    %c1_300 = arith.constant 1 : index
    %c80_301 = arith.constant 80 : index
    %c0_302 = arith.constant 0 : index
    %899 = vector.load %arg8[%c1_300, %c80_301, %c0_302] : memref<2x84x16xf32, #tpu.memory_space<vmem>>, vector<1x4x16xf32>
    %900 = vector.shape_cast %899 : vector<1x4x16xf32> to vector<4x16xf32>
    %901 = vector.shape_cast %898 : vector<4x16xf32> to vector<1x4x16xf32>
    tpu.vector_store %arg8[%c1_300, %c80_301, %c0_302], %901 {strides = array<i32>} : memref<2x84x16xf32, #tpu.memory_space<vmem>>, vector<1x4x16xf32>,
    return
  }
  func.func @transform_0(%arg0: i32) -> (i32, i32, i32) {
    %c0_i32 = arith.constant 0 : i32
    %c0_i32_0 = arith.constant 0 : i32
    %c0_i32_1 = arith.constant 0 : i32
    return %arg0, %c0_i32, %c0_i32_0 : i32, i32, i32
  }
  func.func @transform_1(%arg0: i32) -> (i32, i32) {
    %c0_i32 = arith.constant 0 : i32
    %c0_i32_0 = arith.constant 0 : i32
    %c0_i32_1 = arith.constant 0 : i32
    return %c0_i32, %c0_i32_0 : i32, i32
  }
  func.func @transform_2(%arg0: i32) -> (i32, i32) {
    %c0_i32 = arith.constant 0 : i32
    %c0_i32_0 = arith.constant 0 : i32
    %c0_i32_1 = arith.constant 0 : i32
    return %c0_i32, %c0_i32_0 : i32, i32
  }
  func.func @transform_3(%arg0: i32) -> (i32, i32) {
    %c0_i32 = arith.constant 0 : i32
    %c0_i32_0 = arith.constant 0 : i32
    %c0_i32_1 = arith.constant 0 : i32
    return %c0_i32, %c0_i32_0 : i32, i32
  }
  func.func @transform_4(%arg0: i32) -> (i32, i32) {
    %c0_i32 = arith.constant 0 : i32
    %c0_i32_0 = arith.constant 0 : i32
    %c0_i32_1 = arith.constant 0 : i32
    return %c0_i32, %c0_i32_0 : i32, i32
  }
  func.func @transform_5(%arg0: i32) -> (i32, i32) {
    %c0_i32 = arith.constant 0 : i32
    %c0_i32_0 = arith.constant 0 : i32
    %c0_i32_1 = arith.constant 0 : i32
    return %c0_i32, %c0_i32_0 : i32, i32
  }
  func.func @transform_6(%arg0: i32) -> (i32, i32) {
    %c0_i32 = arith.constant 0 : i32
    %c0_i32_0 = arith.constant 0 : i32
    %c0_i32_1 = arith.constant 0 : i32
    return %c0_i32, %c0_i32_0 : i32, i32
  }
  func.func @transform_7(%arg0: i32) -> (i32, i32, i32) {
    %c0_i32 = arith.constant 0 : i32
    %c0_i32_0 = arith.constant 0 : i32
    %c0_i32_1 = arith.constant 0 : i32
    return %arg0, %c0_i32, %c0_i32_0 : i32, i32, i32
  }
}

</mosaic_0001>

<llo_original>
// kernel: tpu_custom_call.1
$region0: #{tpu_custom_call.1}
  #allocation0 [shape = 'u32[]', space=smem, size = 0x4, offset = 0x4, fixed_abs, tag = 'smem constant byte address 0x4 - core index']
  #allocation1 [shape = 'u32[144,128]{1,0:T(1,128)}', space=vmem, size = 0x12000, scoped, tag = 'internal scratch']
  #allocation2 [shape = 'f32[82,32]{1,0:T(8,128)}', space=vmem, size = 0xb000, scoped, tag = 'scratch operand']
  %s0 = inlined_call_operand.vmem [shape: f32[2,84,16], index: 0, kind: input, shape index: {}]
  %s1 = inlined_call_operand.vmem [shape: f32[16,32], index: 1, kind: input, shape index: {}]
  %s2 = inlined_call_operand.vmem [shape: f32[1,32], index: 2, kind: input, shape index: {}]
  %s3 = inlined_call_operand.vmem [shape: f32[9,32], index: 3, kind: input, shape index: {}]
  %s4 = inlined_call_operand.vmem [shape: f32[1,32], index: 4, kind: input, shape index: {}]
  %s5 = inlined_call_operand.vmem [shape: f32[32,16], index: 5, kind: input, shape index: {}]
  %s6 = inlined_call_operand.vmem [shape: f32[1,16], index: 6, kind: input, shape index: {}]
  %s7 = inlined_call_operand.vmem [shape: f32[2,84,16], index: 7, kind: output, shape index: {}]
  %s8 = sld [smem:[#allocation0]]
  $region38: #{tpu_custom_call.1} parent=0
    _
  %s10 = ssub.s32 1, %s8
  %s11 = scalar_select 0, %s10, %s8
  // Predicated region
  $region2: #{tpu_custom_call.1} parent=0 // pred_check
    _
  $region3: #{tpu_custom_call.1} parent=0 // pred_check_branch
    %13 = sbr.rel (0) target = $region5
  $region4: #{tpu_custom_call.1} parent=0 // pred_region
    _
  $region5: #{tpu_custom_call.1} parent=0 // pred_fallthru
    _
  // Predicated region
  $region6: #{tpu_custom_call.1} parent=0 // pred_check
    _
  $region7: #{tpu_custom_call.1} parent=0 // pred_check_branch
    %15 = sbr.rel (0) target = $region9
  $region8: #{tpu_custom_call.1} parent=0 // pred_region
    _
  $region9: #{tpu_custom_call.1} parent=0 // pred_fallthru
    _
  // Predicated region
  $region10: #{tpu_custom_call.1} parent=0 // pred_check
    _
  $region11: #{tpu_custom_call.1} parent=0 // pred_check_branch
    %17 = sbr.rel (0) target = $region13
  $region12: #{tpu_custom_call.1} parent=0 // pred_region
    _
  $region13: #{tpu_custom_call.1} parent=0 // pred_fallthru
    _
  // Predicated region
  $region14: #{tpu_custom_call.1} parent=0 // pred_check
    _
  $region15: #{tpu_custom_call.1} parent=0 // pred_check_branch
    %19 = sbr.rel (0) target = $region17
  $region16: #{tpu_custom_call.1} parent=0 // pred_region
    _
  $region17: #{tpu_custom_call.1} parent=0 // pred_fallthru
    _
  // Predicated region
  $region18: #{tpu_custom_call.1} parent=0 // pred_check
    _
  $region19: #{tpu_custom_call.1} parent=0 // pred_check_branch
    %21 = sbr.rel (0) target = $region21
  $region20: #{tpu_custom_call.1} parent=0 // pred_region
    _
  $region21: #{tpu_custom_call.1} parent=0 // pred_fallthru
    _
  // Predicated region
  $region22: #{tpu_custom_call.1} parent=0 // pred_check
    _
  $region23: #{tpu_custom_call.1} parent=0 // pred_check_branch
    %23 = sbr.rel (0) target = $region25
  $region24: #{tpu_custom_call.1} parent=0 // pred_region
    _
  $region25: #{tpu_custom_call.1} parent=0 // pred_fallthru
    _
  // Predicated region
  $region26: #{tpu_custom_call.1} parent=0 // pred_check
    _
  $region27: #{tpu_custom_call.1} parent=0 // pred_check_branch
    %25 = sbr.rel (0) target = $region29
  $region28: #{tpu_custom_call.1} parent=0 // pred_region
    _
  $region29: #{tpu_custom_call.1} parent=0 // pred_fallthru
    _
  %v26 = vld [vmem:[%s1] sm:$0xff]
  %v27 = vld [vmem:[%s1 + $0x8] sm:$0xff]
  %v28 = vld [vmem:[%s2] sm:$0x1]
  %v29 = vld [vmem:[%s3] sm:$0xff]
  %v30 = vld [vmem:[%s3 + $0x8] sm:$0x1]
  %v31 = vld [vmem:[%s4] sm:$0x1]
  %v32 = vld [vmem:[%s5] sm:$0xff]
  %v33 = vld [vmem:[%s5 + $0x8] sm:$0xff]
  %v34 = vld [vmem:[%s5 + $0x10] sm:$0xff]
  %v35 = vld [vmem:[%s5 + $0x18] sm:$0xff]
  %v36 = vld [vmem:[%s6] sm:$0x1]
  %vm37 = vcmask 261120
  %38 = vst.msk [vmem:[#allocation2] sm:$0xff] %vm37, 0.0
  %39 = vst.msk [vmem:[#allocation2 + $0x8] sm:$0xff] %vm37, 0.0
  %40 = vst.msk [vmem:[#allocation2 + $0x10] sm:$0xff] %vm37, 0.0
  %41 = vst.msk [vmem:[#allocation2 + $0x18] sm:$0xff] %vm37, 0.0
  %42 = vst.msk [vmem:[#allocation2 + $0x20] sm:$0xff] %vm37, 0.0
  %43 = vst.msk [vmem:[#allocation2 + $0x28] sm:$0xff] %vm37, 0.0
  %44 = vst.msk [vmem:[#allocation2 + $0x30] sm:$0xff] %vm37, 0.0
  %45 = vst.msk [vmem:[#allocation2 + $0x38] sm:$0xff] %vm37, 0.0
  %46 = vst.msk [vmem:[#allocation2 + $0x40] sm:$0xff] %vm37, 0.0
  %47 = vst.msk [vmem:[#allocation2 + $0x48] sm:$0xff] %vm37, 0.0
  %vm48 = vcmask 254976
  %49 = vst.msk [vmem:[#allocation2 + $0x50] sm:$0x3] %vm48, 0.0
  %v50 = vld [vmem:[%s0] sm:$0xff]
  %v51 = vld [vmem:[%s0 + $0x8] sm:$0xff]
  %v52 = vld [vmem:[%s0 + $0x10] sm:$0xff]
  %v53 = vld [vmem:[%s0 + $0x18] sm:$0xff]
  %v54 = vld [vmem:[%s0 + $0x20] sm:$0xff]
  %v55 = vld [vmem:[%s0 + $0x28] sm:$0xff]
  %v56 = vld [vmem:[%s0 + $0x30] sm:$0xff]
  %v57 = vld [vmem:[%s0 + $0x38] sm:$0xff]
  %v59 = vlaneseq
  %v60 = vshrl.u32 %v59, 7
  %v61 = vsub.s32 0, %v60
  %v62 = vrot.slane %v28, %v61
  %vm64 = vcmask 130048
  %v66 = vsel %vm64, %v50, 0
  %v69 = vsel %vm64, %v51, 0
  %v72 = vsel %vm64, %v52, 0
  %v75 = vsel %vm64, %v53, 0
  %v78 = vsel %vm64, %v54, 0
  %v81 = vsel %vm64, %v55, 0
  %v84 = vsel %vm64, %v56, 0
  %v87 = vsel %vm64, %v57, 0
  %89 = vmatprep.subr.mxu0 0.0
  %90 = vmatpush1.msra.mxu0 0.0
  %91 = vmatprep.subr.mxu0 0.0
  %92 = vmatpush1.msra.mxu0 0.0
  %93 = vmatprep.subr.mxu0 0.0
  %94 = vmatpush1.msra.mxu0 0.0
  %95 = vmatprep.subr.mxu0 0.0
  %96 = vmatpush1.msra.mxu0 0.0
  %97 = vmatprep.subr.mxu0 0.0
  %98 = vmatpush1.msra.mxu0 0.0
  %99 = vmatprep.subr.mxu0 0.0
  %100 = vmatpush1.msra.mxu0 0.0
  %101 = vmatprep.subr.mxu0 0.0
  %102 = vmatpush1.msra.mxu0 0.0
  %103 = vmatprep.subr.mxu0 0.0
  %104 = vmatpush1.msra.mxu0 0.0
  %105 = vmatprep.subr.mxu0 0.0
  %106 = vmatpush1.msra.mxu0 0.0
  %107 = vmatprep.subr.mxu0 0.0
  %108 = vmatpush1.msra.mxu0 0.0
  %109 = vmatprep.subr.mxu0 0.0
  %110 = vmatpush1.msra.mxu0 0.0
  %111 = vmatprep.subr.mxu0 0.0
  %112 = vmatpush1.msra.mxu0 0.0
  %113 = vmatprep.subr.mxu0 0.0
  %114 = vmatpush1.msra.mxu0 0.0
  %115 = vmatprep.subr.mxu0 0.0
  %116 = vmatpush1.msra.mxu0 0.0
  %117 = vmatprep.subr.mxu0 0.0
  %118 = vmatpush1.msra.mxu0 %v27
  %119 = vmatprep.subr.mxu0 0.0
  %120 = vmatpush1.msra.mxu0 %v26
  %121 = vmatprep.subr.mxu0 0.0
  %122 = vmatpush2.msra.mxu0 0.0
  %123 = vmatprep.subr.mxu0 0.0
  %124 = vmatpush2.msra.mxu0 0.0
  %125 = vmatprep.subr.mxu0 0.0
  %126 = vmatpush2.msra.mxu0 0.0
  %127 = vmatprep.subr.mxu0 0.0
  %128 = vmatpush2.msra.mxu0 0.0
  %129 = vmatprep.subr.mxu0 0.0
  %130 = vmatpush2.msra.mxu0 0.0
  %131 = vmatprep.subr.mxu0 0.0
  %132 = vmatpush2.msra.mxu0 0.0
  %133 = vmatprep.subr.mxu0 0.0
  %134 = vmatpush2.msra.mxu0 0.0
  %135 = vmatprep.subr.mxu0 0.0
  %136 = vmatpush2.msra.mxu0 0.0
  %137 = vmatprep.subr.mxu0 0.0
  %138 = vmatpush2.msra.mxu0 0.0
  %139 = vmatprep.subr.mxu0 0.0
  %140 = vmatpush2.msra.mxu0 0.0
  %141 = vmatprep.subr.mxu0 0.0
  %142 = vmatpush2.msra.mxu0 0.0
  %143 = vmatprep.subr.mxu0 0.0
  %144 = vmatpush2.msra.mxu0 0.0
  %145 = vmatprep.subr.mxu0 0.0
  %146 = vmatpush2.msra.mxu0 0.0
  %147 = vmatprep.subr.mxu0 0.0
  %148 = vmatpush2.msra.mxu0 0.0
  %149 = vmatprep.subr.mxu0 0.0
  %150 = vmatpush2.msra.mxu0 0.0
  %151 = vmatprep.subr.mxu0 0.0
  %152 = vmatpush2.msra.mxu0 0.0
  %153 = vmatprep.mubr.f32.mxu0 0.0
  %154 = vmatmul.mubr.f32.gmra.mxu0 %v66
  %v155 = vpop.f32.mrf.mxu0
  %v156 = vadd.f32 %v62, %v155
  %v157 = vpop.f32.mrf.mxu0
  %158 = vmatprep.mubr.f32.mxu0 0.0
  %159 = vmatmul.mubr.f32.gmra.mxu0 %v69
  %v160 = vpop.f32.mrf.mxu0
  %v161 = vadd.f32 %v62, %v160
  %v162 = vpop.f32.mrf.mxu0
  %163 = vmatprep.mubr.f32.mxu0 0.0
  %164 = vmatmul.mubr.f32.gmra.mxu0 %v72
  %v165 = vpop.f32.mrf.mxu0
  %v166 = vadd.f32 %v62, %v165
  %v167 = vpop.f32.mrf.mxu0
  %168 = vmatprep.mubr.f32.mxu0 0.0
  %169 = vmatmul.mubr.f32.gmra.mxu0 %v75
  %v170 = vpop.f32.mrf.mxu0
  %v171 = vadd.f32 %v62, %v170
  %v172 = vpop.f32.mrf.mxu0
  %173 = vmatprep.mubr.f32.mxu0 0.0
  %174 = vmatmul.mubr.f32.gmra.mxu0 %v78
  %v175 = vpop.f32.mrf.mxu0
  %v176 = vadd.f32 %v62, %v175
  %v177 = vpop.f32.mrf.mxu0
  %178 = vmatprep.mubr.f32.mxu0 0.0
  %179 = vmatmul.mubr.f32.gmra.mxu0 %v81
  %v180 = vpop.f32.mrf.mxu0
  %v181 = vadd.f32 %v62, %v180
  %v182 = vpop.f32.mrf.mxu0
  %183 = vmatprep.mubr.f32.mxu0 0.0
  %184 = vmatmul.mubr.f32.gmra.mxu0 %v84
  %v185 = vpop.f32.mrf.mxu0
  %v186 = vadd.f32 %v62, %v185
  %v187 = vpop.f32.mrf.mxu0
  %188 = vmatprep.mubr.f32.mxu0 0.0
  %189 = vmatmul.mubr.f32.gmra.mxu0 %v87
  %v190 = vpop.f32.mrf.mxu0
  %v191 = vadd.f32 %v62, %v190
  %v192 = vpop.f32.mrf.mxu0
  %193 = vdwg.mxu0
  %194 = vst.msk [vmem:[#allocation2 + $0x9] sm:$0xff] %vm37, %v156
  %195 = vst.msk [vmem:[#allocation2 + $0x11] sm:$0xff] %vm37, %v161
  %196 = vst.msk [vmem:[#allocation2 + $0x19] sm:$0xff] %vm37, %v166
  %197 = vst.msk [vmem:[#allocation2 + $0x21] sm:$0xff] %vm37, %v171
  %198 = vst.msk [vmem:[#allocation2 + $0x29] sm:$0xff] %vm37, %v176
  %199 = vst.msk [vmem:[#allocation2 + $0x31] sm:$0xff] %vm37, %v181
  %200 = vst.msk [vmem:[#allocation2 + $0x39] sm:$0xff] %vm37, %v186
  %201 = vst.msk [vmem:[#allocation2 + $0x41] sm:$0xff] %vm37, %v191
  %v202 = vlaneseq
  %v203 = vshrl.u32 %v202, 7
  %v204 = vadd.s32 %v203, 8
  %v205 = vadd.s32 %v203, 16
  %v206 = vadd.s32 %v203, 24
  %v207 = vadd.s32 %v203, 32
  %v208 = vadd.s32 %v203, 40
  %v209 = vadd.s32 %v203, 48
  %v210 = vadd.s32 %v203, 56
  %v211 = vand.u32 %v203, 7
  %v212 = vand.u32 %v204, 7
  %v213 = vand.u32 %v205, 7
  %v214 = vand.u32 %v206, 7
  %v215 = vand.u32 %v207, 7
  %v216 = vand.u32 %v208, 7
  %v217 = vand.u32 %v209, 7
  %v218 = vand.u32 %v210, 7
  %v220 = vlaneseq
  %v221 = vshrl.u32 %v220, 7
  %v222 = vsub.s32 0, %v221
  %v223 = vrot.slane %v31, %v222
  %v225 = vadd.f32 %v223, 0.0
  %v226 = vld [vmem:[#allocation2] sm:$0xff]
  %v227 = vld [vmem:[#allocation2 + $0x8] sm:$0xff]
  %v228 = vld [vmem:[#allocation2 + $0x10] sm:$0xff]
  %v229 = vld [vmem:[#allocation2 + $0x18] sm:$0xff]
  %v230 = vld [vmem:[#allocation2 + $0x20] sm:$0xff]
  %v231 = vld [vmem:[#allocation2 + $0x28] sm:$0xff]
  %v232 = vld [vmem:[#allocation2 + $0x30] sm:$0xff]
  %v233 = vld [vmem:[#allocation2 + $0x38] sm:$0xff]
  %vm234 = vcmp.ge.s32.totalorder %v203, 8
  %vm235 = vcmp.ge.s32.totalorder %v204, 8
  %vm236 = vcmp.ge.s32.totalorder %v205, 8
  %vm237 = vcmp.ge.s32.totalorder %v206, 8
  %vm238 = vcmp.ge.s32.totalorder %v207, 8
  %vm239 = vcmp.ge.s32.totalorder %v208, 8
  %vm240 = vcmp.ge.s32.totalorder %v209, 8
  %vm241 = vcmp.ge.s32.totalorder %v210, 8
  %vm242 = vcmp.ge.s32.totalorder %v211, 1
  %vm243 = vcmp.ge.s32.totalorder %v212, 1
  %vm244 = vcmp.ge.s32.totalorder %v213, 1
  %vm245 = vcmp.ge.s32.totalorder %v214, 1
  %vm246 = vcmp.ge.s32.totalorder %v215, 1
  %vm247 = vcmp.ge.s32.totalorder %v216, 1
  %vm248 = vcmp.ge.s32.totalorder %v217, 1
  %vm249 = vcmp.ge.s32.totalorder %v218, 1
  %vm250 = vmand %vm234, %vm242
  %vm251 = vmand %vm235, %vm243
  %vm252 = vmand %vm236, %vm244
  %vm253 = vmand %vm237, %vm245
  %vm254 = vmand %vm238, %vm246
  %vm255 = vmand %vm239, %vm247
  %vm256 = vmand %vm240, %vm248
  %vm257 = vmand %vm241, %vm249
  %v258 = vsel %vm250, 1, 0
  %v259 = vsel %vm251, 1, 0
  %v260 = vsel %vm252, 1, 0
  %v261 = vsel %vm253, 1, 0
  %v262 = vsel %vm254, 1, 0
  %v263 = vsel %vm255, 1, 0
  %v264 = vsel %vm256, 1, 0
  %v265 = vsel %vm257, 1, 0
  %vm266 = vcmp.eq.s32.totalorder %v258, 1
  %vm267 = vcmp.eq.s32.totalorder %v259, 1
  %vm268 = vcmp.eq.s32.totalorder %v260, 1
  %vm269 = vcmp.eq.s32.totalorder %v261, 1
  %vm270 = vcmp.eq.s32.totalorder %v262, 1
  %vm271 = vcmp.eq.s32.totalorder %v263, 1
  %vm272 = vcmp.eq.s32.totalorder %v264, 1
  %vm273 = vcmp.eq.s32.totalorder %v265, 1
  %v274 = vsel %vm266, %v226, 0.0
  %v275 = vsel %vm267, %v227, 0.0
  %v276 = vsel %vm268, %v228, 0.0
  %v277 = vsel %vm269, %v229, 0.0
  %v278 = vsel %vm270, %v230, 0.0
  %v279 = vsel %vm271, %v231, 0.0
  %v280 = vsel %vm272, %v232, 0.0
  %v281 = vsel %vm273, %v233, 0.0
  %v282 = vlaneseq
  %v283 = vshrl.u32 %v282, 7
  %v284 = vsub.s32 0, %v283
  %v285 = vrot.slane %v29, %v284
  %v286 = vmul.f32 %v274, %v285
  %v287 = vmul.f32 %v275, %v285
  %v288 = vmul.f32 %v276, %v285
  %v289 = vmul.f32 %v277, %v285
  %v290 = vmul.f32 %v278, %v285
  %v291 = vmul.f32 %v279, %v285
  %v292 = vmul.f32 %v280, %v285
  %v293 = vmul.f32 %v281, %v285
  %v294 = vadd.f32 %v225, %v286
  %v295 = vadd.f32 %v225, %v287
  %v296 = vadd.f32 %v225, %v288
  %v297 = vadd.f32 %v225, %v289
  %v298 = vadd.f32 %v225, %v290
  %v299 = vadd.f32 %v225, %v291
  %v300 = vadd.f32 %v225, %v292
  %v301 = vadd.f32 %v225, %v293
  %v302 = vld [vmem:[#allocation2 + $0x1] sm:$0xff]
  %v303 = vld [vmem:[#allocation2 + $0x9] sm:$0xff]
  %v304 = vld [vmem:[#allocation2 + $0x11] sm:$0xff]
  %v305 = vld [vmem:[#allocation2 + $0x19] sm:$0xff]
  %v306 = vld [vmem:[#allocation2 + $0x21] sm:$0xff]
  %v307 = vld [vmem:[#allocation2 + $0x29] sm:$0xff]
  %v308 = vld [vmem:[#allocation2 + $0x31] sm:$0xff]
  %v309 = vld [vmem:[#allocation2 + $0x39] sm:$0xff]
  %v310 = vsel %vm234, 1, 0
  %v311 = vsel %vm235, 1, 0
  %v312 = vsel %vm236, 1, 0
  %v313 = vsel %vm237, 1, 0
  %v314 = vsel %vm238, 1, 0
  %v315 = vsel %vm239, 1, 0
  %v316 = vsel %vm240, 1, 0
  %v317 = vsel %vm241, 1, 0
  %vm318 = vcmp.eq.s32.totalorder %v310, 1
  %vm319 = vcmp.eq.s32.totalorder %v311, 1
  %vm320 = vcmp.eq.s32.totalorder %v312, 1
  %vm321 = vcmp.eq.s32.totalorder %v313, 1
  %vm322 = vcmp.eq.s32.totalorder %v314, 1
  %vm323 = vcmp.eq.s32.totalorder %v315, 1
  %vm324 = vcmp.eq.s32.totalorder %v316, 1
  %vm325 = vcmp.eq.s32.totalorder %v317, 1
  %v326 = vsel %vm318, %v302, 0.0
  %v327 = vsel %vm319, %v303, 0.0
  %v328 = vsel %vm320, %v304, 0.0
  %v329 = vsel %vm321, %v305, 0.0
  %v330 = vsel %vm322, %v306, 0.0
  %v331 = vsel %vm323, %v307, 0.0
  %v332 = vsel %vm324, %v308, 0.0
  %v333 = vsel %vm325, %v309, 0.0
  %v334 = vlaneseq
  %v335 = vshrl.u32 %v334, 7
  %v336 = vsub.s32 1, %v335
  %v337 = vrot.slane %v29, %v336
  %v338 = vmul.f32 %v326, %v337
  %v339 = vmul.f32 %v327, %v337
  %v340 = vmul.f32 %v328, %v337
  %v341 = vmul.f32 %v329, %v337
  %v342 = vmul.f32 %v330, %v337
  %v343 = vmul.f32 %v331, %v337
  %v344 = vmul.f32 %v332, %v337
  %v345 = vmul.f32 %v333, %v337
  %v346 = vadd.f32 %v294, %v338
  %v347 = vadd.f32 %v295, %v339
  %v348 = vadd.f32 %v296, %v340
  %v349 = vadd.f32 %v297, %v341
  %v350 = vadd.f32 %v298, %v342
  %v351 = vadd.f32 %v299, %v343
  %v352 = vadd.f32 %v300, %v344
  %v353 = vadd.f32 %v301, %v345
  %v354 = vld [vmem:[#allocation2 + $0x2] sm:$0xff]
  %v355 = vld [vmem:[#allocation2 + $0xa] sm:$0xff]
  %v356 = vld [vmem:[#allocation2 + $0x12] sm:$0xff]
  %v357 = vld [vmem:[#allocation2 + $0x1a] sm:$0xff]
  %v358 = vld [vmem:[#allocation2 + $0x22] sm:$0xff]
  %v359 = vld [vmem:[#allocation2 + $0x2a] sm:$0xff]
  %v360 = vld [vmem:[#allocation2 + $0x32] sm:$0xff]
  %v361 = vld [vmem:[#allocation2 + $0x3a] sm:$0xff]
  %vm362 = vcmp.le.s32.totalorder %v211, 6
  %vm363 = vcmp.le.s32.totalorder %v212, 6
  %vm364 = vcmp.le.s32.totalorder %v213, 6
  %vm365 = vcmp.le.s32.totalorder %v214, 6
  %vm366 = vcmp.le.s32.totalorder %v215, 6
  %vm367 = vcmp.le.s32.totalorder %v216, 6
  %vm368 = vcmp.le.s32.totalorder %v217, 6
  %vm369 = vcmp.le.s32.totalorder %v218, 6
  %vm370 = vmand %vm234, %vm362
  %vm371 = vmand %vm235, %vm363
  %vm372 = vmand %vm236, %vm364
  %vm373 = vmand %vm237, %vm365
  %vm374 = vmand %vm238, %vm366
  %vm375 = vmand %vm239, %vm367
  %vm376 = vmand %vm240, %vm368
  %vm377 = vmand %vm241, %vm369
  %v378 = vsel %vm370, 1, 0
  %v379 = vsel %vm371, 1, 0
  %v380 = vsel %vm372, 1, 0
  %v381 = vsel %vm373, 1, 0
  %v382 = vsel %vm374, 1, 0
  %v383 = vsel %vm375, 1, 0
  %v384 = vsel %vm376, 1, 0
  %v385 = vsel %vm377, 1, 0
  %vm386 = vcmp.eq.s32.totalorder %v378, 1
  %vm387 = vcmp.eq.s32.totalorder %v379, 1
  %vm388 = vcmp.eq.s32.totalorder %v380, 1
  %vm389 = vcmp.eq.s32.totalorder %v381, 1
  %vm390 = vcmp.eq.s32.totalorder %v382, 1
  %vm391 = vcmp.eq.s32.totalorder %v383, 1
  %vm392 = vcmp.eq.s32.totalorder %v384, 1
  %vm393 = vcmp.eq.s32.totalorder %v385, 1
  %v394 = vsel %vm386, %v354, 0.0
  %v395 = vsel %vm387, %v355, 0.0
  %v396 = vsel %vm388, %v356, 0.0
  %v397 = vsel %vm389, %v357, 0.0
  %v398 = vsel %vm390, %v358, 0.0
  %v399 = vsel %vm391, %v359, 0.0
  %v400 = vsel %vm392, %v360, 0.0
  %v401 = vsel %vm393, %v361, 0.0
  %v402 = vlaneseq
  %v403 = vshrl.u32 %v402, 7
  %v404 = vsub.s32 2, %v403
  %v405 = vrot.slane %v29, %v404
  %v406 = vmul.f32 %v394, %v405
  %v407 = vmul.f32 %v395, %v405
  %v408 = vmul.f32 %v396, %v405
  %v409 = vmul.f32 %v397, %v405
  %v410 = vmul.f32 %v398, %v405
  %v411 = vmul.f32 %v399, %v405
  %v412 = vmul.f32 %v400, %v405
  %v413 = vmul.f32 %v401, %v405
  %v414 = vadd.f32 %v346, %v406
  %v415 = vadd.f32 %v347, %v407
  %v416 = vadd.f32 %v348, %v408
  %v417 = vadd.f32 %v349, %v409
  %v418 = vadd.f32 %v350, %v410
  %v419 = vadd.f32 %v351, %v411
  %v420 = vadd.f32 %v352, %v412
  %v421 = vadd.f32 %v353, %v413
  %v422 = vld [vmem:[#allocation2 + $0x40] sm:$0xff]
  %v423 = vsel %vm242, 1, 0
  %v424 = vsel %vm243, 1, 0
  %v425 = vsel %vm244, 1, 0
  %v426 = vsel %vm245, 1, 0
  %v427 = vsel %vm246, 1, 0
  %v428 = vsel %vm247, 1, 0
  %v429 = vsel %vm248, 1, 0
  %v430 = vsel %vm249, 1, 0
  %vm431 = vcmp.eq.s32.totalorder %v423, 1
  %vm432 = vcmp.eq.s32.totalorder %v424, 1
  %vm433 = vcmp.eq.s32.totalorder %v425, 1
  %vm434 = vcmp.eq.s32.totalorder %v426, 1
  %vm435 = vcmp.eq.s32.totalorder %v427, 1
  %vm436 = vcmp.eq.s32.totalorder %v428, 1
  %vm437 = vcmp.eq.s32.totalorder %v429, 1
  %vm438 = vcmp.eq.s32.totalorder %v430, 1
  %v439 = vsel %vm431, %v227, 0.0
  %v440 = vsel %vm432, %v228, 0.0
  %v441 = vsel %vm433, %v229, 0.0
  %v442 = vsel %vm434, %v230, 0.0
  %v443 = vsel %vm435, %v231, 0.0
  %v444 = vsel %vm436, %v232, 0.0
  %v445 = vsel %vm437, %v233, 0.0
  %v446 = vsel %vm438, %v422, 0.0
  %v447 = vlaneseq
  %v448 = vshrl.u32 %v447, 7
  %v449 = vsub.s32 3, %v448
  %v450 = vrot.slane %v29, %v449
  %v451 = vmul.f32 %v439, %v450
  %v452 = vmul.f32 %v440, %v450
  %v453 = vmul.f32 %v441, %v450
  %v454 = vmul.f32 %v442, %v450
  %v455 = vmul.f32 %v443, %v450
  %v456 = vmul.f32 %v444, %v450
  %v457 = vmul.f32 %v445, %v450
  %v458 = vmul.f32 %v446, %v450
  %v459 = vadd.f32 %v414, %v451
  %v460 = vadd.f32 %v415, %v452
  %v461 = vadd.f32 %v416, %v453
  %v462 = vadd.f32 %v417, %v454
  %v463 = vadd.f32 %v418, %v455
  %v464 = vadd.f32 %v419, %v456
  %v465 = vadd.f32 %v420, %v457
  %v466 = vadd.f32 %v421, %v458
  %v467 = vld [vmem:[#allocation2 + $0x41] sm:$0xff]
  %v468 = vlaneseq
  %v469 = vshrl.u32 %v468, 7
  %v470 = vsub.s32 4, %v469
  %v471 = vrot.slane %v29, %v470
  %v472 = vmul.f32 %v303, %v471
  %v473 = vmul.f32 %v304, %v471
  %v474 = vmul.f32 %v305, %v471
  %v475 = vmul.f32 %v306, %v471
  %v476 = vmul.f32 %v307, %v471
  %v477 = vmul.f32 %v308, %v471
  %v478 = vmul.f32 %v309, %v471
  %v479 = vmul.f32 %v467, %v471
  %v480 = vadd.f32 %v459, %v472
  %v481 = vadd.f32 %v460, %v473
  %v482 = vadd.f32 %v461, %v474
  %v483 = vadd.f32 %v462, %v475
  %v484 = vadd.f32 %v463, %v476
  %v485 = vadd.f32 %v464, %v477
  %v486 = vadd.f32 %v465, %v478
  %v487 = vadd.f32 %v466, %v479
  %v488 = vld [vmem:[#allocation2 + $0x42] sm:$0xff]
  %v489 = vsel %vm362, 1, 0
  %v490 = vsel %vm363, 1, 0
  %v491 = vsel %vm364, 1, 0
  %v492 = vsel %vm365, 1, 0
  %v493 = vsel %vm366, 1, 0
  %v494 = vsel %vm367, 1, 0
  %v495 = vsel %vm368, 1, 0
  %v496 = vsel %vm369, 1, 0
  %vm497 = vcmp.eq.s32.totalorder %v489, 1
  %vm498 = vcmp.eq.s32.totalorder %v490, 1
  %vm499 = vcmp.eq.s32.totalorder %v491, 1
  %vm500 = vcmp.eq.s32.totalorder %v492, 1
  %vm501 = vcmp.eq.s32.totalorder %v493, 1
  %vm502 = vcmp.eq.s32.totalorder %v494, 1
  %vm503 = vcmp.eq.s32.totalorder %v495, 1
  %vm504 = vcmp.eq.s32.totalorder %v496, 1
  %v505 = vsel %vm497, %v355, 0.0
  %v506 = vsel %vm498, %v356, 0.0
  %v507 = vsel %vm499, %v357, 0.0
  %v508 = vsel %vm500, %v358, 0.0
  %v509 = vsel %vm501, %v359, 0.0
  %v510 = vsel %vm502, %v360, 0.0
  %v511 = vsel %vm503, %v361, 0.0
  %v512 = vsel %vm504, %v488, 0.0
  %v513 = vlaneseq
  %v514 = vshrl.u32 %v513, 7
  %v515 = vsub.s32 5, %v514
  %v516 = vrot.slane %v29, %v515
  %v517 = vmul.f32 %v505, %v516
  %v518 = vmul.f32 %v506, %v516
  %v519 = vmul.f32 %v507, %v516
  %v520 = vmul.f32 %v508, %v516
  %v521 = vmul.f32 %v509, %v516
  %v522 = vmul.f32 %v510, %v516
  %v523 = vmul.f32 %v511, %v516
  %v524 = vmul.f32 %v512, %v516
  %v525 = vadd.f32 %v480, %v517
  %v526 = vadd.f32 %v481, %v518
  %v527 = vadd.f32 %v482, %v519
  %v528 = vadd.f32 %v483, %v520
  %v529 = vadd.f32 %v484, %v521
  %v530 = vadd.f32 %v485, %v522
  %v531 = vadd.f32 %v486, %v523
  %v532 = vadd.f32 %v487, %v524
  %v533 = vld [vmem:[#allocation2 + $0x48] sm:$0xff]
  %vm534 = vcmp.lt.s32.totalorder %v203, 56
  %vm535 = vcmp.lt.s32.totalorder %v204, 56
  %vm536 = vcmp.lt.s32.totalorder %v205, 56
  %vm537 = vcmp.lt.s32.totalorder %v206, 56
  %vm538 = vcmp.lt.s32.totalorder %v207, 56
  %vm539 = vcmp.lt.s32.totalorder %v208, 56
  %vm540 = vcmp.lt.s32.totalorder %v209, 56
  %vm541 = vcmp.lt.s32.totalorder %v210, 56
  %vm542 = vmand %vm534, %vm242
  %vm543 = vmand %vm535, %vm243
  %vm544 = vmand %vm536, %vm244
  %vm545 = vmand %vm537, %vm245
  %vm546 = vmand %vm538, %vm246
  %vm547 = vmand %vm539, %vm247
  %vm548 = vmand %vm540, %vm248
  %vm549 = vmand %vm541, %vm249
  %v550 = vsel %vm542, 1, 0
  %v551 = vsel %vm543, 1, 0
  %v552 = vsel %vm544, 1, 0
  %v553 = vsel %vm545, 1, 0
  %v554 = vsel %vm546, 1, 0
  %v555 = vsel %vm547, 1, 0
  %v556 = vsel %vm548, 1, 0
  %v557 = vsel %vm549, 1, 0
  %vm558 = vcmp.eq.s32.totalorder %v550, 1
  %vm559 = vcmp.eq.s32.totalorder %v551, 1
  %vm560 = vcmp.eq.s32.totalorder %v552, 1
  %vm561 = vcmp.eq.s32.totalorder %v553, 1
  %vm562 = vcmp.eq.s32.totalorder %v554, 1
  %vm563 = vcmp.eq.s32.totalorder %v555, 1
  %vm564 = vcmp.eq.s32.totalorder %v556, 1
  %vm565 = vcmp.eq.s32.totalorder %v557, 1
  %v566 = vsel %vm558, %v228, 0.0
  %v567 = vsel %vm559, %v229, 0.0
  %v568 = vsel %vm560, %v230, 0.0
  %v569 = vsel %vm561, %v231, 0.0
  %v570 = vsel %vm562, %v232, 0.0
  %v571 = vsel %vm563, %v233, 0.0
  %v572 = vsel %vm564, %v422, 0.0
  %v573 = vsel %vm565, %v533, 0.0
  %v574 = vlaneseq
  %v575 = vshrl.u32 %v574, 7
  %v576 = vsub.s32 6, %v575
  %v577 = vrot.slane %v29, %v576
  %v578 = vmul.f32 %v566, %v577
  %v579 = vmul.f32 %v567, %v577
  %v580 = vmul.f32 %v568, %v577
  %v581 = vmul.f32 %v569, %v577
  %v582 = vmul.f32 %v570, %v577
  %v583 = vmul.f32 %v571, %v577
  %v584 = vmul.f32 %v572, %v577
  %v585 = vmul.f32 %v573, %v577
  %v586 = vadd.f32 %v525, %v578
  %v587 = vadd.f32 %v526, %v579
  %v588 = vadd.f32 %v527, %v580
  %v589 = vadd.f32 %v528, %v581
  %v590 = vadd.f32 %v529, %v582
  %v591 = vadd.f32 %v530, %v583
  %v592 = vadd.f32 %v531, %v584
  %v593 = vadd.f32 %v532, %v585
  %v594 = vld [vmem:[#allocation2 + $0x49] sm:$0xff]
  %v595 = vsel %vm534, 1, 0
  %v596 = vsel %vm535, 1, 0
  %v597 = vsel %vm536, 1, 0
  %v598 = vsel %vm537, 1, 0
  %v599 = vsel %vm538, 1, 0
  %v600 = vsel %vm539, 1, 0
  %v601 = vsel %vm540, 1, 0
  %v602 = vsel %vm541, 1, 0
  %vm603 = vcmp.eq.s32.totalorder %v595, 1
  %vm604 = vcmp.eq.s32.totalorder %v596, 1
  %vm605 = vcmp.eq.s32.totalorder %v597, 1
  %vm606 = vcmp.eq.s32.totalorder %v598, 1
  %vm607 = vcmp.eq.s32.totalorder %v599, 1
  %vm608 = vcmp.eq.s32.totalorder %v600, 1
  %vm609 = vcmp.eq.s32.totalorder %v601, 1
  %vm610 = vcmp.eq.s32.totalorder %v602, 1
  %v611 = vsel %vm603, %v304, 0.0
  %v612 = vsel %vm604, %v305, 0.0
  %v613 = vsel %vm605, %v306, 0.0
  %v614 = vsel %vm606, %v307, 0.0
  %v615 = vsel %vm607, %v308, 0.0
  %v616 = vsel %vm608, %v309, 0.0
  %v617 = vsel %vm609, %v467, 0.0
  %v618 = vsel %vm610, %v594, 0.0
  %v619 = vlaneseq
  %v620 = vshrl.u32 %v619, 7
  %v621 = vsub.s32 7, %v620
  %v622 = vrot.slane %v29, %v621
  %v623 = vmul.f32 %v611, %v622
  %v624 = vmul.f32 %v612, %v622
  %v625 = vmul.f32 %v613, %v622
  %v626 = vmul.f32 %v614, %v622
  %v627 = vmul.f32 %v615, %v622
  %v628 = vmul.f32 %v616, %v622
  %v629 = vmul.f32 %v617, %v622
  %v630 = vmul.f32 %v618, %v622
  %v631 = vadd.f32 %v586, %v623
  %v632 = vadd.f32 %v587, %v624
  %v633 = vadd.f32 %v588, %v625
  %v634 = vadd.f32 %v589, %v626
  %v635 = vadd.f32 %v590, %v627
  %v636 = vadd.f32 %v591, %v628
  %v637 = vadd.f32 %v592, %v629
  %v638 = vadd.f32 %v593, %v630
  %v639 = vld [vmem:[#allocation2 + $0x4a] sm:$0xff]
  %vm640 = vmand %vm534, %vm362
  %vm641 = vmand %vm535, %vm363
  %vm642 = vmand %vm536, %vm364
  %vm643 = vmand %vm537, %vm365
  %vm644 = vmand %vm538, %vm366
  %vm645 = vmand %vm539, %vm367
  %vm646 = vmand %vm540, %vm368
  %vm647 = vmand %vm541, %vm369
  %v648 = vsel %vm640, 1, 0
  %v649 = vsel %vm641, 1, 0
  %v650 = vsel %vm642, 1, 0
  %v651 = vsel %vm643, 1, 0
  %v652 = vsel %vm644, 1, 0
  %v653 = vsel %vm645, 1, 0
  %v654 = vsel %vm646, 1, 0
  %v655 = vsel %vm647, 1, 0
  %vm656 = vcmp.eq.s32.totalorder %v648, 1
  %vm657 = vcmp.eq.s32.totalorder %v649, 1
  %vm658 = vcmp.eq.s32.totalorder %v650, 1
  %vm659 = vcmp.eq.s32.totalorder %v651, 1
  %vm660 = vcmp.eq.s32.totalorder %v652, 1
  %vm661 = vcmp.eq.s32.totalorder %v653, 1
  %vm662 = vcmp.eq.s32.totalorder %v654, 1
  %vm663 = vcmp.eq.s32.totalorder %v655, 1
  %v664 = vsel %vm656, %v356, 0.0
  %v665 = vsel %vm657, %v357, 0.0
  %v666 = vsel %vm658, %v358, 0.0
  %v667 = vsel %vm659, %v359, 0.0
  %v668 = vsel %vm660, %v360, 0.0
  %v669 = vsel %vm661, %v361, 0.0
  %v670 = vsel %vm662, %v488, 0.0
  %v671 = vsel %vm663, %v639, 0.0
  %v672 = vlaneseq
  %v673 = vshrl.u32 %v672, 7
  %v674 = vsub.s32 0, %v673
  %v675 = vrot.slane %v30, %v674
  %v676 = vmul.f32 %v664, %v675
  %v677 = vmul.f32 %v665, %v675
  %v678 = vmul.f32 %v666, %v675
  %v679 = vmul.f32 %v667, %v675
  %v680 = vmul.f32 %v668, %v675
  %v681 = vmul.f32 %v669, %v675
  %v682 = vmul.f32 %v670, %v675
  %v683 = vmul.f32 %v671, %v675
  %v684 = vadd.f32 %v631, %v676
  %v685 = vadd.f32 %v632, %v677
  %v686 = vadd.f32 %v633, %v678
  %v687 = vadd.f32 %v634, %v679
  %v688 = vadd.f32 %v635, %v680
  %v689 = vadd.f32 %v636, %v681
  %v690 = vadd.f32 %v637, %v682
  %v691 = vadd.f32 %v638, %v683
  %v692 = vmul.f32 %v684, 0.5
  %v693 = vmul.f32 %v685, 0.5
  %v694 = vmul.f32 %v686, 0.5
  %v695 = vmul.f32 %v687, 0.5
  %v696 = vmul.f32 %v688, 0.5
  %v697 = vmul.f32 %v689, 0.5
  %v698 = vmul.f32 %v690, 0.5
  %v699 = vmul.f32 %v691, 0.5
  %v700 = vmul.f32 %v684, 0.70710677
  %v701 = vmul.f32 %v685, 0.70710677
  %v702 = vmul.f32 %v686, 0.70710677
  %v703 = vmul.f32 %v687, 0.70710677
  %v704 = vmul.f32 %v688, 0.70710677
  %v705 = vmul.f32 %v689, 0.70710677
  %v706 = vmul.f32 %v690, 0.70710677
  %v707 = vmul.f32 %v691, 0.70710677
  %v708 = verf.f32.pop %v700
  %v709 = verf.f32.pop %v701
  %v710 = verf.f32.pop %v702
  %v711 = verf.f32.pop %v703
  %v712 = verf.f32.pop %v704
  %v713 = verf.f32.pop %v705
  %v714 = verf.f32.pop %v706
  %v715 = verf.f32.pop %v707
  %v716 = vadd.f32 %v708, 1.0
  %v717 = vadd.f32 %v709, 1.0
  %v718 = vadd.f32 %v710, 1.0
  %v719 = vadd.f32 %v711, 1.0
  %v720 = vadd.f32 %v712, 1.0
  %v721 = vadd.f32 %v713, 1.0
  %v722 = vadd.f32 %v714, 1.0
  %v723 = vadd.f32 %v715, 1.0
  %v724 = vmul.f32 %v692, %v716
  %v725 = vmul.f32 %v693, %v717
  %v726 = vmul.f32 %v694, %v718
  %v727 = vmul.f32 %v695, %v719
  %v728 = vmul.f32 %v696, %v720
  %v729 = vmul.f32 %v697, %v721
  %v730 = vmul.f32 %v698, %v722
  %v731 = vmul.f32 %v699, %v723
  %v733 = vlaneseq
  %v734 = vshrl.u32 %v733, 7
  %v735 = vsub.s32 0, %v734
  %v736 = vrot.slane %v36, %v735
  %v739 = vsel %vm37, %v724, 0
  %v742 = vsel %vm37, %v725, 0
  %v745 = vsel %vm37, %v726, 0
  %v748 = vsel %vm37, %v727, 0
  %v751 = vsel %vm37, %v728, 0
  %v754 = vsel %vm37, %v729, 0
  %v757 = vsel %vm37, %v730, 0
  %v760 = vsel %vm37, %v731, 0
  %762 = vmatprep.subr.mxu0 0.0
  %763 = vmatpush1.msra.mxu0 0.0
  %764 = vmatprep.subr.mxu0 0.0
  %765 = vmatpush1.msra.mxu0 0.0
  %766 = vmatprep.subr.mxu0 0.0
  %767 = vmatpush1.msra.mxu0 0.0
  %768 = vmatprep.subr.mxu0 0.0
  %769 = vmatpush1.msra.mxu0 0.0
  %770 = vmatprep.subr.mxu0 0.0
  %771 = vmatpush1.msra.mxu0 0.0
  %772 = vmatprep.subr.mxu0 0.0
  %773 = vmatpush1.msra.mxu0 0.0
  %774 = vmatprep.subr.mxu0 0.0
  %775 = vmatpush1.msra.mxu0 0.0
  %776 = vmatprep.subr.mxu0 0.0
  %777 = vmatpush1.msra.mxu0 0.0
  %778 = vmatprep.subr.mxu0 0.0
  %779 = vmatpush1.msra.mxu0 0.0
  %780 = vmatprep.subr.mxu0 0.0
  %781 = vmatpush1.msra.mxu0 0.0
  %782 = vmatprep.subr.mxu0 0.0
  %783 = vmatpush1.msra.mxu0 0.0
  %784 = vmatprep.subr.mxu0 0.0
  %785 = vmatpush1.msra.mxu0 0.0
  %786 = vmatprep.subr.mxu0 0.0
  %787 = vmatpush1.msra.mxu0 %v35
  %788 = vmatprep.subr.mxu0 0.0
  %789 = vmatpush1.msra.mxu0 %v34
  %790 = vmatprep.subr.mxu0 0.0
  %791 = vmatpush1.msra.mxu0 %v33
  %792 = vmatprep.subr.mxu0 0.0
  %793 = vmatpush1.msra.mxu0 %v32
  %794 = vmatprep.subr.mxu0 0.0
  %795 = vmatpush2.msra.mxu0 0.0
  %796 = vmatprep.subr.mxu0 0.0
  %797 = vmatpush2.msra.mxu0 0.0
  %798 = vmatprep.subr.mxu0 0.0
  %799 = vmatpush2.msra.mxu0 0.0
  %800 = vmatprep.subr.mxu0 0.0
  %801 = vmatpush2.msra.mxu0 0.0
  %802 = vmatprep.subr.mxu0 0.0
  %803 = vmatpush2.msra.mxu0 0.0
  %804 = vmatprep.subr.mxu0 0.0
  %805 = vmatpush2.msra.mxu0 0.0
  %806 = vmatprep.subr.mxu0 0.0
  %807 = vmatpush2.msra.mxu0 0.0
  %808 = vmatprep.subr.mxu0 0.0
  %809 = vmatpush2.msra.mxu0 0.0
  %810 = vmatprep.subr.mxu0 0.0
  %811 = vmatpush2.msra.mxu0 0.0
  %812 = vmatprep.subr.mxu0 0.0
  %813 = vmatpush2.msra.mxu0 0.0
  %814 = vmatprep.subr.mxu0 0.0
  %815 = vmatpush2.msra.mxu0 0.0
  %816 = vmatprep.subr.mxu0 0.0
  %817 = vmatpush2.msra.mxu0 0.0
  %818 = vmatprep.subr.mxu0 0.0
  %819 = vmatpush2.msra.mxu0 0.0
  %820 = vmatprep.subr.mxu0 0.0
  %821 = vmatpush2.msra.mxu0 0.0
  %822 = vmatprep.subr.mxu0 0.0
  %823 = vmatpush2.msra.mxu0 0.0
  %824 = vmatprep.subr.mxu0 0.0
  %825 = vmatpush2.msra.mxu0 0.0
  %826 = vmatprep.mubr.f32.mxu0 0.0
  %827 = vmatmul.mubr.f32.gmra.mxu0 %v739
  %v828 = vpop.f32.mrf.mxu0
  %v829 = vadd.f32 %v736, %v828
  %v830 = vpop.f32.mrf.mxu0
  %831 = vmatprep.mubr.f32.mxu0 0.0
  %832 = vmatmul.mubr.f32.gmra.mxu0 %v742
  %v833 = vpop.f32.mrf.mxu0
  %v834 = vadd.f32 %v736, %v833
  %v835 = vpop.f32.mrf.mxu0
  %836 = vmatprep.mubr.f32.mxu0 0.0
  %837 = vmatmul.mubr.f32.gmra.mxu0 %v745
  %v838 = vpop.f32.mrf.mxu0
  %v839 = vadd.f32 %v736, %v838
  %v840 = vpop.f32.mrf.mxu0
  %841 = vmatprep.mubr.f32.mxu0 0.0
  %842 = vmatmul.mubr.f32.gmra.mxu0 %v748
  %v843 = vpop.f32.mrf.mxu0
  %v844 = vadd.f32 %v736, %v843
  %v845 = vpop.f32.mrf.mxu0
  %846 = vmatprep.mubr.f32.mxu0 0.0
  %847 = vmatmul.mubr.f32.gmra.mxu0 %v751
  %v848 = vpop.f32.mrf.mxu0
  %v849 = vadd.f32 %v736, %v848
  %v850 = vpop.f32.mrf.mxu0
  %851 = vmatprep.mubr.f32.mxu0 0.0
  %852 = vmatmul.mubr.f32.gmra.mxu0 %v754
  %v853 = vpop.f32.mrf.mxu0
  %v854 = vadd.f32 %v736, %v853
  %v855 = vpop.f32.mrf.mxu0
  %856 = vmatprep.mubr.f32.mxu0 0.0
  %857 = vmatmul.mubr.f32.gmra.mxu0 %v757
  %v858 = vpop.f32.mrf.mxu0
  %v859 = vadd.f32 %v736, %v858
  %v860 = vpop.f32.mrf.mxu0
  %861 = vmatprep.mubr.f32.mxu0 0.0
  %862 = vmatmul.mubr.f32.gmra.mxu0 %v760
  %v863 = vpop.f32.mrf.mxu0
  %v864 = vadd.f32 %v736, %v863
  %v865 = vpop.f32.mrf.mxu0
  %866 = vdwg.mxu0
  %867 = vst.msk [vmem:[%s7] sm:$0xff] %vm64, %v829
  %868 = vst.msk [vmem:[%s7 + $0x8] sm:$0xff] %vm64, %v834
  %869 = vst.msk [vmem:[%s7 + $0x10] sm:$0xff] %vm64, %v839
  %870 = vst.msk [vmem:[%s7 + $0x18] sm:$0xff] %vm64, %v844
  %871 = vst.msk [vmem:[%s7 + $0x20] sm:$0xff] %vm64, %v849
  %872 = vst.msk [vmem:[%s7 + $0x28] sm:$0xff] %vm64, %v854
  %873 = vst.msk [vmem:[%s7 + $0x30] sm:$0xff] %vm64, %v859
  %874 = vst.msk [vmem:[%s7 + $0x38] sm:$0xff] %vm64, %v864
  %v875 = vld [vmem:[%s0 + $0x40] sm:$0xff]
  %v876 = vld [vmem:[%s0 + $0x48] sm:$0xff]
  %v878 = vsel %vm64, %v875, 0
  %v881 = vsel %vm64, %v876, 0
  %883 = vmatprep.subr.mxu0 0.0
  %884 = vmatpush1.msra.mxu0 0.0
  %885 = vmatprep.subr.mxu0 0.0
  %886 = vmatpush1.msra.mxu0 0.0
  %887 = vmatprep.subr.mxu0 0.0
  %888 = vmatpush1.msra.mxu0 0.0
  %889 = vmatprep.subr.mxu0 0.0
  %890 = vmatpush1.msra.mxu0 0.0
  %891 = vmatprep.subr.mxu0 0.0
  %892 = vmatpush1.msra.mxu0 0.0
  %893 = vmatprep.subr.mxu0 0.0
  %894 = vmatpush1.msra.mxu0 0.0
  %895 = vmatprep.subr.mxu0 0.0
  %896 = vmatpush1.msra.mxu0 0.0
  %897 = vmatprep.subr.mxu0 0.0
  %898 = vmatpush1.msra.mxu0 0.0
  %899 = vmatprep.subr.mxu0 0.0
  %900 = vmatpush1.msra.mxu0 0.0
  %901 = vmatprep.subr.mxu0 0.0
  %902 = vmatpush1.msra.mxu0 0.0
  %903 = vmatprep.subr.mxu0 0.0
  %904 = vmatpush1.msra.mxu0 0.0
  %905 = vmatprep.subr.mxu0 0.0
  %906 = vmatpush1.msra.mxu0 0.0
  %907 = vmatprep.subr.mxu0 0.0
  %908 = vmatpush1.msra.mxu0 0.0
  %909 = vmatprep.subr.mxu0 0.0
  %910 = vmatpush1.msra.mxu0 0.0
  %911 = vmatprep.subr.mxu0 0.0
  %912 = vmatpush1.msra.mxu0 %v27
  %913 = vmatprep.subr.mxu0 0.0
  %914 = vmatpush1.msra.mxu0 %v26
  %915 = vmatprep.subr.mxu0 0.0
  %916 = vmatpush2.msra.mxu0 0.0
  %917 = vmatprep.subr.mxu0 0.0
  %918 = vmatpush2.msra.mxu0 0.0
  %919 = vmatprep.subr.mxu0 0.0
  %920 = vmatpush2.msra.mxu0 0.0
  %921 = vmatprep.subr.mxu0 0.0
  %922 = vmatpush2.msra.mxu0 0.0
  %923 = vmatprep.subr.mxu0 0.0
  %924 = vmatpush2.msra.mxu0 0.0
  %925 = vmatprep.subr.mxu0 0.0
  %926 = vmatpush2.msra.mxu0 0.0
  %927 = vmatprep.subr.mxu0 0.0
  %928 = vmatpush2.msra.mxu0 0.0
  %929 = vmatprep.subr.mxu0 0.0
  %930 = vmatpush2.msra.mxu0 0.0
  %931 = vmatprep.subr.mxu0 0.0
  %932 = vmatpush2.msra.mxu0 0.0
  %933 = vmatprep.subr.mxu0 0.0
  %934 = vmatpush2.msra.mxu0 0.0
  %935 = vmatprep.subr.mxu0 0.0
  %936 = vmatpush2.msra.mxu0 0.0
  %937 = vmatprep.subr.mxu0 0.0
  %938 = vmatpush2.msra.mxu0 0.0
  %939 = vmatprep.subr.mxu0 0.0
  %940 = vmatpush2.msra.mxu0 0.0
  %941 = vmatprep.subr.mxu0 0.0
  %942 = vmatpush2.msra.mxu0 0.0
  %943 = vmatprep.subr.mxu0 0.0
  %944 = vmatpush2.msra.mxu0 0.0
  %945 = vmatprep.subr.mxu0 0.0
  %946 = vmatpush2.msra.mxu0 0.0
  %947 = vmatprep.mubr.f32.mxu0 0.0
  %948 = vmatmul.mubr.f32.gmra.mxu0 %v878
  %v949 = vpop.f32.mrf.mxu0
  %v950 = vadd.f32 %v62, %v949
  %v951 = vpop.f32.mrf.mxu0
  %952 = vmatprep.mubr.f32.mxu0 0.0
  %953 = vmatmul.mubr.f32.gmra.mxu0 %v881
  %v954 = vpop.f32.mrf.mxu0
  %v955 = vadd.f32 %v62, %v954
  %v956 = vpop.f32.mrf.mxu0
  %957 = vdwg.mxu0
  %958 = vst.msk [vmem:[#allocation2 + $0x9] sm:$0xff] %vm37, %v950
  %959 = vst.msk [vmem:[#allocation2 + $0x11] sm:$0xff] %vm37, %v955
  %v960 = vand.u32 %v203, 3
  %v961 = vand.u32 %v204, 3
  %v962 = vld [vmem:[#allocation2 + $0x4] sm:$0xff]
  %v963 = vld [vmem:[#allocation2 + $0xc] sm:$0xff]
  %vm964 = vcmp.ge.s32.totalorder %v203, 4
  %vm965 = vcmp.ge.s32.totalorder %v204, 4
  %vm966 = vcmp.ge.s32.totalorder %v960, 1
  %vm967 = vcmp.ge.s32.totalorder %v961, 1
  %vm968 = vmand %vm964, %vm966
  %vm969 = vmand %vm965, %vm967
  %v970 = vsel %vm968, 1, 0
  %v971 = vsel %vm969, 1, 0
  %vm972 = vcmp.eq.s32.totalorder %v970, 1
  %vm973 = vcmp.eq.s32.totalorder %v971, 1
  %v974 = vsel %vm972, %v962, 0.0
  %v975 = vsel %vm973, %v963, 0.0
  %v976 = vmul.f32 %v974, %v285
  %v977 = vmul.f32 %v975, %v285
  %v978 = vadd.f32 %v225, %v976
  %v979 = vadd.f32 %v225, %v977
  %v980 = vld [vmem:[#allocation2 + $0x5] sm:$0xff]
  %v981 = vld [vmem:[#allocation2 + $0xd] sm:$0xff]
  %v982 = vsel %vm964, 1, 0
  %v983 = vsel %vm965, 1, 0
  %vm984 = vcmp.eq.s32.totalorder %v982, 1
  %vm985 = vcmp.eq.s32.totalorder %v983, 1
  %v986 = vsel %vm984, %v980, 0.0
  %v987 = vsel %vm985, %v981, 0.0
  %v988 = vmul.f32 %v986, %v337
  %v989 = vmul.f32 %v987, %v337
  %v990 = vadd.f32 %v978, %v988
  %v991 = vadd.f32 %v979, %v989
  %v992 = vld [vmem:[#allocation2 + $0x6] sm:$0xff]
  %v993 = vld [vmem:[#allocation2 + $0xe] sm:$0xff]
  %vm994 = vcmp.le.s32.totalorder %v960, 2
  %vm995 = vcmp.le.s32.totalorder %v961, 2
  %vm996 = vmand %vm964, %vm994
  %vm997 = vmand %vm965, %vm995
  %v998 = vsel %vm996, 1, 0
  %v999 = vsel %vm997, 1, 0
  %vm1000 = vcmp.eq.s32.totalorder %v998, 1
  %vm1001 = vcmp.eq.s32.totalorder %v999, 1
  %v1002 = vsel %vm1000, %v992, 0.0
  %v1003 = vsel %vm1001, %v993, 0.0
  %v1004 = vmul.f32 %v1002, %v405
  %v1005 = vmul.f32 %v1003, %v405
  %v1006 = vadd.f32 %v990, %v1004
  %v1007 = vadd.f32 %v991, %v1005
  %v1008 = vld [vmem:[#allocation2 + $0x8] sm:$0xff]
  %v1009 = vld [vmem:[#allocation2 + $0x10] sm:$0xff]
  %v1010 = vsel %vm966, 1, 0
  %v1011 = vsel %vm967, 1, 0
  %vm1012 = vcmp.eq.s32.totalorder %v1010, 1
  %vm1013 = vcmp.eq.s32.totalorder %v1011, 1
  %v1014 = vsel %vm1012, %v1008, 0.0
  %v1015 = vsel %vm1013, %v1009, 0.0
  %v1016 = vmul.f32 %v1014, %v450
  %v1017 = vmul.f32 %v1015, %v450
  %v1018 = vadd.f32 %v1006, %v1016
  %v1019 = vadd.f32 %v1007, %v1017
  %v1020 = vld [vmem:[#allocation2 + $0x9] sm:$0xff]
  %v1021 = vld [vmem:[#allocation2 + $0x11] sm:$0xff]
  %v1022 = vmul.f32 %v1020, %v471
  %v1023 = vmul.f32 %v1021, %v471
  %v1024 = vadd.f32 %v1018, %v1022
  %v1025 = vadd.f32 %v1019, %v1023
  %v1026 = vld [vmem:[#allocation2 + $0xa] sm:$0xff]
  %v1027 = vld [vmem:[#allocation2 + $0x12] sm:$0xff]
  %v1028 = vsel %vm994, 1, 0
  %v1029 = vsel %vm995, 1, 0
  %vm1030 = vcmp.eq.s32.totalorder %v1028, 1
  %vm1031 = vcmp.eq.s32.totalorder %v1029, 1
  %v1032 = vsel %vm1030, %v1026, 0.0
  %v1033 = vsel %vm1031, %v1027, 0.0
  %v1034 = vmul.f32 %v1032, %v516
  %v1035 = vmul.f32 %v1033, %v516
  %v1036 = vadd.f32 %v1024, %v1034
  %v1037 = vadd.f32 %v1025, %v1035
  %v1038 = vld [vmem:[#allocation2 + $0x14] sm:$0xff]
  %vm1039 = vcmp.lt.s32.totalorder %v203, 12
  %vm1040 = vcmp.lt.s32.totalorder %v204, 12
  %vm1041 = vmand %vm1039, %vm966
  %vm1042 = vmand %vm1040, %vm967
  %v1043 = vsel %vm1041, 1, 0
  %v1044 = vsel %vm1042, 1, 0
  %vm1045 = vcmp.eq.s32.totalorder %v1043, 1
  %vm1046 = vcmp.eq.s32.totalorder %v1044, 1
  %v1047 = vsel %vm1045, %v963, 0.0
  %v1048 = vsel %vm1046, %v1038, 0.0
  %v1049 = vmul.f32 %v1047, %v577
  %v1050 = vmul.f32 %v1048, %v577
  %v1051 = vadd.f32 %v1036, %v1049
  %v1052 = vadd.f32 %v1037, %v1050
  %v1053 = vld [vmem:[#allocation2 + $0x15] sm:$0xff]
  %v1054 = vsel %vm1039, 1, 0
  %v1055 = vsel %vm1040, 1, 0
  %vm1056 = vcmp.eq.s32.totalorder %v1054, 1
  %vm1057 = vcmp.eq.s32.totalorder %v1055, 1
  %v1058 = vsel %vm1056, %v981, 0.0
  %v1059 = vsel %vm1057, %v1053, 0.0
  %v1060 = vmul.f32 %v1058, %v622
  %v1061 = vmul.f32 %v1059, %v622
  %v1062 = vadd.f32 %v1051, %v1060
  %v1063 = vadd.f32 %v1052, %v1061
  %v1064 = vld [vmem:[#allocation2 + $0x16] sm:$0xff]
  %vm1065 = vmand %vm1039, %vm994
  %vm1066 = vmand %vm1040, %vm995
  %v1067 = vsel %vm1065, 1, 0
  %v1068 = vsel %vm1066, 1, 0
  %vm1069 = vcmp.eq.s32.totalorder %v1067, 1
  %vm1070 = vcmp.eq.s32.totalorder %v1068, 1
  %v1071 = vsel %vm1069, %v993, 0.0
  %v1072 = vsel %vm1070, %v1064, 0.0
  %v1073 = vmul.f32 %v1071, %v675
  %v1074 = vmul.f32 %v1072, %v675
  %v1075 = vadd.f32 %v1062, %v1073
  %v1076 = vadd.f32 %v1063, %v1074
  %v1077 = vmul.f32 %v1075, 0.5
  %v1078 = vmul.f32 %v1076, 0.5
  %v1079 = vmul.f32 %v1075, 0.70710677
  %v1080 = vmul.f32 %v1076, 0.70710677
  %v1081 = verf.f32.pop %v1079
  %v1082 = verf.f32.pop %v1080
  %v1083 = vadd.f32 %v1081, 1.0
  %v1084 = vadd.f32 %v1082, 1.0
  %v1085 = vmul.f32 %v1077, %v1083
  %v1086 = vmul.f32 %v1078, %v1084
  %v1088 = vsel %vm37, %v1085, 0
  %v1091 = vsel %vm37, %v1086, 0
  %1093 = vmatprep.subr.mxu0 0.0
  %1094 = vmatpush1.msra.mxu0 0.0
  %1095 = vmatprep.subr.mxu0 0.0
  %1096 = vmatpush1.msra.mxu0 0.0
  %1097 = vmatprep.subr.mxu0 0.0
  %1098 = vmatpush1.msra.mxu0 0.0
  %1099 = vmatprep.subr.mxu0 0.0
  %1100 = vmatpush1.msra.mxu0 0.0
  %1101 = vmatprep.subr.mxu0 0.0
  %1102 = vmatpush1.msra.mxu0 0.0
  %1103 = vmatprep.subr.mxu0 0.0
  %1104 = vmatpush1.msra.mxu0 0.0
  %1105 = vmatprep.subr.mxu0 0.0
  %1106 = vmatpush1.msra.mxu0 0.0
  %1107 = vmatprep.subr.mxu0 0.0
  %1108 = vmatpush1.msra.mxu0 0.0
  %1109 = vmatprep.subr.mxu0 0.0
  %1110 = vmatpush1.msra.mxu0 0.0
  %1111 = vmatprep.subr.mxu0 0.0
  %1112 = vmatpush1.msra.mxu0 0.0
  %1113 = vmatprep.subr.mxu0 0.0
  %1114 = vmatpush1.msra.mxu0 0.0
  %1115 = vmatprep.subr.mxu0 0.0
  %1116 = vmatpush1.msra.mxu0 0.0
  %1117 = vmatprep.subr.mxu0 0.0
  %1118 = vmatpush1.msra.mxu0 %v35
  %1119 = vmatprep.subr.mxu0 0.0
  %1120 = vmatpush1.msra.mxu0 %v34
  %1121 = vmatprep.subr.mxu0 0.0
  %1122 = vmatpush1.msra.mxu0 %v33
  %1123 = vmatprep.subr.mxu0 0.0
  %1124 = vmatpush1.msra.mxu0 %v32
  %1125 = vmatprep.subr.mxu0 0.0
  %1126 = vmatpush2.msra.mxu0 0.0
  %1127 = vmatprep.subr.mxu0 0.0
  %1128 = vmatpush2.msra.mxu0 0.0
  %1129 = vmatprep.subr.mxu0 0.0
  %1130 = vmatpush2.msra.mxu0 0.0
  %1131 = vmatprep.subr.mxu0 0.0
  %1132 = vmatpush2.msra.mxu0 0.0
  %1133 = vmatprep.subr.mxu0 0.0
  %1134 = vmatpush2.msra.mxu0 0.0
  %1135 = vmatprep.subr.mxu0 0.0
  %1136 = vmatpush2.msra.mxu0 0.0
  %1137 = vmatprep.subr.mxu0 0.0
  %1138 = vmatpush2.msra.mxu0 0.0
  %1139 = vmatprep.subr.mxu0 0.0
  %1140 = vmatpush2.msra.mxu0 0.0
  %1141 = vmatprep.subr.mxu0 0.0
  %1142 = vmatpush2.msra.mxu0 0.0
  %1143 = vmatprep.subr.mxu0 0.0
  %1144 = vmatpush2.msra.mxu0 0.0
  %1145 = vmatprep.subr.mxu0 0.0
  %1146 = vmatpush2.msra.mxu0 0.0
  %1147 = vmatprep.subr.mxu0 0.0
  %1148 = vmatpush2.msra.mxu0 0.0
  %1149 = vmatprep.subr.mxu0 0.0
  %1150 = vmatpush2.msra.mxu0 0.0
  %1151 = vmatprep.subr.mxu0 0.0
  %1152 = vmatpush2.msra.mxu0 0.0
  %1153 = vmatprep.subr.mxu0 0.0
  %1154 = vmatpush2.msra.mxu0 0.0
  %1155 = vmatprep.subr.mxu0 0.0
  %1156 = vmatpush2.msra.mxu0 0.0
  %1157 = vmatprep.mubr.f32.mxu0 0.0
  %1158 = vmatmul.mubr.f32.gmra.mxu0 %v1088
  %v1159 = vpop.f32.mrf.mxu0
  %v1160 = vadd.f32 %v736, %v1159
  %v1161 = vpop.f32.mrf.mxu0
  %1162 = vmatprep.mubr.f32.mxu0 0.0
  %1163 = vmatmul.mubr.f32.gmra.mxu0 %v1091
  %v1164 = vpop.f32.mrf.mxu0
  %v1165 = vadd.f32 %v736, %v1164
  %v1166 = vpop.f32.mrf.mxu0
  %1167 = vdwg.mxu0
  %1168 = vst.msk [vmem:[%s7 + $0x40] sm:$0xff] %vm64, %v1160
  %1169 = vst.msk [vmem:[%s7 + $0x48] sm:$0xff] %vm64, %v1165
  %v1170 = vld [vmem:[%s0 + $0x50] sm:$0xf]
  %v1172 = vsel %vm64, %v1170, 0
  %1174 = vmatprep.subr.mxu0 0.0
  %1175 = vmatpush1.msra.mxu0 0.0
  %1176 = vmatprep.subr.mxu0 0.0
  %1177 = vmatpush1.msra.mxu0 0.0
  %1178 = vmatprep.subr.mxu0 0.0
  %1179 = vmatpush1.msra.mxu0 0.0
  %1180 = vmatprep.subr.mxu0 0.0
  %1181 = vmatpush1.msra.mxu0 0.0
  %1182 = vmatprep.subr.mxu0 0.0
  %1183 = vmatpush1.msra.mxu0 0.0
  %1184 = vmatprep.subr.mxu0 0.0
  %1185 = vmatpush1.msra.mxu0 0.0
  %1186 = vmatprep.subr.mxu0 0.0
  %1187 = vmatpush1.msra.mxu0 0.0
  %1188 = vmatprep.subr.mxu0 0.0
  %1189 = vmatpush1.msra.mxu0 0.0
  %1190 = vmatprep.subr.mxu0 0.0
  %1191 = vmatpush1.msra.mxu0 0.0
  %1192 = vmatprep.subr.mxu0 0.0
  %1193 = vmatpush1.msra.mxu0 0.0
  %1194 = vmatprep.subr.mxu0 0.0
  %1195 = vmatpush1.msra.mxu0 0.0
  %1196 = vmatprep.subr.mxu0 0.0
  %1197 = vmatpush1.msra.mxu0 0.0
  %1198 = vmatprep.subr.mxu0 0.0
  %1199 = vmatpush1.msra.mxu0 0.0
  %1200 = vmatprep.subr.mxu0 0.0
  %1201 = vmatpush1.msra.mxu0 0.0
  %1202 = vmatprep.subr.mxu0 0.0
  %1203 = vmatpush1.msra.mxu0 %v27
  %1204 = vmatprep.subr.mxu0 0.0
  %1205 = vmatpush1.msra.mxu0 %v26
  %1206 = vmatprep.subr.mxu0 0.0
  %1207 = vmatpush2.msra.mxu0 0.0
  %1208 = vmatprep.subr.mxu0 0.0
  %1209 = vmatpush2.msra.mxu0 0.0
  %1210 = vmatprep.subr.mxu0 0.0
  %1211 = vmatpush2.msra.mxu0 0.0
  %1212 = vmatprep.subr.mxu0 0.0
  %1213 = vmatpush2.msra.mxu0 0.0
  %1214 = vmatprep.subr.mxu0 0.0
  %1215 = vmatpush2.msra.mxu0 0.0
  %1216 = vmatprep.subr.mxu0 0.0
  %1217 = vmatpush2.msra.mxu0 0.0
  %1218 = vmatprep.subr.mxu0 0.0
  %1219 = vmatpush2.msra.mxu0 0.0
  %1220 = vmatprep.subr.mxu0 0.0
  %1221 = vmatpush2.msra.mxu0 0.0
  %1222 = vmatprep.subr.mxu0 0.0
  %1223 = vmatpush2.msra.mxu0 0.0
  %1224 = vmatprep.subr.mxu0 0.0
  %1225 = vmatpush2.msra.mxu0 0.0
  %1226 = vmatprep.subr.mxu0 0.0
  %1227 = vmatpush2.msra.mxu0 0.0
  %1228 = vmatprep.subr.mxu0 0.0
  %1229 = vmatpush2.msra.mxu0 0.0
  %1230 = vmatprep.subr.mxu0 0.0
  %1231 = vmatpush2.msra.mxu0 0.0
  %1232 = vmatprep.subr.mxu0 0.0
  %1233 = vmatpush2.msra.mxu0 0.0
  %1234 = vmatprep.subr.mxu0 0.0
  %1235 = vmatpush2.msra.mxu0 0.0
  %1236 = vmatprep.subr.mxu0 0.0
  %1237 = vmatpush2.msra.mxu0 0.0
  %1238 = vmatprep.mubr.f32.mxu0 0.0
  %1239 = vmatmul.mubr.f32.gmra.mxu0 %v1172
  %v1240 = vpop.f32.mrf.mxu0
  %v1241 = vadd.f32 %v62, %v1240
  %v1242 = vpop.f32.mrf.mxu0
  %1243 = vdwg.mxu0
  %vm1244 = vcmask 257024
  %1245 = vst.msk [vmem:[#allocation2 + $0x9] sm:$0xf] %vm1244, %v1241
  %v1246 = vand.u32 %v203, 1
  %v1247 = vld [vmem:[#allocation2 + $0x6] sm:$0xf]
  %vm1248 = vcmp.ge.s32.totalorder %v203, 2
  %vm1249 = vcmp.ge.s32.totalorder %v1246, 1
  %vm1250 = vmand %vm1248, %vm1249
  %v1251 = vsel %vm1250, 1, 0
  %vm1252 = vcmp.eq.s32.totalorder %v1251, 1
  %v1253 = vsel %vm1252, %v1247, 0.0
  %v1254 = vmul.f32 %v1253, %v285
  %v1255 = vadd.f32 %v225, %v1254
  %v1256 = vld [vmem:[#allocation2 + $0x7] sm:$0xf]
  %v1257 = vsel %vm1248, 1, 0
  %vm1258 = vcmp.eq.s32.totalorder %v1257, 1
  %v1259 = vsel %vm1258, %v1256, 0.0
  %v1260 = vmul.f32 %v1259, %v337
  %v1261 = vadd.f32 %v1255, %v1260
  %v1262 = vld [vmem:[#allocation2 + $0x8] sm:$0xf]
  %vm1263 = vcmp.le.s32.totalorder %v1246, 0
  %vm1264 = vmand %vm1248, %vm1263
  %v1265 = vsel %vm1264, 1, 0
  %vm1266 = vcmp.eq.s32.totalorder %v1265, 1
  %v1267 = vsel %vm1266, %v1262, 0.0
  %v1268 = vmul.f32 %v1267, %v405
  %v1269 = vadd.f32 %v1261, %v1268
  %v1270 = vsel %vm1249, 1, 0
  %vm1271 = vcmp.eq.s32.totalorder %v1270, 1
  %v1272 = vsel %vm1271, %v1262, 0.0
  %v1273 = vmul.f32 %v1272, %v450
  %v1274 = vadd.f32 %v1269, %v1273
  %v1275 = vld [vmem:[#allocation2 + $0x9] sm:$0xf]
  %v1276 = vmul.f32 %v1275, %v471
  %v1277 = vadd.f32 %v1274, %v1276
  %v1278 = vld [vmem:[#allocation2 + $0xa] sm:$0xf]
  %v1279 = vsel %vm1263, 1, 0
  %vm1280 = vcmp.eq.s32.totalorder %v1279, 1
  %v1281 = vsel %vm1280, %v1278, 0.0
  %v1282 = vmul.f32 %v1281, %v516
  %v1283 = vadd.f32 %v1277, %v1282
  %vm1284 = vcmp.lt.s32.totalorder %v203, 2
  %vm1285 = vmand %vm1284, %vm1249
  %v1286 = vsel %vm1285, 1, 0
  %vm1287 = vcmp.eq.s32.totalorder %v1286, 1
  %v1288 = vsel %vm1287, %v1278, 0.0
  %v1289 = vmul.f32 %v1288, %v577
  %v1290 = vadd.f32 %v1283, %v1289
  %v1291 = vld [vmem:[#allocation2 + $0xb] sm:$0xf]
  %v1292 = vsel %vm1284, 1, 0
  %vm1293 = vcmp.eq.s32.totalorder %v1292, 1
  %v1294 = vsel %vm1293, %v1291, 0.0
  %v1295 = vmul.f32 %v1294, %v622
  %v1296 = vadd.f32 %v1290, %v1295
  %v1297 = vld [vmem:[#allocation2 + $0xc] sm:$0xf]
  %vm1298 = vmand %vm1284, %vm1263
  %v1299 = vsel %vm1298, 1, 0
  %vm1300 = vcmp.eq.s32.totalorder %v1299, 1
  %v1301 = vsel %vm1300, %v1297, 0.0
  %v1302 = vmul.f32 %v1301, %v675
  %v1303 = vadd.f32 %v1296, %v1302
  %v1304 = vmul.f32 %v1303, 0.5
  %v1305 = vmul.f32 %v1303, 0.70710677
  %v1306 = verf.f32.pop %v1305
  %v1307 = vadd.f32 %v1306, 1.0
  %v1308 = vmul.f32 %v1304, %v1307
  %v1310 = vsel %vm37, %v1308, 0
  %1312 = vmatprep.subr.mxu0 0.0
  %1313 = vmatpush1.msra.mxu0 0.0
  %1314 = vmatprep.subr.mxu0 0.0
  %1315 = vmatpush1.msra.mxu0 0.0
  %1316 = vmatprep.subr.mxu0 0.0
  %1317 = vmatpush1.msra.mxu0 0.0
  %1318 = vmatprep.subr.mxu0 0.0
  %1319 = vmatpush1.msra.mxu0 0.0
  %1320 = vmatprep.subr.mxu0 0.0
  %1321 = vmatpush1.msra.mxu0 0.0
  %1322 = vmatprep.subr.mxu0 0.0
  %1323 = vmatpush1.msra.mxu0 0.0
  %1324 = vmatprep.subr.mxu0 0.0
  %1325 = vmatpush1.msra.mxu0 0.0
  %1326 = vmatprep.subr.mxu0 0.0
  %1327 = vmatpush1.msra.mxu0 0.0
  %1328 = vmatprep.subr.mxu0 0.0
  %1329 = vmatpush1.msra.mxu0 0.0
  %1330 = vmatprep.subr.mxu0 0.0
  %1331 = vmatpush1.msra.mxu0 0.0
  %1332 = vmatprep.subr.mxu0 0.0
  %1333 = vmatpush1.msra.mxu0 0.0
  %1334 = vmatprep.subr.mxu0 0.0
  %1335 = vmatpush1.msra.mxu0 0.0
  %1336 = vmatprep.subr.mxu0 0.0
  %1337 = vmatpush1.msra.mxu0 %v35
  %1338 = vmatprep.subr.mxu0 0.0
  %1339 = vmatpush1.msra.mxu0 %v34
  %1340 = vmatprep.subr.mxu0 0.0
  %1341 = vmatpush1.msra.mxu0 %v33
  %1342 = vmatprep.subr.mxu0 0.0
  %1343 = vmatpush1.msra.mxu0 %v32
  %1344 = vmatprep.subr.mxu0 0.0
  %1345 = vmatpush2.msra.mxu0 0.0
  %1346 = vmatprep.subr.mxu0 0.0
  %1347 = vmatpush2.msra.mxu0 0.0
  %1348 = vmatprep.subr.mxu0 0.0
  %1349 = vmatpush2.msra.mxu0 0.0
  %1350 = vmatprep.subr.mxu0 0.0
  %1351 = vmatpush2.msra.mxu0 0.0
  %1352 = vmatprep.subr.mxu0 0.0
  %1353 = vmatpush2.msra.mxu0 0.0
  %1354 = vmatprep.subr.mxu0 0.0
  %1355 = vmatpush2.msra.mxu0 0.0
  %1356 = vmatprep.subr.mxu0 0.0
  %1357 = vmatpush2.msra.mxu0 0.0
  %1358 = vmatprep.subr.mxu0 0.0
  %1359 = vmatpush2.msra.mxu0 0.0
  %1360 = vmatprep.subr.mxu0 0.0
  %1361 = vmatpush2.msra.mxu0 0.0
  %1362 = vmatprep.subr.mxu0 0.0
  %1363 = vmatpush2.msra.mxu0 0.0
  %1364 = vmatprep.subr.mxu0 0.0
  %1365 = vmatpush2.msra.mxu0 0.0
  %1366 = vmatprep.subr.mxu0 0.0
  %1367 = vmatpush2.msra.mxu0 0.0
  %1368 = vmatprep.subr.mxu0 0.0
  %1369 = vmatpush2.msra.mxu0 0.0
  %1370 = vmatprep.subr.mxu0 0.0
  %1371 = vmatpush2.msra.mxu0 0.0
  %1372 = vmatprep.subr.mxu0 0.0
  %1373 = vmatpush2.msra.mxu0 0.0
  %1374 = vmatprep.subr.mxu0 0.0
  %1375 = vmatpush2.msra.mxu0 0.0
  %1376 = vmatprep.mubr.f32.mxu0 0.0
  %1377 = vmatmul.mubr.f32.gmra.mxu0 %v1310
  %v1378 = vpop.f32.mrf.mxu0
  %v1379 = vadd.f32 %v736, %v1378
  %v1380 = vpop.f32.mrf.mxu0
  %1381 = vdwg.mxu0
  %vm1382 = vcmask 125952
  %1383 = vst.msk [vmem:[%s7 + $0x50] sm:$0xf] %vm1382, %v1379
  %s1384 = scalar_lea.vmem %s0, 88
  %v1385 = vld [vmem:[%s1384] sm:$0xff]
  %v1386 = vld [vmem:[%s1384 + $0x8] sm:$0xff]
  %v1387 = vld [vmem:[%s1384 + $0x10] sm:$0xff]
  %v1388 = vld [vmem:[%s1384 + $0x18] sm:$0xff]
  %v1389 = vld [vmem:[%s1384 + $0x20] sm:$0xff]
  %v1390 = vld [vmem:[%s1384 + $0x28] sm:$0xff]
  %v1391 = vld [vmem:[%s1384 + $0x30] sm:$0xff]
  %v1392 = vld [vmem:[%s1384 + $0x38] sm:$0xff]
  %v1394 = vsel %vm64, %v1385, 0
  %v1397 = vsel %vm64, %v1386, 0
  %v1400 = vsel %vm64, %v1387, 0
  %v1403 = vsel %vm64, %v1388, 0
  %v1406 = vsel %vm64, %v1389, 0
  %v1409 = vsel %vm64, %v1390, 0
  %v1412 = vsel %vm64, %v1391, 0
  %v1415 = vsel %vm64, %v1392, 0
  %1417 = vmatprep.subr.mxu0 0.0
  %1418 = vmatpush1.msra.mxu0 0.0
  %1419 = vmatprep.subr.mxu0 0.0
  %1420 = vmatpush1.msra.mxu0 0.0
  %1421 = vmatprep.subr.mxu0 0.0
  %1422 = vmatpush1.msra.mxu0 0.0
  %1423 = vmatprep.subr.mxu0 0.0
  %1424 = vmatpush1.msra.mxu0 0.0
  %1425 = vmatprep.subr.mxu0 0.0
  %1426 = vmatpush1.msra.mxu0 0.0
  %1427 = vmatprep.subr.mxu0 0.0
  %1428 = vmatpush1.msra.mxu0 0.0
  %1429 = vmatprep.subr.mxu0 0.0
  %1430 = vmatpush1.msra.mxu0 0.0
  %1431 = vmatprep.subr.mxu0 0.0
  %1432 = vmatpush1.msra.mxu0 0.0
  %1433 = vmatprep.subr.mxu0 0.0
  %1434 = vmatpush1.msra.mxu0 0.0
  %1435 = vmatprep.subr.mxu0 0.0
  %1436 = vmatpush1.msra.mxu0 0.0
  %1437 = vmatprep.subr.mxu0 0.0
  %1438 = vmatpush1.msra.mxu0 0.0
  %1439 = vmatprep.subr.mxu0 0.0
  %1440 = vmatpush1.msra.mxu0 0.0
  %1441 = vmatprep.subr.mxu0 0.0
  %1442 = vmatpush1.msra.mxu0 0.0
  %1443 = vmatprep.subr.mxu0 0.0
  %1444 = vmatpush1.msra.mxu0 0.0
  %1445 = vmatprep.subr.mxu0 0.0
  %1446 = vmatpush1.msra.mxu0 %v27
  %1447 = vmatprep.subr.mxu0 0.0
  %1448 = vmatpush1.msra.mxu0 %v26
  %1449 = vmatprep.subr.mxu0 0.0
  %1450 = vmatpush2.msra.mxu0 0.0
  %1451 = vmatprep.subr.mxu0 0.0
  %1452 = vmatpush2.msra.mxu0 0.0
  %1453 = vmatprep.subr.mxu0 0.0
  %1454 = vmatpush2.msra.mxu0 0.0
  %1455 = vmatprep.subr.mxu0 0.0
  %1456 = vmatpush2.msra.mxu0 0.0
  %1457 = vmatprep.subr.mxu0 0.0
  %1458 = vmatpush2.msra.mxu0 0.0
  %1459 = vmatprep.subr.mxu0 0.0
  %1460 = vmatpush2.msra.mxu0 0.0
  %1461 = vmatprep.subr.mxu0 0.0
  %1462 = vmatpush2.msra.mxu0 0.0
  %1463 = vmatprep.subr.mxu0 0.0
  %1464 = vmatpush2.msra.mxu0 0.0
  %1465 = vmatprep.subr.mxu0 0.0
  %1466 = vmatpush2.msra.mxu0 0.0
  %1467 = vmatprep.subr.mxu0 0.0
  %1468 = vmatpush2.msra.mxu0 0.0
  %1469 = vmatprep.subr.mxu0 0.0
  %1470 = vmatpush2.msra.mxu0 0.0
  %1471 = vmatprep.subr.mxu0 0.0
  %1472 = vmatpush2.msra.mxu0 0.0
  %1473 = vmatprep.subr.mxu0 0.0
  %1474 = vmatpush2.msra.mxu0 0.0
  %1475 = vmatprep.subr.mxu0 0.0
  %1476 = vmatpush2.msra.mxu0 0.0
  %1477 = vmatprep.subr.mxu0 0.0
  %1478 = vmatpush2.msra.mxu0 0.0
  %1479 = vmatprep.subr.mxu0 0.0
  %1480 = vmatpush2.msra.mxu0 0.0
  %1481 = vmatprep.mubr.f32.mxu0 0.0
  %1482 = vmatmul.mubr.f32.gmra.mxu0 %v1394
  %v1483 = vpop.f32.mrf.mxu0
  %v1484 = vadd.f32 %v62, %v1483
  %v1485 = vpop.f32.mrf.mxu0
  %1486 = vmatprep.mubr.f32.mxu0 0.0
  %1487 = vmatmul.mubr.f32.gmra.mxu0 %v1397
  %v1488 = vpop.f32.mrf.mxu0
  %v1489 = vadd.f32 %v62, %v1488
  %v1490 = vpop.f32.mrf.mxu0
  %1491 = vmatprep.mubr.f32.mxu0 0.0
  %1492 = vmatmul.mubr.f32.gmra.mxu0 %v1400
  %v1493 = vpop.f32.mrf.mxu0
  %v1494 = vadd.f32 %v62, %v1493
  %v1495 = vpop.f32.mrf.mxu0
  %1496 = vmatprep.mubr.f32.mxu0 0.0
  %1497 = vmatmul.mubr.f32.gmra.mxu0 %v1403
  %v1498 = vpop.f32.mrf.mxu0
  %v1499 = vadd.f32 %v62, %v1498
  %v1500 = vpop.f32.mrf.mxu0
  %1501 = vmatprep.mubr.f32.mxu0 0.0
  %1502 = vmatmul.mubr.f32.gmra.mxu0 %v1406
  %v1503 = vpop.f32.mrf.mxu0
  %v1504 = vadd.f32 %v62, %v1503
  %v1505 = vpop.f32.mrf.mxu0
  %1506 = vmatprep.mubr.f32.mxu0 0.0
  %1507 = vmatmul.mubr.f32.gmra.mxu0 %v1409
  %v1508 = vpop.f32.mrf.mxu0
  %v1509 = vadd.f32 %v62, %v1508
  %v1510 = vpop.f32.mrf.mxu0
  %1511 = vmatprep.mubr.f32.mxu0 0.0
  %1512 = vmatmul.mubr.f32.gmra.mxu0 %v1412
  %v1513 = vpop.f32.mrf.mxu0
  %v1514 = vadd.f32 %v62, %v1513
  %v1515 = vpop.f32.mrf.mxu0
  %1516 = vmatprep.mubr.f32.mxu0 0.0
  %1517 = vmatmul.mubr.f32.gmra.mxu0 %v1415
  %v1518 = vpop.f32.mrf.mxu0
  %v1519 = vadd.f32 %v62, %v1518
  %v1520 = vpop.f32.mrf.mxu0
  %1521 = vdwg.mxu0
  %1522 = vst.msk [vmem:[#allocation2 + $0x9] sm:$0xff] %vm37, %v1484
  %1523 = vst.msk [vmem:[#allocation2 + $0x11] sm:$0xff] %vm37, %v1489
  %1524 = vst.msk [vmem:[#allocation2 + $0x19] sm:$0xff] %vm37, %v1494
  %1525 = vst.msk [vmem:[#allocation2 + $0x21] sm:$0xff] %vm37, %v1499
  %1526 = vst.msk [vmem:[#allocation2 + $0x29] sm:$0xff] %vm37, %v1504
  %1527 = vst.msk [vmem:[#allocation2 + $0x31] sm:$0xff] %vm37, %v1509
  %1528 = vst.msk [vmem:[#allocation2 + $0x39] sm:$0xff] %vm37, %v1514
  %1529 = vst.msk [vmem:[#allocation2 + $0x41] sm:$0xff] %vm37, %v1519
  %v1530 = vld [vmem:[#allocation2] sm:$0xff]
  %v1531 = vld [vmem:[#allocation2 + $0x8] sm:$0xff]
  %v1532 = vld [vmem:[#allocation2 + $0x10] sm:$0xff]
  %v1533 = vld [vmem:[#allocation2 + $0x18] sm:$0xff]
  %v1534 = vld [vmem:[#allocation2 + $0x20] sm:$0xff]
  %v1535 = vld [vmem:[#allocation2 + $0x28] sm:$0xff]
  %v1536 = vld [vmem:[#allocation2 + $0x30] sm:$0xff]
  %v1537 = vld [vmem:[#allocation2 + $0x38] sm:$0xff]
  %v1538 = vsel %vm266, %v1530, 0.0
  %v1539 = vsel %vm267, %v1531, 0.0
  %v1540 = vsel %vm268, %v1532, 0.0
  %v1541 = vsel %vm269, %v1533, 0.0
  %v1542 = vsel %vm270, %v1534, 0.0
  %v1543 = vsel %vm271, %v1535, 0.0
  %v1544 = vsel %vm272, %v1536, 0.0
  %v1545 = vsel %vm273, %v1537, 0.0
  %v1546 = vmul.f32 %v1538, %v285
  %v1547 = vmul.f32 %v1539, %v285
  %v1548 = vmul.f32 %v1540, %v285
  %v1549 = vmul.f32 %v1541, %v285
  %v1550 = vmul.f32 %v1542, %v285
  %v1551 = vmul.f32 %v1543, %v285
  %v1552 = vmul.f32 %v1544, %v285
  %v1553 = vmul.f32 %v1545, %v285
  %v1554 = vadd.f32 %v225, %v1546
  %v1555 = vadd.f32 %v225, %v1547
  %v1556 = vadd.f32 %v225, %v1548
  %v1557 = vadd.f32 %v225, %v1549
  %v1558 = vadd.f32 %v225, %v1550
  %v1559 = vadd.f32 %v225, %v1551
  %v1560 = vadd.f32 %v225, %v1552
  %v1561 = vadd.f32 %v225, %v1553
  %v1562 = vld [vmem:[#allocation2 + $0x1] sm:$0xff]
  %v1563 = vld [vmem:[#allocation2 + $0x9] sm:$0xff]
  %v1564 = vld [vmem:[#allocation2 + $0x11] sm:$0xff]
  %v1565 = vld [vmem:[#allocation2 + $0x19] sm:$0xff]
  %v1566 = vld [vmem:[#allocation2 + $0x21] sm:$0xff]
  %v1567 = vld [vmem:[#allocation2 + $0x29] sm:$0xff]
  %v1568 = vld [vmem:[#allocation2 + $0x31] sm:$0xff]
  %v1569 = vld [vmem:[#allocation2 + $0x39] sm:$0xff]
  %v1570 = vsel %vm318, %v1562, 0.0
  %v1571 = vsel %vm319, %v1563, 0.0
  %v1572 = vsel %vm320, %v1564, 0.0
  %v1573 = vsel %vm321, %v1565, 0.0
  %v1574 = vsel %vm322, %v1566, 0.0
  %v1575 = vsel %vm323, %v1567, 0.0
  %v1576 = vsel %vm324, %v1568, 0.0
  %v1577 = vsel %vm325, %v1569, 0.0
  %v1578 = vmul.f32 %v1570, %v337
  %v1579 = vmul.f32 %v1571, %v337
  %v1580 = vmul.f32 %v1572, %v337
  %v1581 = vmul.f32 %v1573, %v337
  %v1582 = vmul.f32 %v1574, %v337
  %v1583 = vmul.f32 %v1575, %v337
  %v1584 = vmul.f32 %v1576, %v337
  %v1585 = vmul.f32 %v1577, %v337
  %v1586 = vadd.f32 %v1554, %v1578
  %v1587 = vadd.f32 %v1555, %v1579
  %v1588 = vadd.f32 %v1556, %v1580
  %v1589 = vadd.f32 %v1557, %v1581
  %v1590 = vadd.f32 %v1558, %v1582
  %v1591 = vadd.f32 %v1559, %v1583
  %v1592 = vadd.f32 %v1560, %v1584
  %v1593 = vadd.f32 %v1561, %v1585
  %v1594 = vld [vmem:[#allocation2 + $0x2] sm:$0xff]
  %v1595 = vld [vmem:[#allocation2 + $0xa] sm:$0xff]
  %v1596 = vld [vmem:[#allocation2 + $0x12] sm:$0xff]
  %v1597 = vld [vmem:[#allocation2 + $0x1a] sm:$0xff]
  %v1598 = vld [vmem:[#allocation2 + $0x22] sm:$0xff]
  %v1599 = vld [vmem:[#allocation2 + $0x2a] sm:$0xff]
  %v1600 = vld [vmem:[#allocation2 + $0x32] sm:$0xff]
  %v1601 = vld [vmem:[#allocation2 + $0x3a] sm:$0xff]
  %v1602 = vsel %vm386, %v1594, 0.0
  %v1603 = vsel %vm387, %v1595, 0.0
  %v1604 = vsel %vm388, %v1596, 0.0
  %v1605 = vsel %vm389, %v1597, 0.0
  %v1606 = vsel %vm390, %v1598, 0.0
  %v1607 = vsel %vm391, %v1599, 0.0
  %v1608 = vsel %vm392, %v1600, 0.0
  %v1609 = vsel %vm393, %v1601, 0.0
  %v1610 = vmul.f32 %v1602, %v405
  %v1611 = vmul.f32 %v1603, %v405
  %v1612 = vmul.f32 %v1604, %v405
  %v1613 = vmul.f32 %v1605, %v405
  %v1614 = vmul.f32 %v1606, %v405
  %v1615 = vmul.f32 %v1607, %v405
  %v1616 = vmul.f32 %v1608, %v405
  %v1617 = vmul.f32 %v1609, %v405
  %v1618 = vadd.f32 %v1586, %v1610
  %v1619 = vadd.f32 %v1587, %v1611
  %v1620 = vadd.f32 %v1588, %v1612
  %v1621 = vadd.f32 %v1589, %v1613
  %v1622 = vadd.f32 %v1590, %v1614
  %v1623 = vadd.f32 %v1591, %v1615
  %v1624 = vadd.f32 %v1592, %v1616
  %v1625 = vadd.f32 %v1593, %v1617
  %v1626 = vld [vmem:[#allocation2 + $0x40] sm:$0xff]
  %v1627 = vsel %vm431, %v1531, 0.0
  %v1628 = vsel %vm432, %v1532, 0.0
  %v1629 = vsel %vm433, %v1533, 0.0
  %v1630 = vsel %vm434, %v1534, 0.0
  %v1631 = vsel %vm435, %v1535, 0.0
  %v1632 = vsel %vm436, %v1536, 0.0
  %v1633 = vsel %vm437, %v1537, 0.0
  %v1634 = vsel %vm438, %v1626, 0.0
  %v1635 = vmul.f32 %v1627, %v450
  %v1636 = vmul.f32 %v1628, %v450
  %v1637 = vmul.f32 %v1629, %v450
  %v1638 = vmul.f32 %v1630, %v450
  %v1639 = vmul.f32 %v1631, %v450
  %v1640 = vmul.f32 %v1632, %v450
  %v1641 = vmul.f32 %v1633, %v450
  %v1642 = vmul.f32 %v1634, %v450
  %v1643 = vadd.f32 %v1618, %v1635
  %v1644 = vadd.f32 %v1619, %v1636
  %v1645 = vadd.f32 %v1620, %v1637
  %v1646 = vadd.f32 %v1621, %v1638
  %v1647 = vadd.f32 %v1622, %v1639
  %v1648 = vadd.f32 %v1623, %v1640
  %v1649 = vadd.f32 %v1624, %v1641
  %v1650 = vadd.f32 %v1625, %v1642
  %v1651 = vld [vmem:[#allocation2 + $0x41] sm:$0xff]
  %v1652 = vmul.f32 %v1563, %v471
  %v1653 = vmul.f32 %v1564, %v471
  %v1654 = vmul.f32 %v1565, %v471
  %v1655 = vmul.f32 %v1566, %v471
  %v1656 = vmul.f32 %v1567, %v471
  %v1657 = vmul.f32 %v1568, %v471
  %v1658 = vmul.f32 %v1569, %v471
  %v1659 = vmul.f32 %v1651, %v471
  %v1660 = vadd.f32 %v1643, %v1652
  %v1661 = vadd.f32 %v1644, %v1653
  %v1662 = vadd.f32 %v1645, %v1654
  %v1663 = vadd.f32 %v1646, %v1655
  %v1664 = vadd.f32 %v1647, %v1656
  %v1665 = vadd.f32 %v1648, %v1657
  %v1666 = vadd.f32 %v1649, %v1658
  %v1667 = vadd.f32 %v1650, %v1659
  %v1668 = vld [vmem:[#allocation2 + $0x42] sm:$0xff]
  %v1669 = vsel %vm497, %v1595, 0.0
  %v1670 = vsel %vm498, %v1596, 0.0
  %v1671 = vsel %vm499, %v1597, 0.0
  %v1672 = vsel %vm500, %v1598, 0.0
  %v1673 = vsel %vm501, %v1599, 0.0
  %v1674 = vsel %vm502, %v1600, 0.0
  %v1675 = vsel %vm503, %v1601, 0.0
  %v1676 = vsel %vm504, %v1668, 0.0
  %v1677 = vmul.f32 %v1669, %v516
  %v1678 = vmul.f32 %v1670, %v516
  %v1679 = vmul.f32 %v1671, %v516
  %v1680 = vmul.f32 %v1672, %v516
  %v1681 = vmul.f32 %v1673, %v516
  %v1682 = vmul.f32 %v1674, %v516
  %v1683 = vmul.f32 %v1675, %v516
  %v1684 = vmul.f32 %v1676, %v516
  %v1685 = vadd.f32 %v1660, %v1677
  %v1686 = vadd.f32 %v1661, %v1678
  %v1687 = vadd.f32 %v1662, %v1679
  %v1688 = vadd.f32 %v1663, %v1680
  %v1689 = vadd.f32 %v1664, %v1681
  %v1690 = vadd.f32 %v1665, %v1682
  %v1691 = vadd.f32 %v1666, %v1683
  %v1692 = vadd.f32 %v1667, %v1684
  %v1693 = vld [vmem:[#allocation2 + $0x48] sm:$0xff]
  %v1694 = vsel %vm558, %v1532, 0.0
  %v1695 = vsel %vm559, %v1533, 0.0
  %v1696 = vsel %vm560, %v1534, 0.0
  %v1697 = vsel %vm561, %v1535, 0.0
  %v1698 = vsel %vm562, %v1536, 0.0
  %v1699 = vsel %vm563, %v1537, 0.0
  %v1700 = vsel %vm564, %v1626, 0.0
  %v1701 = vsel %vm565, %v1693, 0.0
  %v1702 = vmul.f32 %v1694, %v577
  %v1703 = vmul.f32 %v1695, %v577
  %v1704 = vmul.f32 %v1696, %v577
  %v1705 = vmul.f32 %v1697, %v577
  %v1706 = vmul.f32 %v1698, %v577
  %v1707 = vmul.f32 %v1699, %v577
  %v1708 = vmul.f32 %v1700, %v577
  %v1709 = vmul.f32 %v1701, %v577
  %v1710 = vadd.f32 %v1685, %v1702
  %v1711 = vadd.f32 %v1686, %v1703
  %v1712 = vadd.f32 %v1687, %v1704
  %v1713 = vadd.f32 %v1688, %v1705
  %v1714 = vadd.f32 %v1689, %v1706
  %v1715 = vadd.f32 %v1690, %v1707
  %v1716 = vadd.f32 %v1691, %v1708
  %v1717 = vadd.f32 %v1692, %v1709
  %v1718 = vld [vmem:[#allocation2 + $0x49] sm:$0xff]
  %v1719 = vsel %vm603, %v1564, 0.0
  %v1720 = vsel %vm604, %v1565, 0.0
  %v1721 = vsel %vm605, %v1566, 0.0
  %v1722 = vsel %vm606, %v1567, 0.0
  %v1723 = vsel %vm607, %v1568, 0.0
  %v1724 = vsel %vm608, %v1569, 0.0
  %v1725 = vsel %vm609, %v1651, 0.0
  %v1726 = vsel %vm610, %v1718, 0.0
  %v1727 = vmul.f32 %v1719, %v622
  %v1728 = vmul.f32 %v1720, %v622
  %v1729 = vmul.f32 %v1721, %v622
  %v1730 = vmul.f32 %v1722, %v622
  %v1731 = vmul.f32 %v1723, %v622
  %v1732 = vmul.f32 %v1724, %v622
  %v1733 = vmul.f32 %v1725, %v622
  %v1734 = vmul.f32 %v1726, %v622
  %v1735 = vadd.f32 %v1710, %v1727
  %v1736 = vadd.f32 %v1711, %v1728
  %v1737 = vadd.f32 %v1712, %v1729
  %v1738 = vadd.f32 %v1713, %v1730
  %v1739 = vadd.f32 %v1714, %v1731
  %v1740 = vadd.f32 %v1715, %v1732
  %v1741 = vadd.f32 %v1716, %v1733
  %v1742 = vadd.f32 %v1717, %v1734
  %v1743 = vld [vmem:[#allocation2 + $0x4a] sm:$0xff]
  %v1744 = vsel %vm656, %v1596, 0.0
  %v1745 = vsel %vm657, %v1597, 0.0
  %v1746 = vsel %vm658, %v1598, 0.0
  %v1747 = vsel %vm659, %v1599, 0.0
  %v1748 = vsel %vm660, %v1600, 0.0
  %v1749 = vsel %vm661, %v1601, 0.0
  %v1750 = vsel %vm662, %v1668, 0.0
  %v1751 = vsel %vm663, %v1743, 0.0
  %v1752 = vmul.f32 %v1744, %v675
  %v1753 = vmul.f32 %v1745, %v675
  %v1754 = vmul.f32 %v1746, %v675
  %v1755 = vmul.f32 %v1747, %v675
  %v1756 = vmul.f32 %v1748, %v675
  %v1757 = vmul.f32 %v1749, %v675
  %v1758 = vmul.f32 %v1750, %v675
  %v1759 = vmul.f32 %v1751, %v675
  %v1760 = vadd.f32 %v1735, %v1752
  %v1761 = vadd.f32 %v1736, %v1753
  %v1762 = vadd.f32 %v1737, %v1754
  %v1763 = vadd.f32 %v1738, %v1755
  %v1764 = vadd.f32 %v1739, %v1756
  %v1765 = vadd.f32 %v1740, %v1757
  %v1766 = vadd.f32 %v1741, %v1758
  %v1767 = vadd.f32 %v1742, %v1759
  %v1768 = vmul.f32 %v1760, 0.5
  %v1769 = vmul.f32 %v1761, 0.5
  %v1770 = vmul.f32 %v1762, 0.5
  %v1771 = vmul.f32 %v1763, 0.5
  %v1772 = vmul.f32 %v1764, 0.5
  %v1773 = vmul.f32 %v1765, 0.5
  %v1774 = vmul.f32 %v1766, 0.5
  %v1775 = vmul.f32 %v1767, 0.5
  %v1776 = vmul.f32 %v1760, 0.70710677
  %v1777 = vmul.f32 %v1761, 0.70710677
  %v1778 = vmul.f32 %v1762, 0.70710677
  %v1779 = vmul.f32 %v1763, 0.70710677
  %v1780 = vmul.f32 %v1764, 0.70710677
  %v1781 = vmul.f32 %v1765, 0.70710677
  %v1782 = vmul.f32 %v1766, 0.70710677
  %v1783 = vmul.f32 %v1767, 0.70710677
  %v1784 = verf.f32.pop %v1776
  %v1785 = verf.f32.pop %v1777
  %v1786 = verf.f32.pop %v1778
  %v1787 = verf.f32.pop %v1779
  %v1788 = verf.f32.pop %v1780
  %v1789 = verf.f32.pop %v1781
  %v1790 = verf.f32.pop %v1782
  %v1791 = verf.f32.pop %v1783
  %v1792 = vadd.f32 %v1784, 1.0
  %v1793 = vadd.f32 %v1785, 1.0
  %v1794 = vadd.f32 %v1786, 1.0
  %v1795 = vadd.f32 %v1787, 1.0
  %v1796 = vadd.f32 %v1788, 1.0
  %v1797 = vadd.f32 %v1789, 1.0
  %v1798 = vadd.f32 %v1790, 1.0
  %v1799 = vadd.f32 %v1791, 1.0
  %v1800 = vmul.f32 %v1768, %v1792
  %v1801 = vmul.f32 %v1769, %v1793
  %v1802 = vmul.f32 %v1770, %v1794
  %v1803 = vmul.f32 %v1771, %v1795
  %v1804 = vmul.f32 %v1772, %v1796
  %v1805 = vmul.f32 %v1773, %v1797
  %v1806 = vmul.f32 %v1774, %v1798
  %v1807 = vmul.f32 %v1775, %v1799
  %v1809 = vsel %vm37, %v1800, 0
  %v1812 = vsel %vm37, %v1801, 0
  %v1815 = vsel %vm37, %v1802, 0
  %v1818 = vsel %vm37, %v1803, 0
  %v1821 = vsel %vm37, %v1804, 0
  %v1824 = vsel %vm37, %v1805, 0
  %v1827 = vsel %vm37, %v1806, 0
  %v1830 = vsel %vm37, %v1807, 0
  %1832 = vmatprep.subr.mxu0 0.0
  %1833 = vmatpush1.msra.mxu0 0.0
  %1834 = vmatprep.subr.mxu0 0.0
  %1835 = vmatpush1.msra.mxu0 0.0
  %1836 = vmatprep.subr.mxu0 0.0
  %1837 = vmatpush1.msra.mxu0 0.0
  %1838 = vmatprep.subr.mxu0 0.0
  %1839 = vmatpush1.msra.mxu0 0.0
  %1840 = vmatprep.subr.mxu0 0.0
  %1841 = vmatpush1.msra.mxu0 0.0
  %1842 = vmatprep.subr.mxu0 0.0
  %1843 = vmatpush1.msra.mxu0 0.0
  %1844 = vmatprep.subr.mxu0 0.0
  %1845 = vmatpush1.msra.mxu0 0.0
  %1846 = vmatprep.subr.mxu0 0.0
  %1847 = vmatpush1.msra.mxu0 0.0
  %1848 = vmatprep.subr.mxu0 0.0
  %1849 = vmatpush1.msra.mxu0 0.0
  %1850 = vmatprep.subr.mxu0 0.0
  %1851 = vmatpush1.msra.mxu0 0.0
  %1852 = vmatprep.subr.mxu0 0.0
  %1853 = vmatpush1.msra.mxu0 0.0
  %1854 = vmatprep.subr.mxu0 0.0
  %1855 = vmatpush1.msra.mxu0 0.0
  %1856 = vmatprep.subr.mxu0 0.0
  %1857 = vmatpush1.msra.mxu0 %v35
  %1858 = vmatprep.subr.mxu0 0.0
  %1859 = vmatpush1.msra.mxu0 %v34
  %1860 = vmatprep.subr.mxu0 0.0
  %1861 = vmatpush1.msra.mxu0 %v33
  %1862 = vmatprep.subr.mxu0 0.0
  %1863 = vmatpush1.msra.mxu0 %v32
  %1864 = vmatprep.subr.mxu0 0.0
  %1865 = vmatpush2.msra.mxu0 0.0
  %1866 = vmatprep.subr.mxu0 0.0
  %1867 = vmatpush2.msra.mxu0 0.0
  %1868 = vmatprep.subr.mxu0 0.0
  %1869 = vmatpush2.msra.mxu0 0.0
  %1870 = vmatprep.subr.mxu0 0.0
  %1871 = vmatpush2.msra.mxu0 0.0
  %1872 = vmatprep.subr.mxu0 0.0
  %1873 = vmatpush2.msra.mxu0 0.0
  %1874 = vmatprep.subr.mxu0 0.0
  %1875 = vmatpush2.msra.mxu0 0.0
  %1876 = vmatprep.subr.mxu0 0.0
  %1877 = vmatpush2.msra.mxu0 0.0
  %1878 = vmatprep.subr.mxu0 0.0
  %1879 = vmatpush2.msra.mxu0 0.0
  %1880 = vmatprep.subr.mxu0 0.0
  %1881 = vmatpush2.msra.mxu0 0.0
  %1882 = vmatprep.subr.mxu0 0.0
  %1883 = vmatpush2.msra.mxu0 0.0
  %1884 = vmatprep.subr.mxu0 0.0
  %1885 = vmatpush2.msra.mxu0 0.0
  %1886 = vmatprep.subr.mxu0 0.0
  %1887 = vmatpush2.msra.mxu0 0.0
  %1888 = vmatprep.subr.mxu0 0.0
  %1889 = vmatpush2.msra.mxu0 0.0
  %1890 = vmatprep.subr.mxu0 0.0
  %1891 = vmatpush2.msra.mxu0 0.0
  %1892 = vmatprep.subr.mxu0 0.0
  %1893 = vmatpush2.msra.mxu0 0.0
  %1894 = vmatprep.subr.mxu0 0.0
  %1895 = vmatpush2.msra.mxu0 0.0
  %1896 = vmatprep.mubr.f32.mxu0 0.0
  %1897 = vmatmul.mubr.f32.gmra.mxu0 %v1809
  %v1898 = vpop.f32.mrf.mxu0
  %v1899 = vadd.f32 %v736, %v1898
  %v1900 = vpop.f32.mrf.mxu0
  %1901 = vmatprep.mubr.f32.mxu0 0.0
  %1902 = vmatmul.mubr.f32.gmra.mxu0 %v1812
  %v1903 = vpop.f32.mrf.mxu0
  %v1904 = vadd.f32 %v736, %v1903
  %v1905 = vpop.f32.mrf.mxu0
  %1906 = vmatprep.mubr.f32.mxu0 0.0
  %1907 = vmatmul.mubr.f32.gmra.mxu0 %v1815
  %v1908 = vpop.f32.mrf.mxu0
  %v1909 = vadd.f32 %v736, %v1908
  %v1910 = vpop.f32.mrf.mxu0
  %1911 = vmatprep.mubr.f32.mxu0 0.0
  %1912 = vmatmul.mubr.f32.gmra.mxu0 %v1818
  %v1913 = vpop.f32.mrf.mxu0
  %v1914 = vadd.f32 %v736, %v1913
  %v1915 = vpop.f32.mrf.mxu0
  %1916 = vmatprep.mubr.f32.mxu0 0.0
  %1917 = vmatmul.mubr.f32.gmra.mxu0 %v1821
  %v1918 = vpop.f32.mrf.mxu0
  %v1919 = vadd.f32 %v736, %v1918
  %v1920 = vpop.f32.mrf.mxu0
  %1921 = vmatprep.mubr.f32.mxu0 0.0
  %1922 = vmatmul.mubr.f32.gmra.mxu0 %v1824
  %v1923 = vpop.f32.mrf.mxu0
  %v1924 = vadd.f32 %v736, %v1923
  %v1925 = vpop.f32.mrf.mxu0
  %1926 = vmatprep.mubr.f32.mxu0 0.0
  %1927 = vmatmul.mubr.f32.gmra.mxu0 %v1827
  %v1928 = vpop.f32.mrf.mxu0
  %v1929 = vadd.f32 %v736, %v1928
  %v1930 = vpop.f32.mrf.mxu0
  %1931 = vmatprep.mubr.f32.mxu0 0.0
  %1932 = vmatmul.mubr.f32.gmra.mxu0 %v1830
  %v1933 = vpop.f32.mrf.mxu0
  %v1934 = vadd.f32 %v736, %v1933
  %v1935 = vpop.f32.mrf.mxu0
  %1936 = vdwg.mxu0
  %s1937 = scalar_lea.vmem %s7, 88
  %1938 = vst.msk [vmem:[%s1937] sm:$0xff] %vm64, %v1899
  %1939 = vst.msk [vmem:[%s1937 + $0x8] sm:$0xff] %vm64, %v1904
  %1940 = vst.msk [vmem:[%s1937 + $0x10] sm:$0xff] %vm64, %v1909
  %1941 = vst.msk [vmem:[%s1937 + $0x18] sm:$0xff] %vm64, %v1914
  %1942 = vst.msk [vmem:[%s1937 + $0x20] sm:$0xff] %vm64, %v1919
  %1943 = vst.msk [vmem:[%s1937 + $0x28] sm:$0xff] %vm64, %v1924
  %1944 = vst.msk [vmem:[%s1937 + $0x30] sm:$0xff] %vm64, %v1929
  %1945 = vst.msk [vmem:[%s1937 + $0x38] sm:$0xff] %vm64, %v1934
  %v1946 = vld [vmem:[%s1384 + $0x40] sm:$0xff]
  %v1947 = vld [vmem:[%s1384 + $0x48] sm:$0xff]
  %v1949 = vsel %vm64, %v1946, 0
  %v1952 = vsel %vm64, %v1947, 0
  %1954 = vmatprep.subr.mxu0 0.0
  %1955 = vmatpush1.msra.mxu0 0.0
  %1956 = vmatprep.subr.mxu0 0.0
  %1957 = vmatpush1.msra.mxu0 0.0
  %1958 = vmatprep.subr.mxu0 0.0
  %1959 = vmatpush1.msra.mxu0 0.0
  %1960 = vmatprep.subr.mxu0 0.0
  %1961 = vmatpush1.msra.mxu0 0.0
  %1962 = vmatprep.subr.mxu0 0.0
  %1963 = vmatpush1.msra.mxu0 0.0
  %1964 = vmatprep.subr.mxu0 0.0
  %1965 = vmatpush1.msra.mxu0 0.0
  %1966 = vmatprep.subr.mxu0 0.0
  %1967 = vmatpush1.msra.mxu0 0.0
  %1968 = vmatprep.subr.mxu0 0.0
  %1969 = vmatpush1.msra.mxu0 0.0
  %1970 = vmatprep.subr.mxu0 0.0
  %1971 = vmatpush1.msra.mxu0 0.0
  %1972 = vmatprep.subr.mxu0 0.0
  %1973 = vmatpush1.msra.mxu0 0.0
  %1974 = vmatprep.subr.mxu0 0.0
  %1975 = vmatpush1.msra.mxu0 0.0
  %1976 = vmatprep.subr.mxu0 0.0
  %1977 = vmatpush1.msra.mxu0 0.0
  %1978 = vmatprep.subr.mxu0 0.0
  %1979 = vmatpush1.msra.mxu0 0.0
  %1980 = vmatprep.subr.mxu0 0.0
  %1981 = vmatpush1.msra.mxu0 0.0
  %1982 = vmatprep.subr.mxu0 0.0
  %1983 = vmatpush1.msra.mxu0 %v27
  %1984 = vmatprep.subr.mxu0 0.0
  %1985 = vmatpush1.msra.mxu0 %v26
  %1986 = vmatprep.subr.mxu0 0.0
  %1987 = vmatpush2.msra.mxu0 0.0
  %1988 = vmatprep.subr.mxu0 0.0
  %1989 = vmatpush2.msra.mxu0 0.0
  %1990 = vmatprep.subr.mxu0 0.0
  %1991 = vmatpush2.msra.mxu0 0.0
  %1992 = vmatprep.subr.mxu0 0.0
  %1993 = vmatpush2.msra.mxu0 0.0
  %1994 = vmatprep.subr.mxu0 0.0
  %1995 = vmatpush2.msra.mxu0 0.0
  %1996 = vmatprep.subr.mxu0 0.0
  %1997 = vmatpush2.msra.mxu0 0.0
  %1998 = vmatprep.subr.mxu0 0.0
  %1999 = vmatpush2.msra.mxu0 0.0
  %2000 = vmatprep.subr.mxu0 0.0
  %2001 = vmatpush2.msra.mxu0 0.0
  %2002 = vmatprep.subr.mxu0 0.0
  %2003 = vmatpush2.msra.mxu0 0.0
  %2004 = vmatprep.subr.mxu0 0.0
  %2005 = vmatpush2.msra.mxu0 0.0
  %2006 = vmatprep.subr.mxu0 0.0
  %2007 = vmatpush2.msra.mxu0 0.0
  %2008 = vmatprep.subr.mxu0 0.0
  %2009 = vmatpush2.msra.mxu0 0.0
  %2010 = vmatprep.subr.mxu0 0.0
  %2011 = vmatpush2.msra.mxu0 0.0
  %2012 = vmatprep.subr.mxu0 0.0
  %2013 = vmatpush2.msra.mxu0 0.0
  %2014 = vmatprep.subr.mxu0 0.0
  %2015 = vmatpush2.msra.mxu0 0.0
  %2016 = vmatprep.subr.mxu0 0.0
  %2017 = vmatpush2.msra.mxu0 0.0
  %2018 = vmatprep.mubr.f32.mxu0 0.0
  %2019 = vmatmul.mubr.f32.gmra.mxu0 %v1949
  %v2020 = vpop.f32.mrf.mxu0
  %v2021 = vadd.f32 %v62, %v2020
  %v2022 = vpop.f32.mrf.mxu0
  %2023 = vmatprep.mubr.f32.mxu0 0.0
  %2024 = vmatmul.mubr.f32.gmra.mxu0 %v1952
  %v2025 = vpop.f32.mrf.mxu0
  %v2026 = vadd.f32 %v62, %v2025
  %v2027 = vpop.f32.mrf.mxu0
  %2028 = vdwg.mxu0
  %2029 = vst.msk [vmem:[#allocation2 + $0x9] sm:$0xff] %vm37, %v2021
  %2030 = vst.msk [vmem:[#allocation2 + $0x11] sm:$0xff] %vm37, %v2026
  %v2031 = vld [vmem:[#allocation2 + $0x4] sm:$0xff]
  %v2032 = vld [vmem:[#allocation2 + $0xc] sm:$0xff]
  %v2033 = vsel %vm972, %v2031, 0.0
  %v2034 = vsel %vm973, %v2032, 0.0
  %v2035 = vmul.f32 %v2033, %v285
  %v2036 = vmul.f32 %v2034, %v285
  %v2037 = vadd.f32 %v225, %v2035
  %v2038 = vadd.f32 %v225, %v2036
  %v2039 = vld [vmem:[#allocation2 + $0x5] sm:$0xff]
  %v2040 = vld [vmem:[#allocation2 + $0xd] sm:$0xff]
  %v2041 = vsel %vm984, %v2039, 0.0
  %v2042 = vsel %vm985, %v2040, 0.0
  %v2043 = vmul.f32 %v2041, %v337
  %v2044 = vmul.f32 %v2042, %v337
  %v2045 = vadd.f32 %v2037, %v2043
  %v2046 = vadd.f32 %v2038, %v2044
  %v2047 = vld [vmem:[#allocation2 + $0x6] sm:$0xff]
  %v2048 = vld [vmem:[#allocation2 + $0xe] sm:$0xff]
  %v2049 = vsel %vm1000, %v2047, 0.0
  %v2050 = vsel %vm1001, %v2048, 0.0
  %v2051 = vmul.f32 %v2049, %v405
  %v2052 = vmul.f32 %v2050, %v405
  %v2053 = vadd.f32 %v2045, %v2051
  %v2054 = vadd.f32 %v2046, %v2052
  %v2055 = vld [vmem:[#allocation2 + $0x8] sm:$0xff]
  %v2056 = vld [vmem:[#allocation2 + $0x10] sm:$0xff]
  %v2057 = vsel %vm1012, %v2055, 0.0
  %v2058 = vsel %vm1013, %v2056, 0.0
  %v2059 = vmul.f32 %v2057, %v450
  %v2060 = vmul.f32 %v2058, %v450
  %v2061 = vadd.f32 %v2053, %v2059
  %v2062 = vadd.f32 %v2054, %v2060
  %v2063 = vld [vmem:[#allocation2 + $0x9] sm:$0xff]
  %v2064 = vld [vmem:[#allocation2 + $0x11] sm:$0xff]
  %v2065 = vmul.f32 %v2063, %v471
  %v2066 = vmul.f32 %v2064, %v471
  %v2067 = vadd.f32 %v2061, %v2065
  %v2068 = vadd.f32 %v2062, %v2066
  %v2069 = vld [vmem:[#allocation2 + $0xa] sm:$0xff]
  %v2070 = vld [vmem:[#allocation2 + $0x12] sm:$0xff]
  %v2071 = vsel %vm1030, %v2069, 0.0
  %v2072 = vsel %vm1031, %v2070, 0.0
  %v2073 = vmul.f32 %v2071, %v516
  %v2074 = vmul.f32 %v2072, %v516
  %v2075 = vadd.f32 %v2067, %v2073
  %v2076 = vadd.f32 %v2068, %v2074
  %v2077 = vld [vmem:[#allocation2 + $0x14] sm:$0xff]
  %v2078 = vsel %vm1045, %v2032, 0.0
  %v2079 = vsel %vm1046, %v2077, 0.0
  %v2080 = vmul.f32 %v2078, %v577
  %v2081 = vmul.f32 %v2079, %v577
  %v2082 = vadd.f32 %v2075, %v2080
  %v2083 = vadd.f32 %v2076, %v2081
  %v2084 = vld [vmem:[#allocation2 + $0x15] sm:$0xff]
  %v2085 = vsel %vm1056, %v2040, 0.0
  %v2086 = vsel %vm1057, %v2084, 0.0
  %v2087 = vmul.f32 %v2085, %v622
  %v2088 = vmul.f32 %v2086, %v622
  %v2089 = vadd.f32 %v2082, %v2087
  %v2090 = vadd.f32 %v2083, %v2088
  %v2091 = vld [vmem:[#allocation2 + $0x16] sm:$0xff]
  %v2092 = vsel %vm1069, %v2048, 0.0
  %v2093 = vsel %vm1070, %v2091, 0.0
  %v2094 = vmul.f32 %v2092, %v675
  %v2095 = vmul.f32 %v2093, %v675
  %v2096 = vadd.f32 %v2089, %v2094
  %v2097 = vadd.f32 %v2090, %v2095
  %v2098 = vmul.f32 %v2096, 0.5
  %v2099 = vmul.f32 %v2097, 0.5
  %v2100 = vmul.f32 %v2096, 0.70710677
  %v2101 = vmul.f32 %v2097, 0.70710677
  %v2102 = verf.f32.pop %v2100
  %v2103 = verf.f32.pop %v2101
  %v2104 = vadd.f32 %v2102, 1.0
  %v2105 = vadd.f32 %v2103, 1.0
  %v2106 = vmul.f32 %v2098, %v2104
  %v2107 = vmul.f32 %v2099, %v2105
  %v2109 = vsel %vm37, %v2106, 0
  %v2112 = vsel %vm37, %v2107, 0
  %2114 = vmatprep.subr.mxu0 0.0
  %2115 = vmatpush1.msra.mxu0 0.0
  %2116 = vmatprep.subr.mxu0 0.0
  %2117 = vmatpush1.msra.mxu0 0.0
  %2118 = vmatprep.subr.mxu0 0.0
  %2119 = vmatpush1.msra.mxu0 0.0
  %2120 = vmatprep.subr.mxu0 0.0
  %2121 = vmatpush1.msra.mxu0 0.0
  %2122 = vmatprep.subr.mxu0 0.0
  %2123 = vmatpush1.msra.mxu0 0.0
  %2124 = vmatprep.subr.mxu0 0.0
  %2125 = vmatpush1.msra.mxu0 0.0
  %2126 = vmatprep.subr.mxu0 0.0
  %2127 = vmatpush1.msra.mxu0 0.0
  %2128 = vmatprep.subr.mxu0 0.0
  %2129 = vmatpush1.msra.mxu0 0.0
  %2130 = vmatprep.subr.mxu0 0.0
  %2131 = vmatpush1.msra.mxu0 0.0
  %2132 = vmatprep.subr.mxu0 0.0
  %2133 = vmatpush1.msra.mxu0 0.0
  %2134 = vmatprep.subr.mxu0 0.0
  %2135 = vmatpush1.msra.mxu0 0.0
  %2136 = vmatprep.subr.mxu0 0.0
  %2137 = vmatpush1.msra.mxu0 0.0
  %2138 = vmatprep.subr.mxu0 0.0
  %2139 = vmatpush1.msra.mxu0 %v35
  %2140 = vmatprep.subr.mxu0 0.0
  %2141 = vmatpush1.msra.mxu0 %v34
  %2142 = vmatprep.subr.mxu0 0.0
  %2143 = vmatpush1.msra.mxu0 %v33
  %2144 = vmatprep.subr.mxu0 0.0
  %2145 = vmatpush1.msra.mxu0 %v32
  %2146 = vmatprep.subr.mxu0 0.0
  %2147 = vmatpush2.msra.mxu0 0.0
  %2148 = vmatprep.subr.mxu0 0.0
  %2149 = vmatpush2.msra.mxu0 0.0
  %2150 = vmatprep.subr.mxu0 0.0
  %2151 = vmatpush2.msra.mxu0 0.0
  %2152 = vmatprep.subr.mxu0 0.0
  %2153 = vmatpush2.msra.mxu0 0.0
  %2154 = vmatprep.subr.mxu0 0.0
  %2155 = vmatpush2.msra.mxu0 0.0
  %2156 = vmatprep.subr.mxu0 0.0
  %2157 = vmatpush2.msra.mxu0 0.0
  %2158 = vmatprep.subr.mxu0 0.0
  %2159 = vmatpush2.msra.mxu0 0.0
  %2160 = vmatprep.subr.mxu0 0.0
  %2161 = vmatpush2.msra.mxu0 0.0
  %2162 = vmatprep.subr.mxu0 0.0
  %2163 = vmatpush2.msra.mxu0 0.0
  %2164 = vmatprep.subr.mxu0 0.0
  %2165 = vmatpush2.msra.mxu0 0.0
  %2166 = vmatprep.subr.mxu0 0.0
  %2167 = vmatpush2.msra.mxu0 0.0
  %2168 = vmatprep.subr.mxu0 0.0
  %2169 = vmatpush2.msra.mxu0 0.0
  %2170 = vmatprep.subr.mxu0 0.0
  %2171 = vmatpush2.msra.mxu0 0.0
  %2172 = vmatprep.subr.mxu0 0.0
  %2173 = vmatpush2.msra.mxu0 0.0
  %2174 = vmatprep.subr.mxu0 0.0
  %2175 = vmatpush2.msra.mxu0 0.0
  %2176 = vmatprep.subr.mxu0 0.0
  %2177 = vmatpush2.msra.mxu0 0.0
  %2178 = vmatprep.mubr.f32.mxu0 0.0
  %2179 = vmatmul.mubr.f32.gmra.mxu0 %v2109
  %v2180 = vpop.f32.mrf.mxu0
  %v2181 = vadd.f32 %v736, %v2180
  %v2182 = vpop.f32.mrf.mxu0
  %2183 = vmatprep.mubr.f32.mxu0 0.0
  %2184 = vmatmul.mubr.f32.gmra.mxu0 %v2112
  %v2185 = vpop.f32.mrf.mxu0
  %v2186 = vadd.f32 %v736, %v2185
  %v2187 = vpop.f32.mrf.mxu0
  %2188 = vdwg.mxu0
  %2189 = vst.msk [vmem:[%s1937 + $0x40] sm:$0xff] %vm64, %v2181
  %2190 = vst.msk [vmem:[%s1937 + $0x48] sm:$0xff] %vm64, %v2186
  %v2191 = vld [vmem:[%s1384 + $0x50] sm:$0xf]
  %v2193 = vsel %vm64, %v2191, 0
  %2195 = vmatprep.subr.mxu0 0.0
  %2196 = vmatpush1.msra.mxu0 0.0
  %2197 = vmatprep.subr.mxu0 0.0
  %2198 = vmatpush1.msra.mxu0 0.0
  %2199 = vmatprep.subr.mxu0 0.0
  %2200 = vmatpush1.msra.mxu0 0.0
  %2201 = vmatprep.subr.mxu0 0.0
  %2202 = vmatpush1.msra.mxu0 0.0
  %2203 = vmatprep.subr.mxu0 0.0
  %2204 = vmatpush1.msra.mxu0 0.0
  %2205 = vmatprep.subr.mxu0 0.0
  %2206 = vmatpush1.msra.mxu0 0.0
  %2207 = vmatprep.subr.mxu0 0.0
  %2208 = vmatpush1.msra.mxu0 0.0
  %2209 = vmatprep.subr.mxu0 0.0
  %2210 = vmatpush1.msra.mxu0 0.0
  %2211 = vmatprep.subr.mxu0 0.0
  %2212 = vmatpush1.msra.mxu0 0.0
  %2213 = vmatprep.subr.mxu0 0.0
  %2214 = vmatpush1.msra.mxu0 0.0
  %2215 = vmatprep.subr.mxu0 0.0
  %2216 = vmatpush1.msra.mxu0 0.0
  %2217 = vmatprep.subr.mxu0 0.0
  %2218 = vmatpush1.msra.mxu0 0.0
  %2219 = vmatprep.subr.mxu0 0.0
  %2220 = vmatpush1.msra.mxu0 0.0
  %2221 = vmatprep.subr.mxu0 0.0
  %2222 = vmatpush1.msra.mxu0 0.0
  %2223 = vmatprep.subr.mxu0 0.0
  %2224 = vmatpush1.msra.mxu0 %v27
  %2225 = vmatprep.subr.mxu0 0.0
  %2226 = vmatpush1.msra.mxu0 %v26
  %2227 = vmatprep.subr.mxu0 0.0
  %2228 = vmatpush2.msra.mxu0 0.0
  %2229 = vmatprep.subr.mxu0 0.0
  %2230 = vmatpush2.msra.mxu0 0.0
  %2231 = vmatprep.subr.mxu0 0.0
  %2232 = vmatpush2.msra.mxu0 0.0
  %2233 = vmatprep.subr.mxu0 0.0
  %2234 = vmatpush2.msra.mxu0 0.0
  %2235 = vmatprep.subr.mxu0 0.0
  %2236 = vmatpush2.msra.mxu0 0.0
  %2237 = vmatprep.subr.mxu0 0.0
  %2238 = vmatpush2.msra.mxu0 0.0
  %2239 = vmatprep.subr.mxu0 0.0
  %2240 = vmatpush2.msra.mxu0 0.0
  %2241 = vmatprep.subr.mxu0 0.0
  %2242 = vmatpush2.msra.mxu0 0.0
  %2243 = vmatprep.subr.mxu0 0.0
  %2244 = vmatpush2.msra.mxu0 0.0
  %2245 = vmatprep.subr.mxu0 0.0
  %2246 = vmatpush2.msra.mxu0 0.0
  %2247 = vmatprep.subr.mxu0 0.0
  %2248 = vmatpush2.msra.mxu0 0.0
  %2249 = vmatprep.subr.mxu0 0.0
  %2250 = vmatpush2.msra.mxu0 0.0
  %2251 = vmatprep.subr.mxu0 0.0
  %2252 = vmatpush2.msra.mxu0 0.0
  %2253 = vmatprep.subr.mxu0 0.0
  %2254 = vmatpush2.msra.mxu0 0.0
  %2255 = vmatprep.subr.mxu0 0.0
  %2256 = vmatpush2.msra.mxu0 0.0
  %2257 = vmatprep.subr.mxu0 0.0
  %2258 = vmatpush2.msra.mxu0 0.0
  %2259 = vmatprep.mubr.f32.mxu0 0.0
  %2260 = vmatmul.mubr.f32.gmra.mxu0 %v2193
  %v2261 = vpop.f32.mrf.mxu0
  %v2262 = vadd.f32 %v62, %v2261
  %v2263 = vpop.f32.mrf.mxu0
  %2264 = vdwg.mxu0
  %2265 = vst.msk [vmem:[#allocation2 + $0x9] sm:$0xf] %vm1244, %v2262
  %v2266 = vld [vmem:[#allocation2 + $0x6] sm:$0xf]
  %v2267 = vsel %vm1252, %v2266, 0.0
  %v2268 = vmul.f32 %v2267, %v285
  %v2269 = vadd.f32 %v225, %v2268
  %v2270 = vld [vmem:[#allocation2 + $0x7] sm:$0xf]
  %v2271 = vsel %vm1258, %v2270, 0.0
  %v2272 = vmul.f32 %v2271, %v337
  %v2273 = vadd.f32 %v2269, %v2272
  %v2274 = vld [vmem:[#allocation2 + $0x8] sm:$0xf]
  %v2275 = vsel %vm1266, %v2274, 0.0
  %v2276 = vmul.f32 %v2275, %v405
  %v2277 = vadd.f32 %v2273, %v2276
  %v2278 = vsel %vm1271, %v2274, 0.0
  %v2279 = vmul.f32 %v2278, %v450
  %v2280 = vadd.f32 %v2277, %v2279
  %v2281 = vld [vmem:[#allocation2 + $0x9] sm:$0xf]
  %v2282 = vmul.f32 %v2281, %v471
  %v2283 = vadd.f32 %v2280, %v2282
  %v2284 = vld [vmem:[#allocation2 + $0xa] sm:$0xf]
  %v2285 = vsel %vm1280, %v2284, 0.0
  %v2286 = vmul.f32 %v2285, %v516
  %v2287 = vadd.f32 %v2283, %v2286
  %v2288 = vsel %vm1287, %v2284, 0.0
  %v2289 = vmul.f32 %v2288, %v577
  %v2290 = vadd.f32 %v2287, %v2289
  %v2291 = vld [vmem:[#allocation2 + $0xb] sm:$0xf]
  %v2292 = vsel %vm1293, %v2291, 0.0
  %v2293 = vmul.f32 %v2292, %v622
  %v2294 = vadd.f32 %v2290, %v2293
  %v2295 = vld [vmem:[#allocation2 + $0xc] sm:$0xf]
  %v2296 = vsel %vm1300, %v2295, 0.0
  %v2297 = vmul.f32 %v2296, %v675
  %v2298 = vadd.f32 %v2294, %v2297
  %v2299 = vmul.f32 %v2298, 0.5
  %v2300 = vmul.f32 %v2298, 0.70710677
  %v2301 = verf.f32.pop %v2300
  %v2302 = vadd.f32 %v2301, 1.0
  %v2303 = vmul.f32 %v2299, %v2302
  %v2305 = vsel %vm37, %v2303, 0
  %2307 = vmatprep.subr.mxu0 0.0
  %2308 = vmatpush1.msra.mxu0 0.0
  %2309 = vmatprep.subr.mxu0 0.0
  %2310 = vmatpush1.msra.mxu0 0.0
  %2311 = vmatprep.subr.mxu0 0.0
  %2312 = vmatpush1.msra.mxu0 0.0
  %2313 = vmatprep.subr.mxu0 0.0
  %2314 = vmatpush1.msra.mxu0 0.0
  %2315 = vmatprep.subr.mxu0 0.0
  %2316 = vmatpush1.msra.mxu0 0.0
  %2317 = vmatprep.subr.mxu0 0.0
  %2318 = vmatpush1.msra.mxu0 0.0
  %2319 = vmatprep.subr.mxu0 0.0
  %2320 = vmatpush1.msra.mxu0 0.0
  %2321 = vmatprep.subr.mxu0 0.0
  %2322 = vmatpush1.msra.mxu0 0.0
  %2323 = vmatprep.subr.mxu0 0.0
  %2324 = vmatpush1.msra.mxu0 0.0
  %2325 = vmatprep.subr.mxu0 0.0
  %2326 = vmatpush1.msra.mxu0 0.0
  %2327 = vmatprep.subr.mxu0 0.0
  %2328 = vmatpush1.msra.mxu0 0.0
  %2329 = vmatprep.subr.mxu0 0.0
  %2330 = vmatpush1.msra.mxu0 0.0
  %2331 = vmatprep.subr.mxu0 0.0
  %2332 = vmatpush1.msra.mxu0 %v35
  %2333 = vmatprep.subr.mxu0 0.0
  %2334 = vmatpush1.msra.mxu0 %v34
  %2335 = vmatprep.subr.mxu0 0.0
  %2336 = vmatpush1.msra.mxu0 %v33
  %2337 = vmatprep.subr.mxu0 0.0
  %2338 = vmatpush1.msra.mxu0 %v32
  %2339 = vmatprep.subr.mxu0 0.0
  %2340 = vmatpush2.msra.mxu0 0.0
  %2341 = vmatprep.subr.mxu0 0.0
  %2342 = vmatpush2.msra.mxu0 0.0
  %2343 = vmatprep.subr.mxu0 0.0
  %2344 = vmatpush2.msra.mxu0 0.0
  %2345 = vmatprep.subr.mxu0 0.0
  %2346 = vmatpush2.msra.mxu0 0.0
  %2347 = vmatprep.subr.mxu0 0.0
  %2348 = vmatpush2.msra.mxu0 0.0
  %2349 = vmatprep.subr.mxu0 0.0
  %2350 = vmatpush2.msra.mxu0 0.0
  %2351 = vmatprep.subr.mxu0 0.0
  %2352 = vmatpush2.msra.mxu0 0.0
  %2353 = vmatprep.subr.mxu0 0.0
  %2354 = vmatpush2.msra.mxu0 0.0
  %2355 = vmatprep.subr.mxu0 0.0
  %2356 = vmatpush2.msra.mxu0 0.0
  %2357 = vmatprep.subr.mxu0 0.0
  %2358 = vmatpush2.msra.mxu0 0.0
  %2359 = vmatprep.subr.mxu0 0.0
  %2360 = vmatpush2.msra.mxu0 0.0
  %2361 = vmatprep.subr.mxu0 0.0
  %2362 = vmatpush2.msra.mxu0 0.0
  %2363 = vmatprep.subr.mxu0 0.0
  %2364 = vmatpush2.msra.mxu0 0.0
  %2365 = vmatprep.subr.mxu0 0.0
  %2366 = vmatpush2.msra.mxu0 0.0
  %2367 = vmatprep.subr.mxu0 0.0
  %2368 = vmatpush2.msra.mxu0 0.0
  %2369 = vmatprep.subr.mxu0 0.0
  %2370 = vmatpush2.msra.mxu0 0.0
  %2371 = vmatprep.mubr.f32.mxu0 0.0
  %2372 = vmatmul.mubr.f32.gmra.mxu0 %v2305
  %v2373 = vpop.f32.mrf.mxu0
  %v2374 = vadd.f32 %v736, %v2373
  %v2375 = vpop.f32.mrf.mxu0
  %2376 = vdwg.mxu0
  %2377 = vst.msk [vmem:[%s1937 + $0x50] sm:$0xf] %vm1382, %v2374
  // Predicated region
  $region30: #{tpu_custom_call.1} parent=0 // pred_check
    _
  $region31: #{tpu_custom_call.1} parent=0 // pred_check_branch
    %2379 = sbr.rel (0) target = $region33
  $region32: #{tpu_custom_call.1} parent=0 // pred_region
    _
  $region33: #{tpu_custom_call.1} parent=0 // pred_fallthru
    _
  // Predicated region
  $region34: #{tpu_custom_call.1} parent=0 // pred_check
    _
  $region35: #{tpu_custom_call.1} parent=0 // pred_check_branch
    %2381 = sbr.rel (0) target = $region37
  $region36: #{tpu_custom_call.1} parent=0 // pred_region
    _
  $region37: #{tpu_custom_call.1} parent=0 // pred_fallthru
    _

</llo_original>
